<compile_context>
chip_gen: v7x
topology: tpu7x:2x2x1
jax: 0.10.0
libtpu: 0.0.40
codegen_flags: <defaults>
</compile_context>

<pallas_src>
import functools

import jax
import jax.numpy as jnp
import numpy as np
from jax.experimental import pallas as pl
from jax.experimental.pallas import tpu as pltpu


def encoder_kernel(x_ref, w_fused_ref, b_fused_ref, attn_bias_ref, pool_bias_ref,
                   b_tail_ref, w_proj_ref, b_proj_ref, w_add_ref, b_add_ref, qv_ref,
                   o_ref, *, num_heads, head_dim, matmul_dtype):
    f32 = jnp.float32
    md = matmul_dtype
    N = x_ref.shape[0]                      # N = bt * S flattened rows of this batch tile
    d = head_dim
    E = num_heads * d

    x = x_ref[...]                          # (N, E), already cast to matmul_dtype in wrapper

    # ---- single fused projection: columns = [Q | K | V_eff(h0) ... V_eff(h-1)] ----
    # 1/sqrt(d) is folded into the Q columns/bias; W_out is folded into the V_eff columns.
    big = jnp.dot(x, w_fused_ref[...], preferred_element_type=f32) + b_fused_ref[...]  # (N, 2E+hE) f32

    # ---- multi-head self-attention, one head at a time (bounded live set) ----
    acc = jnp.zeros((N, E), f32)
    for h in range(num_heads):
        q_h = big[:, h * d:(h + 1) * d].astype(md)                     # (N, d)
        k_h = big[:, E + h * d:E + (h + 1) * d].astype(md)             # (N, d)
        v_h = big[:, 2 * E + h * E:2 * E + (h + 1) * E].astype(md)     # (N, E)  (out_proj folded)

        s_h = jax.lax.dot_general(q_h, k_h, (((1,), (1,)), ((), ())),
                                  preferred_element_type=f32)          # (N, N)
        s_h = s_h + attn_bias_ref[...]                                 # block-diag 0 / -1e30 bias
        s_h = s_h - jnp.max(s_h, axis=-1, keepdims=True)
        p_h = jnp.exp(s_h)
        p_h = p_h * pl.reciprocal(jnp.sum(p_h, axis=-1, keepdims=True), approx=True)

        acc = acc + jnp.dot(p_h.astype(md), v_h, preferred_element_type=f32)  # (N, E)

    # bias of the V path (already multiplied by W_out) + out_proj bias, added once
    attn = acc + b_tail_ref[...]                                       # (N, E)

    # ---- projection Linear(E -> H) ----
    proj = jnp.dot(attn.astype(md), w_proj_ref[...],
                   preferred_element_type=f32) + b_proj_ref[...]       # (N, H)

    # ---- additive attention pooling (per-sequence softmax over rows, pooled on the MXU) ----
    t = jnp.tanh(jnp.dot(proj.astype(md), w_add_ref[...],
                         preferred_element_type=f32) + b_add_ref[...])  # (N, Q)
    # s = t @ q_vec done on the VPU (mult) + XLU (lane reduce) instead of a 1-lane MXU matmul
    s = jnp.sum(t * qv_ref[...], axis=-1, keepdims=True)               # (N, 1)

    smat = s + pool_bias_ref[...]                                      # (N, bt): 0 / -1e30 membership bias
    smat = smat - jnp.max(smat, axis=0, keepdims=True)
    e = jnp.exp(smat)
    a = e * pl.reciprocal(jnp.sum(e, axis=0, keepdims=True), approx=True)   # (N, bt)

    # pooled = a^T @ proj  (sequence reduction mapped to the MXU)
    pooled = jax.lax.dot_general(a.astype(md), proj.astype(md),
                                 (((0,), (0,)), ((), ())),
                                 preferred_element_type=f32)           # (bt, H)
    o_ref[...] = pooled.astype(o_ref.dtype)


def _device_kind():
    try:
        return jax.devices()[0].device_kind.lower().replace(" ", "")
    except Exception:
        return ""


def _num_parallel_tiles():
    """Number of batch tiles to split the grid into: one per TensorCore."""
    kind = _device_kind()
    if any(tag in kind for tag in ("tpu7", "v7", "v4", "v5p")):   # 2 TCs / megacore
        return 2
    return 1                                                       # v5e / v6e: single TC


def _default_matmul_dtype():
    """bf16 MXU operands on natively-bf16 v6e / v7x; f32 elsewhere (elementwise math is f32 always)."""
    kind = _device_kind()
    if any(tag in kind for tag in ("v6", "tpu7", "v7")):
        return jnp.bfloat16
    return jnp.float32


def _pick_block_batch(B, S, want_steps, max_rows=256):
    """Largest batch tile bt dividing B with bt*S <= max_rows.  Prefer tilings that leave
    >= want_steps grid steps (one per TensorCore); otherwise fall back to the largest tile.
    max_rows is NOT raised further: VMEM is nowhere near the limit and bigger tiles only
    inflate the masked (bt*S)^2 score matrices."""
    divisors = [bt for bt in range(1, B + 1) if B % bt == 0 and bt * S <= max_rows]
    if not divisors:
        return 1
    pref = [bt for bt in divisors if B // bt >= want_steps]
    return max(pref) if pref else max(divisors)


def encoder_forward(x_idx, params, num_heads, *, matmul_dtype=None, block_batch=None):
    f32 = jnp.float32
    # Embedding lookup (gather) is glue, done in plain JAX / XLA.
    emb = params["embedding"][x_idx]                  # (B, S, E)
    B, S, E = emb.shape
    H = params["w_proj"].shape[0]
    Q = params["w_add"].shape[0]
    assert E % num_heads == 0
    d = E // num_heads
    scale = 1.0 / float(np.sqrt(d))

    md = matmul_dtype if matmul_dtype is not None else _default_matmul_dtype()

    want_steps = _num_parallel_tiles()
    bt = block_batch if block_batch is not None else _pick_block_batch(B, S, want_steps)
    assert B % bt == 0
    N = bt * S
    G = B // bt

    # ---- trace-time weight prep (all free) ----
    w_in = params["in_proj_weight"]                   # (3E, E)
    b_in = params["in_proj_bias"]                     # (3E,)
    w_q = w_in[:E].T * scale                          # (E, E), 1/sqrt(d) folded
    w_k = w_in[E:2 * E].T                             # (E, E)
    w_v = w_in[2 * E:].T                              # (E, E)
    w_o = params["out_proj_weight"].T                 # (E, E)

    # fold out_proj into per-head V: W_v_eff[h] = W_v[:, h] @ W_out[h]  -> (E, E)
    wv_eff = [w_v[:, h * d:(h + 1) * d] @ w_o[h * d:(h + 1) * d, :] for h in range(num_heads)]
    w_fused = jnp.concatenate([w_q, w_k] + wv_eff, axis=1).astype(md)   # (E, 2E + heads*E)
    F_ = 2 * E + num_heads * E

    b_q = b_in[:E] * scale
    b_k = b_in[E:2 * E]
    b_v = b_in[2 * E:]
    b_fused = jnp.concatenate([b_q, b_k, jnp.zeros((num_heads * E,), f32)]
                              ).reshape(1, F_).astype(f32)              # (1, F)
    # V-path bias (times W_out) + out_proj bias, added once after the head sum
    # (exact because each softmax row sums to 1)
    bv_eff = sum(b_v[h * d:(h + 1) * d] @ w_o[h * d:(h + 1) * d, :] for h in range(num_heads))
    b_tail = (bv_eff + params["out_proj_bias"]).reshape(1, E).astype(f32)

    w_proj = params["w_proj"].T.astype(md)            # (E, H)
    b_proj = params["b_proj"].reshape(1, H).astype(f32)
    w_add = params["w_add"].T.astype(md)              # (H, Q)
    b_add = params["b_add"].reshape(1, Q).astype(f32)
    qv_row = params["q_vec"].reshape(1, Q).astype(f32)   # used on the VPU, stays f32

    # ---- constant additive masks (built host-side, no per-step iota/div work) ----
    seq_id = np.arange(N) // S
    attn_bias = jnp.asarray(
        np.where(seq_id[:, None] == seq_id[None, :], 0.0, -1e30).astype(np.float32))       # (N, N)
    pool_bias = jnp.asarray(
        np.where(seq_id[:, None] == np.arange(bt)[None, :], 0.0, -1e30).astype(np.float32))  # (N, bt)

    x2 = emb.reshape(B * S, E).astype(md)             # lane-dense (rows, E) activation slab

    kernel = functools.partial(encoder_kernel, num_heads=num_heads, head_dim=d,
                               matmul_dtype=md)
    # VMEM footprint per step is O(100 KB) — far under every generation's limit, so no
    # vmem_limit_bytes override is needed and there is no reason to grow tiles further.
    out = pl.pallas_call(
        kernel,
        out_shape=jax.ShapeDtypeStruct((B, H), jnp.float32),
        grid=(G,),
        in_specs=[
            pl.BlockSpec((N, E), lambda b: (b, 0)),        # activations for this batch tile
            pl.BlockSpec((E, F_), lambda b: (0, 0)),       # fused [Q|K|V_eff] weights
            pl.BlockSpec((1, F_), lambda b: (0, 0)),       # fused bias
            pl.BlockSpec((N, N), lambda b: (0, 0)),        # block-diagonal attention bias
            pl.BlockSpec((N, bt), lambda b: (0, 0)),       # pooling membership bias
            pl.BlockSpec((1, E), lambda b: (0, 0)),        # V-path + out_proj bias
            pl.BlockSpec((E, H), lambda b: (0, 0)),
            pl.BlockSpec((1, H), lambda b: (0, 0)),
            pl.BlockSpec((H, Q), lambda b: (0, 0)),
            pl.BlockSpec((1, Q), lambda b: (0, 0)),
            pl.BlockSpec((1, Q), lambda b: (0, 0)),
        ],
        out_specs=pl.BlockSpec((bt, H), lambda b: (b, 0)),
        compiler_params=pltpu.CompilerParams(dimension_semantics=("parallel",)),
    )(x2, w_fused, b_fused, attn_bias, pool_bias, b_tail,
      w_proj, b_proj, w_add, b_add, qv_row)
    return out                                        # (B, H)


def encoder_reference(x_idx, params, num_heads):
    """Plain-JAX replica of the PyTorch forward (eval mode) for verification."""
    emb = params["embedding"][x_idx]                  # (B, S, E)
    B, S, E = emb.shape
    d = E // num_heads
    scale = 1.0 / float(np.sqrt(d))

    qkv = emb @ params["in_proj_weight"].T + params["in_proj_bias"]          # (B, S, 3E)
    q, k, v = jnp.split(qkv, 3, axis=-1)

    def split_heads(t):                               # (B, S, E) -> (B, h, S, d)
        return t.reshape(B, S, num_heads, d).transpose(0, 2, 1, 3)

    qh, kh, vh = split_heads(q), split_heads(k), split_heads(v)
    scores = jnp.einsum("bhqd,bhkd->bhqk", qh, kh) * scale
    p = jax.nn.softmax(scores, axis=-1)
    attn = jnp.einsum("bhqk,bhkd->bhqd", p, vh).transpose(0, 2, 1, 3).reshape(B, S, E)
    attn = attn @ params["out_proj_weight"].T + params["out_proj_bias"]

    proj = attn @ params["w_proj"].T + params["b_proj"]                      # (B, S, H)
    t = jnp.tanh(proj @ params["w_add"].T + params["b_add"])                 # (B, S, Q)
    s = t @ params["q_vec"]                                                  # (B, S)
    a = jax.nn.softmax(s, axis=1)[..., None]                                 # (B, S, 1)
    return jnp.sum(a * proj, axis=1)                                         # (B, H)


def init_params(key, vocab, E, H, Q):
    ks = jax.random.split(key, 10)
    scale = 0.05
    return {
        "embedding": scale * jax.random.normal(ks[0], (vocab, E), jnp.float32),
        "in_proj_weight": scale * jax.random.normal(ks[1], (3 * E, E), jnp.float32),
        "in_proj_bias": scale * jax.random.normal(ks[2], (3 * E,), jnp.float32),
        "out_proj_weight": scale * jax.random.normal(ks[3], (E, E), jnp.float32),
        "out_proj_bias": scale * jax.random.normal(ks[4], (E,), jnp.float32),
        "w_proj": scale * jax.random.normal(ks[5], (H, E), jnp.float32),
        "b_proj": scale * jax.random.normal(ks[6], (H,), jnp.float32),
        "w_add": scale * jax.random.normal(ks[7], (Q, H), jnp.float32),
        "b_add": scale * jax.random.normal(ks[8], (Q,), jnp.float32),
        "q_vec": scale * jax.random.normal(ks[9], (Q,), jnp.float32),
    }


if __name__ == "__main__":
    # hyperParams: embedding_size=32, head_num=4, hidden_size=32, q_size=16
    B, S, E, H, Q, heads, vocab = 16, 8, 32, 32, 16, 4, 100

    key = jax.random.PRNGKey(0)
    k_idx, k_par = jax.random.split(key)
    params = init_params(k_par, vocab, E, H, Q)
    x_idx = jax.random.randint(k_idx, (B, S), 0, vocab, dtype=jnp.int32)

    ref = encoder_reference(x_idx, params, heads)

    # explicit f32 matmul-operand path: tight numerical check
    out_f32 = jax.block_until_ready(
        encoder_forward(x_idx, params, heads, matmul_dtype=jnp.float32))
    assert out_f32.shape == (B, H)
    np.testing.assert_allclose(np.asarray(out_f32), np.asarray(ref), atol=2e-3, rtol=2e-2)

    # default path: bf16 MXU operands on v6e / v7x, f32 elsewhere (elementwise math always f32)
    out = jax.block_until_ready(encoder_forward(x_idx, params, heads))
    assert out.shape == (B, H)
    np.testing.assert_allclose(np.asarray(out), np.asarray(ref), atol=5e-3, rtol=1e-1)

    print("KERNEL_OK")
</pallas_src>

<mosaic_0001>
module attributes {stable_mosaic.version = 11 : i64} {
  func.func @encoder_kernel(%arg0: i32, %arg1: memref<128x32xf32, #tpu.memory_space<vmem>>, %arg2: memref<32x192xf32, #tpu.memory_space<vmem>>, %arg3: memref<1x192xf32, #tpu.memory_space<vmem>>, %arg4: memref<128x128xf32, #tpu.memory_space<vmem>>, %arg5: memref<128x16xf32, #tpu.memory_space<vmem>>, %arg6: memref<1x32xf32, #tpu.memory_space<vmem>>, %arg7: memref<32x32xf32, #tpu.memory_space<vmem>>, %arg8: memref<1x32xf32, #tpu.memory_space<vmem>>, %arg9: memref<32x16xf32, #tpu.memory_space<vmem>>, %arg10: memref<1x16xf32, #tpu.memory_space<vmem>>, %arg11: memref<1x16xf32, #tpu.memory_space<vmem>>, %arg12: memref<16x32xf32, #tpu.memory_space<vmem>>) attributes {dimension_semantics = [#tpu.dimension_semantics<parallel>], iteration_bounds = array<i64: 1>, scalar_prefetch = 0 : i64, scratch_operands = 0 : i64, tpu.core_type = #tpu.core_type<tc>, window_params = [{transform_indices = @transform_0, window_bounds = array<i64: 128, 32>}, {pipeline_mode = #tpu.pipeline_mode<synchronous>, transform_indices = @transform_1, window_bounds = array<i64: 32, 192>}, {pipeline_mode = #tpu.pipeline_mode<synchronous>, transform_indices = @transform_2, window_bounds = array<i64: 1, 192>}, {pipeline_mode = #tpu.pipeline_mode<synchronous>, transform_indices = @transform_3, window_bounds = array<i64: 128, 128>}, {pipeline_mode = #tpu.pipeline_mode<synchronous>, transform_indices = @transform_4, window_bounds = array<i64: 128, 16>}, {pipeline_mode = #tpu.pipeline_mode<synchronous>, transform_indices = @transform_5, window_bounds = array<i64: 1, 32>}, {pipeline_mode = #tpu.pipeline_mode<synchronous>, transform_indices = @transform_6, window_bounds = array<i64: 32, 32>}, {pipeline_mode = #tpu.pipeline_mode<synchronous>, transform_indices = @transform_7, window_bounds = array<i64: 1, 32>}, {pipeline_mode = #tpu.pipeline_mode<synchronous>, transform_indices = @transform_8, window_bounds = array<i64: 32, 16>}, {pipeline_mode = #tpu.pipeline_mode<synchronous>, transform_indices = @transform_9, window_bounds = array<i64: 1, 16>}, {pipeline_mode = #tpu.pipeline_mode<synchronous>, transform_indices = @transform_10, window_bounds = array<i64: 1, 16>}, {transform_indices = @transform_11, window_bounds = array<i64: 16, 32>}]} {
    %c0 = arith.constant 0 : index
    %c0_0 = arith.constant 0 : index
    %0 = vector.load %arg1[%c0, %c0_0] : memref<128x32xf32, #tpu.memory_space<vmem>>, vector<128x32xf32>
    %c0_1 = arith.constant 0 : index
    %c0_2 = arith.constant 0 : index
    %1 = vector.load %arg2[%c0_1, %c0_2] : memref<32x192xf32, #tpu.memory_space<vmem>>, vector<32x192xf32>
    %cst = arith.constant dense<0.000000e+00> : vector<128x192xf32>
    %2 = tpu.matmul %0, %1, %cst {dimension_numbers = #tpu.dot_dimension_numbers<[1], [0], [0], [1], [0, 0, 1, 1], [], []>} : vector<128x32xf32>, vector<32x192xf32>, vector<128x192xf32> -> vector<128x192xf32>
    %c0_3 = arith.constant 0 : index
    %c0_4 = arith.constant 0 : index
    %3 = vector.load %arg3[%c0_3, %c0_4] : memref<1x192xf32, #tpu.memory_space<vmem>>, vector<1x192xf32>
    %4 = vector.broadcast %3 : vector<1x192xf32> to vector<128x192xf32>
    %5 = arith.addf %2, %4 : vector<128x192xf32>
    %cst_5 = arith.constant 0.000000e+00 : f32
    %6 = vector.broadcast %cst_5 : f32 to vector<128x32xf32>
    %7 = vector.extract_strided_slice %5 {offsets = [0, 0], sizes = [128, 8], strides = [1, 1]} : vector<128x192xf32> to vector<128x8xf32>
    %8 = vector.extract_strided_slice %5 {offsets = [0, 32], sizes = [128, 8], strides = [1, 1]} : vector<128x192xf32> to vector<128x8xf32>
    %9 = vector.extract_strided_slice %5 {offsets = [0, 64], sizes = [128, 32], strides = [1, 1]} : vector<128x192xf32> to vector<128x32xf32>
    %cst_6 = arith.constant dense<0.000000e+00> : vector<128x128xf32>
    %10 = tpu.matmul %7, %8, %cst_6 {dimension_numbers = #tpu.dot_dimension_numbers<[1], [1], [0], [0], [0, 0, 1, 0], [], []>} : vector<128x8xf32>, vector<128x8xf32>, vector<128x128xf32> -> vector<128x128xf32>
    %c0_7 = arith.constant 0 : index
    %c0_8 = arith.constant 0 : index
    %11 = vector.load %arg4[%c0_7, %c0_8] : memref<128x128xf32, #tpu.memory_space<vmem>>, vector<128x128xf32>
    %12 = arith.addf %10, %11 : vector<128x128xf32>
    %cst_9 = arith.constant dense<0xFF800000> : vector<128xf32>
    %13 = vector.multi_reduction <maximumf>, %12, %cst_9 [1] : vector<128x128xf32> to vector<128xf32>
    %14 = vector.shape_cast %13 : vector<128xf32> to vector<128x1xf32>
    %15 = vector.broadcast %14 : vector<128x1xf32> to vector<128x128xf32>
    %16 = arith.subf %12, %15 : vector<128x128xf32>
    %17 = math.exp %16 : vector<128x128xf32>
    %cst_10 = arith.constant dense<0.000000e+00> : vector<128xf32>
    %18 = vector.multi_reduction <add>, %17, %cst_10 [1] : vector<128x128xf32> to vector<128xf32>
    %19 = vector.shape_cast %18 : vector<128xf32> to vector<128x1xf32>
    %20 = tpu.reciprocal %19 {approx = true} : vector<128x1xf32> -> vector<128x1xf32>
    %21 = vector.broadcast %20 : vector<128x1xf32> to vector<128x128xf32>
    %22 = arith.mulf %17, %21 : vector<128x128xf32>
    %cst_11 = arith.constant dense<0.000000e+00> : vector<128x32xf32>
    %23 = tpu.matmul %22, %9, %cst_11 {dimension_numbers = #tpu.dot_dimension_numbers<[1], [0], [0], [1], [0, 0, 1, 1], [], []>} : vector<128x128xf32>, vector<128x32xf32>, vector<128x32xf32> -> vector<128x32xf32>
    %24 = arith.addf %6, %23 : vector<128x32xf32>
    %25 = vector.extract_strided_slice %5 {offsets = [0, 8], sizes = [128, 8], strides = [1, 1]} : vector<128x192xf32> to vector<128x8xf32>
    %26 = vector.extract_strided_slice %5 {offsets = [0, 40], sizes = [128, 8], strides = [1, 1]} : vector<128x192xf32> to vector<128x8xf32>
    %27 = vector.extract_strided_slice %5 {offsets = [0, 96], sizes = [128, 32], strides = [1, 1]} : vector<128x192xf32> to vector<128x32xf32>
    %cst_12 = arith.constant dense<0.000000e+00> : vector<128x128xf32>
    %28 = tpu.matmul %25, %26, %cst_12 {dimension_numbers = #tpu.dot_dimension_numbers<[1], [1], [0], [0], [0, 0, 1, 0], [], []>} : vector<128x8xf32>, vector<128x8xf32>, vector<128x128xf32> -> vector<128x128xf32>
    %c0_13 = arith.constant 0 : index
    %c0_14 = arith.constant 0 : index
    %29 = vector.load %arg4[%c0_13, %c0_14] : memref<128x128xf32, #tpu.memory_space<vmem>>, vector<128x128xf32>
    %30 = arith.addf %28, %29 : vector<128x128xf32>
    %cst_15 = arith.constant dense<0xFF800000> : vector<128xf32>
    %31 = vector.multi_reduction <maximumf>, %30, %cst_15 [1] : vector<128x128xf32> to vector<128xf32>
    %32 = vector.shape_cast %31 : vector<128xf32> to vector<128x1xf32>
    %33 = vector.broadcast %32 : vector<128x1xf32> to vector<128x128xf32>
    %34 = arith.subf %30, %33 : vector<128x128xf32>
    %35 = math.exp %34 : vector<128x128xf32>
    %cst_16 = arith.constant dense<0.000000e+00> : vector<128xf32>
    %36 = vector.multi_reduction <add>, %35, %cst_16 [1] : vector<128x128xf32> to vector<128xf32>
    %37 = vector.shape_cast %36 : vector<128xf32> to vector<128x1xf32>
    %38 = tpu.reciprocal %37 {approx = true} : vector<128x1xf32> -> vector<128x1xf32>
    %39 = vector.broadcast %38 : vector<128x1xf32> to vector<128x128xf32>
    %40 = arith.mulf %35, %39 : vector<128x128xf32>
    %cst_17 = arith.constant dense<0.000000e+00> : vector<128x32xf32>
    %41 = tpu.matmul %40, %27, %cst_17 {dimension_numbers = #tpu.dot_dimension_numbers<[1], [0], [0], [1], [0, 0, 1, 1], [], []>} : vector<128x128xf32>, vector<128x32xf32>, vector<128x32xf32> -> vector<128x32xf32>
    %42 = arith.addf %24, %41 : vector<128x32xf32>
    %43 = vector.extract_strided_slice %5 {offsets = [0, 16], sizes = [128, 8], strides = [1, 1]} : vector<128x192xf32> to vector<128x8xf32>
    %44 = vector.extract_strided_slice %5 {offsets = [0, 48], sizes = [128, 8], strides = [1, 1]} : vector<128x192xf32> to vector<128x8xf32>
    %45 = vector.extract_strided_slice %5 {offsets = [0, 128], sizes = [128, 32], strides = [1, 1]} : vector<128x192xf32> to vector<128x32xf32>
    %cst_18 = arith.constant dense<0.000000e+00> : vector<128x128xf32>
    %46 = tpu.matmul %43, %44, %cst_18 {dimension_numbers = #tpu.dot_dimension_numbers<[1], [1], [0], [0], [0, 0, 1, 0], [], []>} : vector<128x8xf32>, vector<128x8xf32>, vector<128x128xf32> -> vector<128x128xf32>
    %c0_19 = arith.constant 0 : index
    %c0_20 = arith.constant 0 : index
    %47 = vector.load %arg4[%c0_19, %c0_20] : memref<128x128xf32, #tpu.memory_space<vmem>>, vector<128x128xf32>
    %48 = arith.addf %46, %47 : vector<128x128xf32>
    %cst_21 = arith.constant dense<0xFF800000> : vector<128xf32>
    %49 = vector.multi_reduction <maximumf>, %48, %cst_21 [1] : vector<128x128xf32> to vector<128xf32>
    %50 = vector.shape_cast %49 : vector<128xf32> to vector<128x1xf32>
    %51 = vector.broadcast %50 : vector<128x1xf32> to vector<128x128xf32>
    %52 = arith.subf %48, %51 : vector<128x128xf32>
    %53 = math.exp %52 : vector<128x128xf32>
    %cst_22 = arith.constant dense<0.000000e+00> : vector<128xf32>
    %54 = vector.multi_reduction <add>, %53, %cst_22 [1] : vector<128x128xf32> to vector<128xf32>
    %55 = vector.shape_cast %54 : vector<128xf32> to vector<128x1xf32>
    %56 = tpu.reciprocal %55 {approx = true} : vector<128x1xf32> -> vector<128x1xf32>
    %57 = vector.broadcast %56 : vector<128x1xf32> to vector<128x128xf32>
    %58 = arith.mulf %53, %57 : vector<128x128xf32>
    %cst_23 = arith.constant dense<0.000000e+00> : vector<128x32xf32>
    %59 = tpu.matmul %58, %45, %cst_23 {dimension_numbers = #tpu.dot_dimension_numbers<[1], [0], [0], [1], [0, 0, 1, 1], [], []>} : vector<128x128xf32>, vector<128x32xf32>, vector<128x32xf32> -> vector<128x32xf32>
    %60 = arith.addf %42, %59 : vector<128x32xf32>
    %61 = vector.extract_strided_slice %5 {offsets = [0, 24], sizes = [128, 8], strides = [1, 1]} : vector<128x192xf32> to vector<128x8xf32>
    %62 = vector.extract_strided_slice %5 {offsets = [0, 56], sizes = [128, 8], strides = [1, 1]} : vector<128x192xf32> to vector<128x8xf32>
    %63 = vector.extract_strided_slice %5 {offsets = [0, 160], sizes = [128, 32], strides = [1, 1]} : vector<128x192xf32> to vector<128x32xf32>
    %cst_24 = arith.constant dense<0.000000e+00> : vector<128x128xf32>
    %64 = tpu.matmul %61, %62, %cst_24 {dimension_numbers = #tpu.dot_dimension_numbers<[1], [1], [0], [0], [0, 0, 1, 0], [], []>} : vector<128x8xf32>, vector<128x8xf32>, vector<128x128xf32> -> vector<128x128xf32>
    %c0_25 = arith.constant 0 : index
    %c0_26 = arith.constant 0 : index
    %65 = vector.load %arg4[%c0_25, %c0_26] : memref<128x128xf32, #tpu.memory_space<vmem>>, vector<128x128xf32>
    %66 = arith.addf %64, %65 : vector<128x128xf32>
    %cst_27 = arith.constant dense<0xFF800000> : vector<128xf32>
    %67 = vector.multi_reduction <maximumf>, %66, %cst_27 [1] : vector<128x128xf32> to vector<128xf32>
    %68 = vector.shape_cast %67 : vector<128xf32> to vector<128x1xf32>
    %69 = vector.broadcast %68 : vector<128x1xf32> to vector<128x128xf32>
    %70 = arith.subf %66, %69 : vector<128x128xf32>
    %71 = math.exp %70 : vector<128x128xf32>
    %cst_28 = arith.constant dense<0.000000e+00> : vector<128xf32>
    %72 = vector.multi_reduction <add>, %71, %cst_28 [1] : vector<128x128xf32> to vector<128xf32>
    %73 = vector.shape_cast %72 : vector<128xf32> to vector<128x1xf32>
    %74 = tpu.reciprocal %73 {approx = true} : vector<128x1xf32> -> vector<128x1xf32>
    %75 = vector.broadcast %74 : vector<128x1xf32> to vector<128x128xf32>
    %76 = arith.mulf %71, %75 : vector<128x128xf32>
    %cst_29 = arith.constant dense<0.000000e+00> : vector<128x32xf32>
    %77 = tpu.matmul %76, %63, %cst_29 {dimension_numbers = #tpu.dot_dimension_numbers<[1], [0], [0], [1], [0, 0, 1, 1], [], []>} : vector<128x128xf32>, vector<128x32xf32>, vector<128x32xf32> -> vector<128x32xf32>
    %78 = arith.addf %60, %77 : vector<128x32xf32>
    %c0_30 = arith.constant 0 : index
    %c0_31 = arith.constant 0 : index
    %79 = vector.load %arg6[%c0_30, %c0_31] : memref<1x32xf32, #tpu.memory_space<vmem>>, vector<1x32xf32>
    %80 = vector.broadcast %79 : vector<1x32xf32> to vector<128x32xf32>
    %81 = arith.addf %78, %80 : vector<128x32xf32>
    %c0_32 = arith.constant 0 : index
    %c0_33 = arith.constant 0 : index
    %82 = vector.load %arg7[%c0_32, %c0_33] : memref<32x32xf32, #tpu.memory_space<vmem>>, vector<32x32xf32>
    %cst_34 = arith.constant dense<0.000000e+00> : vector<128x32xf32>
    %83 = tpu.matmul %81, %82, %cst_34 {dimension_numbers = #tpu.dot_dimension_numbers<[1], [0], [0], [1], [0, 0, 1, 1], [], []>} : vector<128x32xf32>, vector<32x32xf32>, vector<128x32xf32> -> vector<128x32xf32>
    %c0_35 = arith.constant 0 : index
    %c0_36 = arith.constant 0 : index
    %84 = vector.load %arg8[%c0_35, %c0_36] : memref<1x32xf32, #tpu.memory_space<vmem>>, vector<1x32xf32>
    %85 = vector.broadcast %84 : vector<1x32xf32> to vector<128x32xf32>
    %86 = arith.addf %83, %85 : vector<128x32xf32>
    %c0_37 = arith.constant 0 : index
    %c0_38 = arith.constant 0 : index
    %87 = vector.load %arg9[%c0_37, %c0_38] : memref<32x16xf32, #tpu.memory_space<vmem>>, vector<32x16xf32>
    %cst_39 = arith.constant dense<0.000000e+00> : vector<128x16xf32>
    %88 = tpu.matmul %86, %87, %cst_39 {dimension_numbers = #tpu.dot_dimension_numbers<[1], [0], [0], [1], [0, 0, 1, 1], [], []>} : vector<128x32xf32>, vector<32x16xf32>, vector<128x16xf32> -> vector<128x16xf32>
    %c0_40 = arith.constant 0 : index
    %c0_41 = arith.constant 0 : index
    %89 = vector.load %arg10[%c0_40, %c0_41] : memref<1x16xf32, #tpu.memory_space<vmem>>, vector<1x16xf32>
    %90 = vector.broadcast %89 : vector<1x16xf32> to vector<128x16xf32>
    %91 = arith.addf %88, %90 : vector<128x16xf32>
    %92 = math.tanh %91 : vector<128x16xf32>
    %c0_42 = arith.constant 0 : index
    %c0_43 = arith.constant 0 : index
    %93 = vector.load %arg11[%c0_42, %c0_43] : memref<1x16xf32, #tpu.memory_space<vmem>>, vector<1x16xf32>
    %94 = vector.broadcast %93 : vector<1x16xf32> to vector<128x16xf32>
    %95 = arith.mulf %92, %94 : vector<128x16xf32>
    %cst_44 = arith.constant dense<0.000000e+00> : vector<128xf32>
    %96 = vector.multi_reduction <add>, %95, %cst_44 [1] : vector<128x16xf32> to vector<128xf32>
    %97 = vector.shape_cast %96 : vector<128xf32> to vector<128x1xf32>
    %c0_45 = arith.constant 0 : index
    %c0_46 = arith.constant 0 : index
    %98 = vector.load %arg5[%c0_45, %c0_46] : memref<128x16xf32, #tpu.memory_space<vmem>>, vector<128x16xf32>
    %99 = vector.broadcast %97 : vector<128x1xf32> to vector<128x16xf32>
    %100 = arith.addf %99, %98 : vector<128x16xf32>
    %cst_47 = arith.constant dense<0xFF800000> : vector<16xf32>
    %101 = vector.multi_reduction <maximumf>, %100, %cst_47 [0] : vector<128x16xf32> to vector<16xf32>
    %102 = vector.shape_cast %101 : vector<16xf32> to vector<1x16xf32>
    %103 = vector.broadcast %102 : vector<1x16xf32> to vector<128x16xf32>
    %104 = arith.subf %100, %103 : vector<128x16xf32>
    %105 = math.exp %104 : vector<128x16xf32>
    %cst_48 = arith.constant dense<0.000000e+00> : vector<16xf32>
    %106 = vector.multi_reduction <add>, %105, %cst_48 [0] : vector<128x16xf32> to vector<16xf32>
    %107 = vector.shape_cast %106 : vector<16xf32> to vector<1x16xf32>
    %108 = tpu.reciprocal %107 {approx = true} : vector<1x16xf32> -> vector<1x16xf32>
    %109 = vector.broadcast %108 : vector<1x16xf32> to vector<128x16xf32>
    %110 = arith.mulf %105, %109 : vector<128x16xf32>
    %cst_49 = arith.constant dense<0.000000e+00> : vector<16x32xf32>
    %111 = tpu.matmul %110, %86, %cst_49 {dimension_numbers = #tpu.dot_dimension_numbers<[0], [0], [1], [1], [0, 1, 1, 1], [], []>} : vector<128x16xf32>, vector<128x32xf32>, vector<16x32xf32> -> vector<16x32xf32>
    %c0_50 = arith.constant 0 : index
    %c0_51 = arith.constant 0 : index
    %112 = vector.load %arg12[%c0_50, %c0_51] : memref<16x32xf32, #tpu.memory_space<vmem>>, vector<16x32xf32>
    tpu.vector_store %arg12[%c0_50, %c0_51], %111 {strides = array<i32>} : memref<16x32xf32, #tpu.memory_space<vmem>>, vector<16x32xf32>,
    return
  }
  func.func @transform_0(%arg0: i32) -> (i32, i32) {
    %c0_i32 = arith.constant 0 : i32
    %c0_i32_0 = arith.constant 0 : i32
    return %arg0, %c0_i32 : i32, i32
  }
  func.func @transform_1(%arg0: i32) -> (i32, i32) {
    %c0_i32 = arith.constant 0 : i32
    %c0_i32_0 = arith.constant 0 : i32
    %c0_i32_1 = arith.constant 0 : i32
    return %c0_i32, %c0_i32_0 : i32, i32
  }
  func.func @transform_2(%arg0: i32) -> (i32, i32) {
    %c0_i32 = arith.constant 0 : i32
    %c0_i32_0 = arith.constant 0 : i32
    %c0_i32_1 = arith.constant 0 : i32
    return %c0_i32, %c0_i32_0 : i32, i32
  }
  func.func @transform_3(%arg0: i32) -> (i32, i32) {
    %c0_i32 = arith.constant 0 : i32
    %c0_i32_0 = arith.constant 0 : i32
    %c0_i32_1 = arith.constant 0 : i32
    return %c0_i32, %c0_i32_0 : i32, i32
  }
  func.func @transform_4(%arg0: i32) -> (i32, i32) {
    %c0_i32 = arith.constant 0 : i32
    %c0_i32_0 = arith.constant 0 : i32
    %c0_i32_1 = arith.constant 0 : i32
    return %c0_i32, %c0_i32_0 : i32, i32
  }
  func.func @transform_5(%arg0: i32) -> (i32, i32) {
    %c0_i32 = arith.constant 0 : i32
    %c0_i32_0 = arith.constant 0 : i32
    %c0_i32_1 = arith.constant 0 : i32
    return %c0_i32, %c0_i32_0 : i32, i32
  }
  func.func @transform_6(%arg0: i32) -> (i32, i32) {
    %c0_i32 = arith.constant 0 : i32
    %c0_i32_0 = arith.constant 0 : i32
    %c0_i32_1 = arith.constant 0 : i32
    return %c0_i32, %c0_i32_0 : i32, i32
  }
  func.func @transform_7(%arg0: i32) -> (i32, i32) {
    %c0_i32 = arith.constant 0 : i32
    %c0_i32_0 = arith.constant 0 : i32
    %c0_i32_1 = arith.constant 0 : i32
    return %c0_i32, %c0_i32_0 : i32, i32
  }
  func.func @transform_8(%arg0: i32) -> (i32, i32) {
    %c0_i32 = arith.constant 0 : i32
    %c0_i32_0 = arith.constant 0 : i32
    %c0_i32_1 = arith.constant 0 : i32
    return %c0_i32, %c0_i32_0 : i32, i32
  }
  func.func @transform_9(%arg0: i32) -> (i32, i32) {
    %c0_i32 = arith.constant 0 : i32
    %c0_i32_0 = arith.constant 0 : i32
    %c0_i32_1 = arith.constant 0 : i32
    return %c0_i32, %c0_i32_0 : i32, i32
  }
  func.func @transform_10(%arg0: i32) -> (i32, i32) {
    %c0_i32 = arith.constant 0 : i32
    %c0_i32_0 = arith.constant 0 : i32
    %c0_i32_1 = arith.constant 0 : i32
    return %c0_i32, %c0_i32_0 : i32, i32
  }
  func.func @transform_11(%arg0: i32) -> (i32, i32) {
    %c0_i32 = arith.constant 0 : i32
    %c0_i32_0 = arith.constant 0 : i32
    return %arg0, %c0_i32 : i32, i32
  }
}

</mosaic_0001>

<llo_original>
// kernel: tpu_custom_call.1
$region0: #{tpu_custom_call.1}
  #allocation0 [shape = 'u32[]', space=smem, size = 0x4, offset = 0x4, fixed_abs, tag = 'smem constant byte address 0x4 - core index']
  #allocation1 [shape = 'u32[144,128]{1,0:T(1,128)}', space=vmem, size = 0x12000, scoped, tag = 'internal scratch']
  %s0 = inlined_call_operand.vmem [shape: f32[128,32], index: 0, kind: input, shape index: {}]
  %s1 = inlined_call_operand.vmem [shape: f32[32,192], index: 1, kind: input, shape index: {}]
  %s2 = inlined_call_operand.vmem [shape: f32[1,192], index: 2, kind: input, shape index: {}]
  %s3 = inlined_call_operand.vmem [shape: f32[128,128], index: 3, kind: input, shape index: {}]
  %s4 = inlined_call_operand.vmem [shape: f32[128,16], index: 4, kind: input, shape index: {}]
  %s5 = inlined_call_operand.vmem [shape: f32[1,32], index: 5, kind: input, shape index: {}]
  %s6 = inlined_call_operand.vmem [shape: f32[32,32], index: 6, kind: input, shape index: {}]
  %s7 = inlined_call_operand.vmem [shape: f32[1,32], index: 7, kind: input, shape index: {}]
  %s8 = inlined_call_operand.vmem [shape: f32[32,16], index: 8, kind: input, shape index: {}]
  %s9 = inlined_call_operand.vmem [shape: f32[1,16], index: 9, kind: input, shape index: {}]
  %s10 = inlined_call_operand.vmem [shape: f32[1,16], index: 10, kind: input, shape index: {}]
  %s11 = inlined_call_operand.hbm [shape: f32[16,32], index: 11, kind: output, shape index: {}]
  %s12 = sld [smem:[#allocation0]]
  $region54: #{tpu_custom_call.1} parent=0
    _
  %s14 = ssub.s32 1, %s12
  %s15 = scalar_select 0, %s14, %s12
  $region1: #{tpu_custom_call.1} parent=0
    #allocation2 [shape = 'u8[8192]{0}', space=vmem, size = 0x2000, scoped, tag = 'output window, operand 0, single buffered']
    #allocation3 [shape = 's32[1]{0}', space=sflag, size = 0x4, scoped, tag = 'scoped memory for tpu_custom_call.1']
    %16 = vsyncpa [#allocation3], 0
    // Predicated region
    $region2: #{tpu_custom_call.1} parent=1 // pred_check
      _
    $region3: #{tpu_custom_call.1} parent=1 // pred_check_branch
      %18 = sbr.rel (0) target = $region5
    $region4: #{tpu_custom_call.1} parent=1 // pred_region
      _
    $region5: #{tpu_custom_call.1} parent=1 // pred_fallthru
      _
    // Predicated region
    $region6: #{tpu_custom_call.1} parent=1 // pred_check
      _
    $region7: #{tpu_custom_call.1} parent=1 // pred_check_branch
      %20 = sbr.rel (0) target = $region9
    $region8: #{tpu_custom_call.1} parent=1 // pred_region
      _
    $region9: #{tpu_custom_call.1} parent=1 // pred_fallthru
      _
    // Predicated region
    $region10: #{tpu_custom_call.1} parent=1 // pred_check
      _
    $region11: #{tpu_custom_call.1} parent=1 // pred_check_branch
      %22 = sbr.rel (0) target = $region13
    $region12: #{tpu_custom_call.1} parent=1 // pred_region
      _
    $region13: #{tpu_custom_call.1} parent=1 // pred_fallthru
      _
    // Predicated region
    $region14: #{tpu_custom_call.1} parent=1 // pred_check
      _
    $region15: #{tpu_custom_call.1} parent=1 // pred_check_branch
      %24 = sbr.rel (0) target = $region17
    $region16: #{tpu_custom_call.1} parent=1 // pred_region
      _
    $region17: #{tpu_custom_call.1} parent=1 // pred_fallthru
      _
    // Predicated region
    $region18: #{tpu_custom_call.1} parent=1 // pred_check
      _
    $region19: #{tpu_custom_call.1} parent=1 // pred_check_branch
      %26 = sbr.rel (0) target = $region21
    $region20: #{tpu_custom_call.1} parent=1 // pred_region
      _
    $region21: #{tpu_custom_call.1} parent=1 // pred_fallthru
      _
    // Predicated region
    $region22: #{tpu_custom_call.1} parent=1 // pred_check
      _
    $region23: #{tpu_custom_call.1} parent=1 // pred_check_branch
      %28 = sbr.rel (0) target = $region25
    $region24: #{tpu_custom_call.1} parent=1 // pred_region
      _
    $region25: #{tpu_custom_call.1} parent=1 // pred_fallthru
      _
    // Predicated region
    $region26: #{tpu_custom_call.1} parent=1 // pred_check
      _
    $region27: #{tpu_custom_call.1} parent=1 // pred_check_branch
      %30 = sbr.rel (0) target = $region29
    $region28: #{tpu_custom_call.1} parent=1 // pred_region
      _
    $region29: #{tpu_custom_call.1} parent=1 // pred_fallthru
      _
    // Predicated region
    $region30: #{tpu_custom_call.1} parent=1 // pred_check
      _
    $region31: #{tpu_custom_call.1} parent=1 // pred_check_branch
      %32 = sbr.rel (0) target = $region33
    $region32: #{tpu_custom_call.1} parent=1 // pred_region
      _
    $region33: #{tpu_custom_call.1} parent=1 // pred_fallthru
      _
    // Predicated region
    $region34: #{tpu_custom_call.1} parent=1 // pred_check
      _
    $region35: #{tpu_custom_call.1} parent=1 // pred_check_branch
      %34 = sbr.rel (0) target = $region37
    $region36: #{tpu_custom_call.1} parent=1 // pred_region
      _
    $region37: #{tpu_custom_call.1} parent=1 // pred_fallthru
      _
    // Predicated region
    $region38: #{tpu_custom_call.1} parent=1 // pred_check
      _
    $region39: #{tpu_custom_call.1} parent=1 // pred_check_branch
      %36 = sbr.rel (0) target = $region41
    $region40: #{tpu_custom_call.1} parent=1 // pred_region
      _
    $region41: #{tpu_custom_call.1} parent=1 // pred_fallthru
      _
    // Predicated region
    $region42: #{tpu_custom_call.1} parent=1 // pred_check
      _
    $region43: #{tpu_custom_call.1} parent=1 // pred_check_branch
      %38 = sbr.rel (0) target = $region45
    $region44: #{tpu_custom_call.1} parent=1 // pred_region
      _
    $region45: #{tpu_custom_call.1} parent=1 // pred_fallthru
      _
    %v39 = vld [vmem:[%s0] sm:$0xff]
    %v40 = vld [vmem:[%s0 + $0x8] sm:$0xff]
    %v41 = vld [vmem:[%s0 + $0x10] sm:$0xff]
    %v42 = vld [vmem:[%s0 + $0x18] sm:$0xff]
    %v43 = vld [vmem:[%s0 + $0x20] sm:$0xff]
    %v44 = vld [vmem:[%s0 + $0x28] sm:$0xff]
    %v45 = vld [vmem:[%s0 + $0x30] sm:$0xff]
    %v46 = vld [vmem:[%s0 + $0x38] sm:$0xff]
    %v47 = vld [vmem:[%s0 + $0x40] sm:$0xff]
    %v48 = vld [vmem:[%s0 + $0x48] sm:$0xff]
    %v49 = vld [vmem:[%s0 + $0x50] sm:$0xff]
    %v50 = vld [vmem:[%s0 + $0x58] sm:$0xff]
    %v51 = vld [vmem:[%s0 + $0x60] sm:$0xff]
    %v52 = vld [vmem:[%s0 + $0x68] sm:$0xff]
    %v53 = vld [vmem:[%s0 + $0x70] sm:$0xff]
    %v54 = vld [vmem:[%s0 + $0x78] sm:$0xff]
    %v55 = vld [vmem:[%s1] sm:$0xff]
    %v56 = vld [vmem:[%s1 + $0x8] sm:$0xff]
    %v57 = vld [vmem:[%s1 + $0x10] sm:$0xff]
    %v58 = vld [vmem:[%s1 + $0x18] sm:$0xff]
    %v59 = vld [vmem:[%s1 + $0x20] sm:$0xff]
    %v60 = vld [vmem:[%s1 + $0x28] sm:$0xff]
    %v61 = vld [vmem:[%s1 + $0x30] sm:$0xff]
    %v62 = vld [vmem:[%s1 + $0x38] sm:$0xff]
    %v63 = vld [vmem:[%s2] sm:$0x3]
    %v65 = vlaneseq
    %v66 = vshrl.u32 %v65, 7
    %v67 = vsub.s32 0, %v66
    %v68 = vrot.slane %v63, %v67
    %v69 = vlaneseq
    %v70 = vshrl.u32 %v69, 7
    %v71 = vsub.s32 1, %v70
    %v72 = vrot.slane %v63, %v71
    %vm75 = vcmask 261120
    %v77 = vsel %vm75, %v39, 0
    %v80 = vsel %vm75, %v40, 0
    %v83 = vsel %vm75, %v41, 0
    %v86 = vsel %vm75, %v42, 0
    %v89 = vsel %vm75, %v43, 0
    %v92 = vsel %vm75, %v44, 0
    %v95 = vsel %vm75, %v45, 0
    %v98 = vsel %vm75, %v46, 0
    %v101 = vsel %vm75, %v47, 0
    %v104 = vsel %vm75, %v48, 0
    %v107 = vsel %vm75, %v49, 0
    %v110 = vsel %vm75, %v50, 0
    %v113 = vsel %vm75, %v51, 0
    %v116 = vsel %vm75, %v52, 0
    %v119 = vsel %vm75, %v53, 0
    %v122 = vsel %vm75, %v54, 0
    %124 = vmatprep.subr.mxu0 %v56
    %125 = vmatpush1.msra.mxu0 %v55
    %126 = vmatprep.subr.mxu0 %v58
    %127 = vmatpush1.msra.mxu0 %v57
    %128 = vmatprep.subr.mxu0 %v60
    %129 = vmatpush1.msra.mxu0 %v59
    %130 = vmatprep.subr.mxu0 %v62
    %131 = vmatpush1.msra.mxu0 %v61
    %132 = vmatprep.subr.mxu0 0.0
    %133 = vmatpush1.msra.mxu0 0.0
    %134 = vmatprep.subr.mxu0 0.0
    %135 = vmatpush1.msra.mxu0 0.0
    %136 = vmatprep.subr.mxu0 0.0
    %137 = vmatpush1.msra.mxu0 0.0
    %138 = vmatprep.subr.mxu0 0.0
    %139 = vmatpush1.msra.mxu0 0.0
    %140 = vmatprep.subr.mxu0 0.0
    %141 = vmatpush1.msra.mxu0 0.0
    %142 = vmatprep.subr.mxu0 0.0
    %143 = vmatpush1.msra.mxu0 0.0
    %144 = vmatprep.subr.mxu0 0.0
    %145 = vmatpush1.msra.mxu0 0.0
    %146 = vmatprep.subr.mxu0 0.0
    %147 = vmatpush1.msra.mxu0 0.0
    %148 = vmatprep.subr.mxu0 0.0
    %149 = vmatpush1.msra.mxu0 0.0
    %150 = vmatprep.subr.mxu0 0.0
    %151 = vmatpush1.msra.mxu0 0.0
    %152 = vmatprep.subr.mxu0 0.0
    %153 = vmatpush1.msra.mxu0 0.0
    %154 = vmatprep.subr.mxu0 0.0
    %155 = vmatpush1.msra.mxu0 0.0
    %156 = vmatprep.subr.mxu0 0.0
    %157 = vmatpush1.msra.mxu0 0.0
    %158 = vmatprep.subr.mxu0 0.0
    %159 = vmatpush1.msra.mxu0 0.0
    %160 = vmatprep.subr.mxu0 0.0
    %161 = vmatpush1.msra.mxu0 0.0
    %162 = vmatprep.subr.mxu0 0.0
    %163 = vmatpush1.msra.mxu0 0.0
    %164 = vmatprep.subr.mxu0 0.0
    %165 = vmatpush1.msra.mxu0 0.0
    %166 = vmatprep.subr.mxu0 0.0
    %167 = vmatpush1.msra.mxu0 0.0
    %168 = vmatprep.subr.mxu0 0.0
    %169 = vmatpush1.msra.mxu0 0.0
    %170 = vmatprep.subr.mxu0 0.0
    %171 = vmatpush1.msra.mxu0 0.0
    %172 = vmatprep.subr.mxu0 0.0
    %173 = vmatpush1.msra.mxu0 0.0
    %174 = vmatprep.subr.mxu0 0.0
    %175 = vmatpush1.msra.mxu0 0.0
    %176 = vmatprep.subr.mxu0 0.0
    %177 = vmatpush1.msra.mxu0 0.0
    %178 = vmatprep.subr.mxu0 0.0
    %179 = vmatpush1.msra.mxu0 0.0
    %180 = vmatprep.subr.mxu0 0.0
    %181 = vmatpush1.msra.mxu0 0.0
    %182 = vmatprep.subr.mxu0 0.0
    %183 = vmatpush1.msra.mxu0 0.0
    %184 = vmatprep.subr.mxu0 0.0
    %185 = vmatpush1.msra.mxu0 0.0
    %186 = vmatprep.subr.mxu0 0.0
    %187 = vmatpush1.msra.mxu0 0.0
    %188 = vmatprep.mubr.f32.mxu0 0.0
    %189 = vmatmul.mubr.f32.gmra.mrb[0].mxu0 %v77
    %v190 = vpop.f32.mrb[0].mxu0
    %v191 = vadd.f32 %v68, %v190
    %v192 = vpop.f32.mrb[0].mxu0
    %v193 = vadd.f32 %v72, %v192
    %194 = vmatprep.mubr.f32.mxu0 0.0
    %195 = vmatmul.mubr.f32.gmra.mrb[0].mxu0 %v80
    %v196 = vpop.f32.mrb[0].mxu0
    %v197 = vadd.f32 %v68, %v196
    %v198 = vpop.f32.mrb[0].mxu0
    %v199 = vadd.f32 %v72, %v198
    %200 = vmatprep.mubr.f32.mxu0 0.0
    %201 = vmatmul.mubr.f32.gmra.mrb[0].mxu0 %v83
    %v202 = vpop.f32.mrb[0].mxu0
    %v203 = vadd.f32 %v68, %v202
    %v204 = vpop.f32.mrb[0].mxu0
    %v205 = vadd.f32 %v72, %v204
    %206 = vmatprep.mubr.f32.mxu0 0.0
    %207 = vmatmul.mubr.f32.gmra.mrb[0].mxu0 %v86
    %v208 = vpop.f32.mrb[0].mxu0
    %v209 = vadd.f32 %v68, %v208
    %v210 = vpop.f32.mrb[0].mxu0
    %v211 = vadd.f32 %v72, %v210
    %212 = vmatprep.mubr.f32.mxu0 0.0
    %213 = vmatmul.mubr.f32.gmra.mrb[0].mxu0 %v89
    %v214 = vpop.f32.mrb[0].mxu0
    %v215 = vadd.f32 %v68, %v214
    %v216 = vpop.f32.mrb[0].mxu0
    %v217 = vadd.f32 %v72, %v216
    %218 = vmatprep.mubr.f32.mxu0 0.0
    %219 = vmatmul.mubr.f32.gmra.mrb[0].mxu0 %v92
    %v220 = vpop.f32.mrb[0].mxu0
    %v221 = vadd.f32 %v68, %v220
    %v222 = vpop.f32.mrb[0].mxu0
    %v223 = vadd.f32 %v72, %v222
    %224 = vmatprep.mubr.f32.mxu0 0.0
    %225 = vmatmul.mubr.f32.gmra.mrb[0].mxu0 %v95
    %v226 = vpop.f32.mrb[0].mxu0
    %v227 = vadd.f32 %v68, %v226
    %v228 = vpop.f32.mrb[0].mxu0
    %v229 = vadd.f32 %v72, %v228
    %230 = vmatprep.mubr.f32.mxu0 0.0
    %231 = vmatmul.mubr.f32.gmra.mrb[0].mxu0 %v98
    %v232 = vpop.f32.mrb[0].mxu0
    %v233 = vadd.f32 %v68, %v232
    %v234 = vpop.f32.mrb[0].mxu0
    %v235 = vadd.f32 %v72, %v234
    %236 = vmatprep.mubr.f32.mxu0 0.0
    %237 = vmatmul.mubr.f32.gmra.mrb[0].mxu0 %v101
    %v238 = vpop.f32.mrb[0].mxu0
    %v239 = vadd.f32 %v68, %v238
    %v240 = vpop.f32.mrb[0].mxu0
    %v241 = vadd.f32 %v72, %v240
    %242 = vmatprep.mubr.f32.mxu0 0.0
    %243 = vmatmul.mubr.f32.gmra.mrb[0].mxu0 %v104
    %v244 = vpop.f32.mrb[0].mxu0
    %v245 = vadd.f32 %v68, %v244
    %v246 = vpop.f32.mrb[0].mxu0
    %v247 = vadd.f32 %v72, %v246
    %248 = vmatprep.mubr.f32.mxu0 0.0
    %249 = vmatmul.mubr.f32.gmra.mrb[0].mxu0 %v107
    %v250 = vpop.f32.mrb[0].mxu0
    %v251 = vadd.f32 %v68, %v250
    %v252 = vpop.f32.mrb[0].mxu0
    %v253 = vadd.f32 %v72, %v252
    %254 = vmatprep.mubr.f32.mxu0 0.0
    %255 = vmatmul.mubr.f32.gmra.mrb[0].mxu0 %v110
    %v256 = vpop.f32.mrb[0].mxu0
    %v257 = vadd.f32 %v68, %v256
    %v258 = vpop.f32.mrb[0].mxu0
    %v259 = vadd.f32 %v72, %v258
    %260 = vmatprep.mubr.f32.mxu0 0.0
    %261 = vmatmul.mubr.f32.gmra.mrb[0].mxu0 %v113
    %v262 = vpop.f32.mrb[0].mxu0
    %v263 = vadd.f32 %v68, %v262
    %v264 = vpop.f32.mrb[0].mxu0
    %v265 = vadd.f32 %v72, %v264
    %266 = vmatprep.mubr.f32.mxu0 0.0
    %267 = vmatmul.mubr.f32.gmra.mrb[0].mxu0 %v116
    %v268 = vpop.f32.mrb[0].mxu0
    %v269 = vadd.f32 %v68, %v268
    %v270 = vpop.f32.mrb[0].mxu0
    %v271 = vadd.f32 %v72, %v270
    %272 = vmatprep.mubr.f32.mxu0 0.0
    %273 = vmatmul.mubr.f32.gmra.mrb[0].mxu0 %v119
    %v274 = vpop.f32.mrb[0].mxu0
    %v275 = vadd.f32 %v68, %v274
    %v276 = vpop.f32.mrb[0].mxu0
    %v277 = vadd.f32 %v72, %v276
    %278 = vmatprep.mubr.f32.mxu0 0.0
    %279 = vmatmul.mubr.f32.gmra.mrb[0].mxu0 %v122
    %v280 = vpop.f32.mrb[0].mxu0
    %v281 = vadd.f32 %v68, %v280
    %v282 = vpop.f32.mrb[0].mxu0
    %v283 = vadd.f32 %v72, %v282
    %284 = vdwg.mxu0
    %v285 = vld [vmem:[%s3] sm:$0xff]
    %v286 = vld [vmem:[%s3 + $0x8] sm:$0xff]
    %v287 = vld [vmem:[%s3 + $0x10] sm:$0xff]
    %v288 = vld [vmem:[%s3 + $0x18] sm:$0xff]
    %v289 = vld [vmem:[%s3 + $0x20] sm:$0xff]
    %v290 = vld [vmem:[%s3 + $0x28] sm:$0xff]
    %v291 = vld [vmem:[%s3 + $0x30] sm:$0xff]
    %v292 = vld [vmem:[%s3 + $0x38] sm:$0xff]
    %v293 = vld [vmem:[%s3 + $0x40] sm:$0xff]
    %v294 = vld [vmem:[%s3 + $0x48] sm:$0xff]
    %v295 = vld [vmem:[%s3 + $0x50] sm:$0xff]
    %v296 = vld [vmem:[%s3 + $0x58] sm:$0xff]
    %v297 = vld [vmem:[%s3 + $0x60] sm:$0xff]
    %v298 = vld [vmem:[%s3 + $0x68] sm:$0xff]
    %v299 = vld [vmem:[%s3 + $0x70] sm:$0xff]
    %v300 = vld [vmem:[%s3 + $0x78] sm:$0xff]
    %317 = vrot.lane.b32.xlu0 %v191, 96
    %v318 = vpop.permute.xlu0 %317
    %319 = vrot.lane.b32.xlu0 %v197, 96
    %v320 = vpop.permute.xlu0 %319
    %321 = vrot.lane.b32.xlu0 %v203, 96
    %v322 = vpop.permute.xlu0 %321
    %323 = vrot.lane.b32.xlu0 %v209, 96
    %v324 = vpop.permute.xlu0 %323
    %325 = vrot.lane.b32.xlu0 %v215, 96
    %v326 = vpop.permute.xlu0 %325
    %327 = vrot.lane.b32.xlu0 %v221, 96
    %v328 = vpop.permute.xlu0 %327
    %329 = vrot.lane.b32.xlu0 %v227, 96
    %v330 = vpop.permute.xlu0 %329
    %331 = vrot.lane.b32.xlu0 %v233, 96
    %v332 = vpop.permute.xlu0 %331
    %333 = vrot.lane.b32.xlu0 %v239, 96
    %v334 = vpop.permute.xlu0 %333
    %335 = vrot.lane.b32.xlu0 %v245, 96
    %v336 = vpop.permute.xlu0 %335
    %337 = vrot.lane.b32.xlu0 %v251, 96
    %v338 = vpop.permute.xlu0 %337
    %339 = vrot.lane.b32.xlu0 %v257, 96
    %v340 = vpop.permute.xlu0 %339
    %341 = vrot.lane.b32.xlu0 %v263, 96
    %v342 = vpop.permute.xlu0 %341
    %343 = vrot.lane.b32.xlu0 %v269, 96
    %v344 = vpop.permute.xlu0 %343
    %345 = vrot.lane.b32.xlu0 %v275, 96
    %v346 = vpop.permute.xlu0 %345
    %347 = vrot.lane.b32.xlu0 %v281, 96
    %v348 = vpop.permute.xlu0 %347
    %vm349 = vcmask 64512
    %v350 = vsel %vm349, %v191, 0
    %v352 = vsel %vm349, %v197, 0
    %v354 = vsel %vm349, %v203, 0
    %v356 = vsel %vm349, %v209, 0
    %v358 = vsel %vm349, %v215, 0
    %v360 = vsel %vm349, %v221, 0
    %v362 = vsel %vm349, %v227, 0
    %v364 = vsel %vm349, %v233, 0
    %v366 = vsel %vm349, %v239, 0
    %v368 = vsel %vm349, %v245, 0
    %v370 = vsel %vm349, %v251, 0
    %v372 = vsel %vm349, %v257, 0
    %v374 = vsel %vm349, %v263, 0
    %v376 = vsel %vm349, %v269, 0
    %v378 = vsel %vm349, %v275, 0
    %v380 = vsel %vm349, %v281, 0
    %v382 = vsel %vm349, %v318, 0
    %v384 = vsel %vm349, %v320, 0
    %v386 = vsel %vm349, %v322, 0
    %v388 = vsel %vm349, %v324, 0
    %v390 = vsel %vm349, %v326, 0
    %v392 = vsel %vm349, %v328, 0
    %v394 = vsel %vm349, %v330, 0
    %v396 = vsel %vm349, %v332, 0
    %v398 = vsel %vm349, %v334, 0
    %v400 = vsel %vm349, %v336, 0
    %v402 = vsel %vm349, %v338, 0
    %v404 = vsel %vm349, %v340, 0
    %v406 = vsel %vm349, %v342, 0
    %v408 = vsel %vm349, %v344, 0
    %v410 = vsel %vm349, %v346, 0
    %v412 = vsel %vm349, %v348, 0
    %414 = vmatprep.subr.mxu0 0.0
    %415 = vmatpush1.xpose.msra.mxu0 %v382
    %416 = vmatprep.subr.mxu0 0.0
    %417 = vmatpush1.xpose.msra.mxu0 %v384
    %418 = vmatprep.subr.mxu0 0.0
    %419 = vmatpush1.xpose.msra.mxu0 %v386
    %420 = vmatprep.subr.mxu0 0.0
    %421 = vmatpush1.xpose.msra.mxu0 %v388
    %422 = vmatprep.subr.mxu0 0.0
    %423 = vmatpush1.xpose.msra.mxu0 %v390
    %424 = vmatprep.subr.mxu0 0.0
    %425 = vmatpush1.xpose.msra.mxu0 %v392
    %426 = vmatprep.subr.mxu0 0.0
    %427 = vmatpush1.xpose.msra.mxu0 %v394
    %428 = vmatprep.subr.mxu0 0.0
    %429 = vmatpush1.xpose.msra.mxu0 %v396
    %430 = vmatprep.subr.mxu0 0.0
    %431 = vmatpush1.xpose.msra.mxu0 %v398
    %432 = vmatprep.subr.mxu0 0.0
    %433 = vmatpush1.xpose.msra.mxu0 %v400
    %434 = vmatprep.subr.mxu0 0.0
    %435 = vmatpush1.xpose.msra.mxu0 %v402
    %436 = vmatprep.subr.mxu0 0.0
    %437 = vmatpush1.xpose.msra.mxu0 %v404
    %438 = vmatprep.subr.mxu0 0.0
    %439 = vmatpush1.xpose.msra.mxu0 %v406
    %440 = vmatprep.subr.mxu0 0.0
    %441 = vmatpush1.xpose.msra.mxu0 %v408
    %442 = vmatprep.subr.mxu0 0.0
    %443 = vmatpush1.xpose.msra.mxu0 %v410
    %444 = vmatprep.subr.mxu0 0.0
    %445 = vmatpush1.xpose.msra.mxu0 %v412
    %446 = vmatprep.subr.mxu0 0.0
    %447 = vmatpush1.xpose.msra.mxu0 0.0
    %448 = vmatprep.subr.mxu0 0.0
    %449 = vmatpush1.xpose.msra.mxu0 0.0
    %450 = vmatprep.subr.mxu0 0.0
    %451 = vmatpush1.xpose.msra.mxu0 0.0
    %452 = vmatprep.subr.mxu0 0.0
    %453 = vmatpush1.xpose.msra.mxu0 0.0
    %454 = vmatprep.subr.mxu0 0.0
    %455 = vmatpush1.xpose.msra.mxu0 0.0
    %456 = vmatprep.subr.mxu0 0.0
    %457 = vmatpush1.xpose.msra.mxu0 0.0
    %458 = vmatprep.subr.mxu0 0.0
    %459 = vmatpush1.xpose.msra.mxu0 0.0
    %460 = vmatprep.subr.mxu0 0.0
    %461 = vmatpush1.xpose.msra.mxu0 0.0
    %462 = vmatprep.subr.mxu0 0.0
    %463 = vmatpush1.xpose.msra.mxu0 0.0
    %464 = vmatprep.subr.mxu0 0.0
    %465 = vmatpush1.xpose.msra.mxu0 0.0
    %466 = vmatprep.subr.mxu0 0.0
    %467 = vmatpush1.xpose.msra.mxu0 0.0
    %468 = vmatprep.subr.mxu0 0.0
    %469 = vmatpush1.xpose.msra.mxu0 0.0
    %470 = vmatprep.subr.mxu0 0.0
    %471 = vmatpush1.xpose.msra.mxu0 0.0
    %472 = vmatprep.subr.mxu0 0.0
    %473 = vmatpush1.xpose.msra.mxu0 0.0
    %474 = vmatprep.subr.mxu0 0.0
    %475 = vmatpush1.xpose.msra.mxu0 0.0
    %476 = vmatprep.subr.mxu0 0.0
    %477 = vmatpush1.xpose.msra.mxu0 0.0
    %478 = vmatprep.mubr.f32.mxu0 0.0
    %479 = vmatmul.mubr.f32.gmra.mrb[0].mxu0 %v350
    %v480 = vpop.f32.mrb[0].mxu0
    %v481 = vadd.f32 %v285, %v480
    %v482 = vpop.f32.mrb[0].mxu0
    %483 = vmatprep.mubr.f32.mxu0 0.0
    %484 = vmatmul.mubr.f32.gmra.mrb[0].mxu0 %v352
    %v485 = vpop.f32.mrb[0].mxu0
    %v486 = vadd.f32 %v286, %v485
    %v487 = vpop.f32.mrb[0].mxu0
    %488 = vmatprep.mubr.f32.mxu0 0.0
    %489 = vmatmul.mubr.f32.gmra.mrb[0].mxu0 %v354
    %v490 = vpop.f32.mrb[0].mxu0
    %v491 = vadd.f32 %v287, %v490
    %v492 = vpop.f32.mrb[0].mxu0
    %493 = vmatprep.mubr.f32.mxu0 0.0
    %494 = vmatmul.mubr.f32.gmra.mrb[0].mxu0 %v356
    %v495 = vpop.f32.mrb[0].mxu0
    %v496 = vadd.f32 %v288, %v495
    %v497 = vpop.f32.mrb[0].mxu0
    %498 = vmatprep.mubr.f32.mxu0 0.0
    %499 = vmatmul.mubr.f32.gmra.mrb[0].mxu0 %v358
    %v500 = vpop.f32.mrb[0].mxu0
    %v501 = vadd.f32 %v289, %v500
    %v502 = vpop.f32.mrb[0].mxu0
    %503 = vmatprep.mubr.f32.mxu0 0.0
    %504 = vmatmul.mubr.f32.gmra.mrb[0].mxu0 %v360
    %v505 = vpop.f32.mrb[0].mxu0
    %v506 = vadd.f32 %v290, %v505
    %v507 = vpop.f32.mrb[0].mxu0
    %508 = vmatprep.mubr.f32.mxu0 0.0
    %509 = vmatmul.mubr.f32.gmra.mrb[0].mxu0 %v362
    %v510 = vpop.f32.mrb[0].mxu0
    %v511 = vadd.f32 %v291, %v510
    %v512 = vpop.f32.mrb[0].mxu0
    %513 = vmatprep.mubr.f32.mxu0 0.0
    %514 = vmatmul.mubr.f32.gmra.mrb[0].mxu0 %v364
    %v515 = vpop.f32.mrb[0].mxu0
    %v516 = vadd.f32 %v292, %v515
    %v517 = vpop.f32.mrb[0].mxu0
    %518 = vmatprep.mubr.f32.mxu0 0.0
    %519 = vmatmul.mubr.f32.gmra.mrb[0].mxu0 %v366
    %v520 = vpop.f32.mrb[0].mxu0
    %v521 = vadd.f32 %v293, %v520
    %v522 = vpop.f32.mrb[0].mxu0
    %523 = vmatprep.mubr.f32.mxu0 0.0
    %524 = vmatmul.mubr.f32.gmra.mrb[0].mxu0 %v368
    %v525 = vpop.f32.mrb[0].mxu0
    %v526 = vadd.f32 %v294, %v525
    %v527 = vpop.f32.mrb[0].mxu0
    %528 = vmatprep.mubr.f32.mxu0 0.0
    %529 = vmatmul.mubr.f32.gmra.mrb[0].mxu0 %v370
    %v530 = vpop.f32.mrb[0].mxu0
    %v531 = vadd.f32 %v295, %v530
    %v532 = vpop.f32.mrb[0].mxu0
    %533 = vmatprep.mubr.f32.mxu0 0.0
    %534 = vmatmul.mubr.f32.gmra.mrb[0].mxu0 %v372
    %v535 = vpop.f32.mrb[0].mxu0
    %v536 = vadd.f32 %v296, %v535
    %v537 = vpop.f32.mrb[0].mxu0
    %538 = vmatprep.mubr.f32.mxu0 0.0
    %539 = vmatmul.mubr.f32.gmra.mrb[0].mxu0 %v374
    %v540 = vpop.f32.mrb[0].mxu0
    %v541 = vadd.f32 %v297, %v540
    %v542 = vpop.f32.mrb[0].mxu0
    %543 = vmatprep.mubr.f32.mxu0 0.0
    %544 = vmatmul.mubr.f32.gmra.mrb[0].mxu0 %v376
    %v545 = vpop.f32.mrb[0].mxu0
    %v546 = vadd.f32 %v298, %v545
    %v547 = vpop.f32.mrb[0].mxu0
    %548 = vmatprep.mubr.f32.mxu0 0.0
    %549 = vmatmul.mubr.f32.gmra.mrb[0].mxu0 %v378
    %v550 = vpop.f32.mrb[0].mxu0
    %v551 = vadd.f32 %v299, %v550
    %v552 = vpop.f32.mrb[0].mxu0
    %553 = vmatprep.mubr.f32.mxu0 0.0
    %554 = vmatmul.mubr.f32.gmra.mrb[0].mxu0 %v380
    %v555 = vpop.f32.mrb[0].mxu0
    %v556 = vadd.f32 %v300, %v555
    %v557 = vpop.f32.mrb[0].mxu0
    %558 = vdwg.mxu0
    %559 = vmax.xlane.f32.xlu0 %v481
    %v560 = vpop.xlane.xlu0 %559
    %561 = vmax.xlane.f32.xlu0 %v486
    %v562 = vpop.xlane.xlu0 %561
    %563 = vmax.xlane.f32.xlu0 %v491
    %v564 = vpop.xlane.xlu0 %563
    %565 = vmax.xlane.f32.xlu0 %v496
    %v566 = vpop.xlane.xlu0 %565
    %567 = vmax.xlane.f32.xlu0 %v501
    %v568 = vpop.xlane.xlu0 %567
    %569 = vmax.xlane.f32.xlu0 %v506
    %v570 = vpop.xlane.xlu0 %569
    %571 = vmax.xlane.f32.xlu0 %v511
    %v572 = vpop.xlane.xlu0 %571
    %573 = vmax.xlane.f32.xlu0 %v516
    %v574 = vpop.xlane.xlu0 %573
    %575 = vmax.xlane.f32.xlu0 %v521
    %v576 = vpop.xlane.xlu0 %575
    %577 = vmax.xlane.f32.xlu0 %v526
    %v578 = vpop.xlane.xlu0 %577
    %579 = vmax.xlane.f32.xlu0 %v531
    %v580 = vpop.xlane.xlu0 %579
    %581 = vmax.xlane.f32.xlu0 %v536
    %v582 = vpop.xlane.xlu0 %581
    %583 = vmax.xlane.f32.xlu0 %v541
    %v584 = vpop.xlane.xlu0 %583
    %585 = vmax.xlane.f32.xlu0 %v546
    %v586 = vpop.xlane.xlu0 %585
    %587 = vmax.xlane.f32.xlu0 %v551
    %v588 = vpop.xlane.xlu0 %587
    %589 = vmax.xlane.f32.xlu0 %v556
    %v590 = vpop.xlane.xlu0 %589
    %v591 = vsub.f32 %v481, %v560
    %v592 = vsub.f32 %v486, %v562
    %v593 = vsub.f32 %v491, %v564
    %v594 = vsub.f32 %v496, %v566
    %v595 = vsub.f32 %v501, %v568
    %v596 = vsub.f32 %v506, %v570
    %v597 = vsub.f32 %v511, %v572
    %v598 = vsub.f32 %v516, %v574
    %v599 = vsub.f32 %v521, %v576
    %v600 = vsub.f32 %v526, %v578
    %v601 = vsub.f32 %v531, %v580
    %v602 = vsub.f32 %v536, %v582
    %v603 = vsub.f32 %v541, %v584
    %v604 = vsub.f32 %v546, %v586
    %v605 = vsub.f32 %v551, %v588
    %v606 = vsub.f32 %v556, %v590
    %v607 = vmul.f32 %v591, 1.442695
    %v608 = vpow.pop %v607
    %v609 = vmul.f32 %v592, 1.442695
    %v610 = vpow.pop %v609
    %v611 = vmul.f32 %v593, 1.442695
    %v612 = vpow.pop %v611
    %v613 = vmul.f32 %v594, 1.442695
    %v614 = vpow.pop %v613
    %v615 = vmul.f32 %v595, 1.442695
    %v616 = vpow.pop %v615
    %v617 = vmul.f32 %v596, 1.442695
    %v618 = vpow.pop %v617
    %v619 = vmul.f32 %v597, 1.442695
    %v620 = vpow.pop %v619
    %v621 = vmul.f32 %v598, 1.442695
    %v622 = vpow.pop %v621
    %v623 = vmul.f32 %v599, 1.442695
    %v624 = vpow.pop %v623
    %v625 = vmul.f32 %v600, 1.442695
    %v626 = vpow.pop %v625
    %v627 = vmul.f32 %v601, 1.442695
    %v628 = vpow.pop %v627
    %v629 = vmul.f32 %v602, 1.442695
    %v630 = vpow.pop %v629
    %v631 = vmul.f32 %v603, 1.442695
    %v632 = vpow.pop %v631
    %v633 = vmul.f32 %v604, 1.442695
    %v634 = vpow.pop %v633
    %v635 = vmul.f32 %v605, 1.442695
    %v636 = vpow.pop %v635
    %v637 = vmul.f32 %v606, 1.442695
    %v638 = vpow.pop %v637
    %639 = vadd.xlane.f32.xlu0 %v608
    %v640 = vpop.xlane.xlu0 %639
    %641 = vadd.xlane.f32.xlu0 %v610
    %v642 = vpop.xlane.xlu0 %641
    %643 = vadd.xlane.f32.xlu0 %v612
    %v644 = vpop.xlane.xlu0 %643
    %645 = vadd.xlane.f32.xlu0 %v614
    %v646 = vpop.xlane.xlu0 %645
    %647 = vadd.xlane.f32.xlu0 %v616
    %v648 = vpop.xlane.xlu0 %647
    %649 = vadd.xlane.f32.xlu0 %v618
    %v650 = vpop.xlane.xlu0 %649
    %651 = vadd.xlane.f32.xlu0 %v620
    %v652 = vpop.xlane.xlu0 %651
    %653 = vadd.xlane.f32.xlu0 %v622
    %v654 = vpop.xlane.xlu0 %653
    %655 = vadd.xlane.f32.xlu0 %v624
    %v656 = vpop.xlane.xlu0 %655
    %657 = vadd.xlane.f32.xlu0 %v626
    %v658 = vpop.xlane.xlu0 %657
    %659 = vadd.xlane.f32.xlu0 %v628
    %v660 = vpop.xlane.xlu0 %659
    %661 = vadd.xlane.f32.xlu0 %v630
    %v662 = vpop.xlane.xlu0 %661
    %663 = vadd.xlane.f32.xlu0 %v632
    %v664 = vpop.xlane.xlu0 %663
    %665 = vadd.xlane.f32.xlu0 %v634
    %v666 = vpop.xlane.xlu0 %665
    %667 = vadd.xlane.f32.xlu0 %v636
    %v668 = vpop.xlane.xlu0 %667
    %669 = vadd.xlane.f32.xlu0 %v638
    %v670 = vpop.xlane.xlu0 %669
    %v671 = vrcp.pop %v640
    %v672 = vrcp.pop %v642
    %v673 = vrcp.pop %v644
    %v674 = vrcp.pop %v646
    %v675 = vrcp.pop %v648
    %v676 = vrcp.pop %v650
    %v677 = vrcp.pop %v652
    %v678 = vrcp.pop %v654
    %v679 = vrcp.pop %v656
    %v680 = vrcp.pop %v658
    %v681 = vrcp.pop %v660
    %v682 = vrcp.pop %v662
    %v683 = vrcp.pop %v664
    %v684 = vrcp.pop %v666
    %v685 = vrcp.pop %v668
    %v686 = vrcp.pop %v670
    %v687 = vmul.f32 %v608, %v671
    %v688 = vmul.f32 %v610, %v672
    %v689 = vmul.f32 %v612, %v673
    %v690 = vmul.f32 %v614, %v674
    %v691 = vmul.f32 %v616, %v675
    %v692 = vmul.f32 %v618, %v676
    %v693 = vmul.f32 %v620, %v677
    %v694 = vmul.f32 %v622, %v678
    %v695 = vmul.f32 %v624, %v679
    %v696 = vmul.f32 %v626, %v680
    %v697 = vmul.f32 %v628, %v681
    %v698 = vmul.f32 %v630, %v682
    %v699 = vmul.f32 %v632, %v683
    %v700 = vmul.f32 %v634, %v684
    %v701 = vmul.f32 %v636, %v685
    %v702 = vmul.f32 %v638, %v686
    %703 = vrot.lane.b32.xlu0 %v191, 120
    %v704 = vpop.permute.xlu0 %703
    %705 = vrot.lane.b32.xlu0 %v197, 120
    %v706 = vpop.permute.xlu0 %705
    %707 = vrot.lane.b32.xlu0 %v203, 120
    %v708 = vpop.permute.xlu0 %707
    %709 = vrot.lane.b32.xlu0 %v209, 120
    %v710 = vpop.permute.xlu0 %709
    %711 = vrot.lane.b32.xlu0 %v215, 120
    %v712 = vpop.permute.xlu0 %711
    %713 = vrot.lane.b32.xlu0 %v221, 120
    %v714 = vpop.permute.xlu0 %713
    %715 = vrot.lane.b32.xlu0 %v227, 120
    %v716 = vpop.permute.xlu0 %715
    %717 = vrot.lane.b32.xlu0 %v233, 120
    %v718 = vpop.permute.xlu0 %717
    %719 = vrot.lane.b32.xlu0 %v239, 120
    %v720 = vpop.permute.xlu0 %719
    %721 = vrot.lane.b32.xlu0 %v245, 120
    %v722 = vpop.permute.xlu0 %721
    %723 = vrot.lane.b32.xlu0 %v251, 120
    %v724 = vpop.permute.xlu0 %723
    %725 = vrot.lane.b32.xlu0 %v257, 120
    %v726 = vpop.permute.xlu0 %725
    %727 = vrot.lane.b32.xlu0 %v263, 120
    %v728 = vpop.permute.xlu0 %727
    %729 = vrot.lane.b32.xlu0 %v269, 120
    %v730 = vpop.permute.xlu0 %729
    %731 = vrot.lane.b32.xlu0 %v275, 120
    %v732 = vpop.permute.xlu0 %731
    %733 = vrot.lane.b32.xlu0 %v281, 120
    %v734 = vpop.permute.xlu0 %733
    %735 = vrot.lane.b32.xlu0 %v191, 88
    %v736 = vpop.permute.xlu0 %735
    %737 = vrot.lane.b32.xlu0 %v197, 88
    %v738 = vpop.permute.xlu0 %737
    %739 = vrot.lane.b32.xlu0 %v203, 88
    %v740 = vpop.permute.xlu0 %739
    %741 = vrot.lane.b32.xlu0 %v209, 88
    %v742 = vpop.permute.xlu0 %741
    %743 = vrot.lane.b32.xlu0 %v215, 88
    %v744 = vpop.permute.xlu0 %743
    %745 = vrot.lane.b32.xlu0 %v221, 88
    %v746 = vpop.permute.xlu0 %745
    %747 = vrot.lane.b32.xlu0 %v227, 88
    %v748 = vpop.permute.xlu0 %747
    %749 = vrot.lane.b32.xlu0 %v233, 88
    %v750 = vpop.permute.xlu0 %749
    %751 = vrot.lane.b32.xlu0 %v239, 88
    %v752 = vpop.permute.xlu0 %751
    %753 = vrot.lane.b32.xlu0 %v245, 88
    %v754 = vpop.permute.xlu0 %753
    %755 = vrot.lane.b32.xlu0 %v251, 88
    %v756 = vpop.permute.xlu0 %755
    %757 = vrot.lane.b32.xlu0 %v257, 88
    %v758 = vpop.permute.xlu0 %757
    %759 = vrot.lane.b32.xlu0 %v263, 88
    %v760 = vpop.permute.xlu0 %759
    %761 = vrot.lane.b32.xlu0 %v269, 88
    %v762 = vpop.permute.xlu0 %761
    %763 = vrot.lane.b32.xlu0 %v275, 88
    %v764 = vpop.permute.xlu0 %763
    %765 = vrot.lane.b32.xlu0 %v281, 88
    %v766 = vpop.permute.xlu0 %765
    %v767 = vsel %vm349, %v704, 0
    %v769 = vsel %vm349, %v706, 0
    %v771 = vsel %vm349, %v708, 0
    %v773 = vsel %vm349, %v710, 0
    %v775 = vsel %vm349, %v712, 0
    %v777 = vsel %vm349, %v714, 0
    %v779 = vsel %vm349, %v716, 0
    %v781 = vsel %vm349, %v718, 0
    %v783 = vsel %vm349, %v720, 0
    %v785 = vsel %vm349, %v722, 0
    %v787 = vsel %vm349, %v724, 0
    %v789 = vsel %vm349, %v726, 0
    %v791 = vsel %vm349, %v728, 0
    %v793 = vsel %vm349, %v730, 0
    %v795 = vsel %vm349, %v732, 0
    %v797 = vsel %vm349, %v734, 0
    %v799 = vsel %vm349, %v736, 0
    %v801 = vsel %vm349, %v738, 0
    %v803 = vsel %vm349, %v740, 0
    %v805 = vsel %vm349, %v742, 0
    %v807 = vsel %vm349, %v744, 0
    %v809 = vsel %vm349, %v746, 0
    %v811 = vsel %vm349, %v748, 0
    %v813 = vsel %vm349, %v750, 0
    %v815 = vsel %vm349, %v752, 0
    %v817 = vsel %vm349, %v754, 0
    %v819 = vsel %vm349, %v756, 0
    %v821 = vsel %vm349, %v758, 0
    %v823 = vsel %vm349, %v760, 0
    %v825 = vsel %vm349, %v762, 0
    %v827 = vsel %vm349, %v764, 0
    %v829 = vsel %vm349, %v766, 0
    %831 = vmatprep.subr.mxu0 0.0
    %832 = vmatpush1.xpose.msra.mxu0 %v799
    %833 = vmatprep.subr.mxu0 0.0
    %834 = vmatpush1.xpose.msra.mxu0 %v801
    %835 = vmatprep.subr.mxu0 0.0
    %836 = vmatpush1.xpose.msra.mxu0 %v803
    %837 = vmatprep.subr.mxu0 0.0
    %838 = vmatpush1.xpose.msra.mxu0 %v805
    %839 = vmatprep.subr.mxu0 0.0
    %840 = vmatpush1.xpose.msra.mxu0 %v807
    %841 = vmatprep.subr.mxu0 0.0
    %842 = vmatpush1.xpose.msra.mxu0 %v809
    %843 = vmatprep.subr.mxu0 0.0
    %844 = vmatpush1.xpose.msra.mxu0 %v811
    %845 = vmatprep.subr.mxu0 0.0
    %846 = vmatpush1.xpose.msra.mxu0 %v813
    %847 = vmatprep.subr.mxu0 0.0
    %848 = vmatpush1.xpose.msra.mxu0 %v815
    %849 = vmatprep.subr.mxu0 0.0
    %850 = vmatpush1.xpose.msra.mxu0 %v817
    %851 = vmatprep.subr.mxu0 0.0
    %852 = vmatpush1.xpose.msra.mxu0 %v819
    %853 = vmatprep.subr.mxu0 0.0
    %854 = vmatpush1.xpose.msra.mxu0 %v821
    %855 = vmatprep.subr.mxu0 0.0
    %856 = vmatpush1.xpose.msra.mxu0 %v823
    %857 = vmatprep.subr.mxu0 0.0
    %858 = vmatpush1.xpose.msra.mxu0 %v825
    %859 = vmatprep.subr.mxu0 0.0
    %860 = vmatpush1.xpose.msra.mxu0 %v827
    %861 = vmatprep.subr.mxu0 0.0
    %862 = vmatpush1.xpose.msra.mxu0 %v829
    %863 = vmatprep.subr.mxu0 0.0
    %864 = vmatpush1.xpose.msra.mxu0 0.0
    %865 = vmatprep.subr.mxu0 0.0
    %866 = vmatpush1.xpose.msra.mxu0 0.0
    %867 = vmatprep.subr.mxu0 0.0
    %868 = vmatpush1.xpose.msra.mxu0 0.0
    %869 = vmatprep.subr.mxu0 0.0
    %870 = vmatpush1.xpose.msra.mxu0 0.0
    %871 = vmatprep.subr.mxu0 0.0
    %872 = vmatpush1.xpose.msra.mxu0 0.0
    %873 = vmatprep.subr.mxu0 0.0
    %874 = vmatpush1.xpose.msra.mxu0 0.0
    %875 = vmatprep.subr.mxu0 0.0
    %876 = vmatpush1.xpose.msra.mxu0 0.0
    %877 = vmatprep.subr.mxu0 0.0
    %878 = vmatpush1.xpose.msra.mxu0 0.0
    %879 = vmatprep.subr.mxu0 0.0
    %880 = vmatpush1.xpose.msra.mxu0 0.0
    %881 = vmatprep.subr.mxu0 0.0
    %882 = vmatpush1.xpose.msra.mxu0 0.0
    %883 = vmatprep.subr.mxu0 0.0
    %884 = vmatpush1.xpose.msra.mxu0 0.0
    %885 = vmatprep.subr.mxu0 0.0
    %886 = vmatpush1.xpose.msra.mxu0 0.0
    %887 = vmatprep.subr.mxu0 0.0
    %888 = vmatpush1.xpose.msra.mxu0 0.0
    %889 = vmatprep.subr.mxu0 0.0
    %890 = vmatpush1.xpose.msra.mxu0 0.0
    %891 = vmatprep.subr.mxu0 0.0
    %892 = vmatpush1.xpose.msra.mxu0 0.0
    %893 = vmatprep.subr.mxu0 0.0
    %894 = vmatpush1.xpose.msra.mxu0 0.0
    %895 = vmatprep.mubr.f32.mxu0 0.0
    %896 = vmatmul.mubr.f32.gmra.mrb[0].mxu0 %v767
    %v897 = vpop.f32.mrb[0].mxu0
    %v898 = vadd.f32 %v285, %v897
    %v899 = vpop.f32.mrb[0].mxu0
    %900 = vmatprep.mubr.f32.mxu0 0.0
    %901 = vmatmul.mubr.f32.gmra.mrb[0].mxu0 %v769
    %v902 = vpop.f32.mrb[0].mxu0
    %v903 = vadd.f32 %v286, %v902
    %v904 = vpop.f32.mrb[0].mxu0
    %905 = vmatprep.mubr.f32.mxu0 0.0
    %906 = vmatmul.mubr.f32.gmra.mrb[0].mxu0 %v771
    %v907 = vpop.f32.mrb[0].mxu0
    %v908 = vadd.f32 %v287, %v907
    %v909 = vpop.f32.mrb[0].mxu0
    %910 = vmatprep.mubr.f32.mxu0 0.0
    %911 = vmatmul.mubr.f32.gmra.mrb[0].mxu0 %v773
    %v912 = vpop.f32.mrb[0].mxu0
    %v913 = vadd.f32 %v288, %v912
    %v914 = vpop.f32.mrb[0].mxu0
    %915 = vmatprep.mubr.f32.mxu0 0.0
    %916 = vmatmul.mubr.f32.gmra.mrb[0].mxu0 %v775
    %v917 = vpop.f32.mrb[0].mxu0
    %v918 = vadd.f32 %v289, %v917
    %v919 = vpop.f32.mrb[0].mxu0
    %920 = vmatprep.mubr.f32.mxu0 0.0
    %921 = vmatmul.mubr.f32.gmra.mrb[0].mxu0 %v777
    %v922 = vpop.f32.mrb[0].mxu0
    %v923 = vadd.f32 %v290, %v922
    %v924 = vpop.f32.mrb[0].mxu0
    %925 = vmatprep.mubr.f32.mxu0 0.0
    %926 = vmatmul.mubr.f32.gmra.mrb[0].mxu0 %v779
    %v927 = vpop.f32.mrb[0].mxu0
    %v928 = vadd.f32 %v291, %v927
    %v929 = vpop.f32.mrb[0].mxu0
    %930 = vmatprep.mubr.f32.mxu0 0.0
    %931 = vmatmul.mubr.f32.gmra.mrb[0].mxu0 %v781
    %v932 = vpop.f32.mrb[0].mxu0
    %v933 = vadd.f32 %v292, %v932
    %v934 = vpop.f32.mrb[0].mxu0
    %935 = vmatprep.mubr.f32.mxu0 0.0
    %936 = vmatmul.mubr.f32.gmra.mrb[0].mxu0 %v783
    %v937 = vpop.f32.mrb[0].mxu0
    %v938 = vadd.f32 %v293, %v937
    %v939 = vpop.f32.mrb[0].mxu0
    %940 = vmatprep.mubr.f32.mxu0 0.0
    %941 = vmatmul.mubr.f32.gmra.mrb[0].mxu0 %v785
    %v942 = vpop.f32.mrb[0].mxu0
    %v943 = vadd.f32 %v294, %v942
    %v944 = vpop.f32.mrb[0].mxu0
    %945 = vmatprep.mubr.f32.mxu0 0.0
    %946 = vmatmul.mubr.f32.gmra.mrb[0].mxu0 %v787
    %v947 = vpop.f32.mrb[0].mxu0
    %v948 = vadd.f32 %v295, %v947
    %v949 = vpop.f32.mrb[0].mxu0
    %950 = vmatprep.mubr.f32.mxu0 0.0
    %951 = vmatmul.mubr.f32.gmra.mrb[0].mxu0 %v789
    %v952 = vpop.f32.mrb[0].mxu0
    %v953 = vadd.f32 %v296, %v952
    %v954 = vpop.f32.mrb[0].mxu0
    %955 = vmatprep.mubr.f32.mxu0 0.0
    %956 = vmatmul.mubr.f32.gmra.mrb[0].mxu0 %v791
    %v957 = vpop.f32.mrb[0].mxu0
    %v958 = vadd.f32 %v297, %v957
    %v959 = vpop.f32.mrb[0].mxu0
    %960 = vmatprep.mubr.f32.mxu0 0.0
    %961 = vmatmul.mubr.f32.gmra.mrb[0].mxu0 %v793
    %v962 = vpop.f32.mrb[0].mxu0
    %v963 = vadd.f32 %v298, %v962
    %v964 = vpop.f32.mrb[0].mxu0
    %965 = vmatprep.mubr.f32.mxu0 0.0
    %966 = vmatmul.mubr.f32.gmra.mrb[0].mxu0 %v795
    %v967 = vpop.f32.mrb[0].mxu0
    %v968 = vadd.f32 %v299, %v967
    %v969 = vpop.f32.mrb[0].mxu0
    %970 = vmatprep.mubr.f32.mxu0 0.0
    %971 = vmatmul.mubr.f32.gmra.mrb[0].mxu0 %v797
    %v972 = vpop.f32.mrb[0].mxu0
    %v973 = vadd.f32 %v300, %v972
    %v974 = vpop.f32.mrb[0].mxu0
    %975 = vdwg.mxu0
    %976 = vmax.xlane.f32.xlu0 %v898
    %v977 = vpop.xlane.xlu0 %976
    %978 = vmax.xlane.f32.xlu0 %v903
    %v979 = vpop.xlane.xlu0 %978
    %980 = vmax.xlane.f32.xlu0 %v908
    %v981 = vpop.xlane.xlu0 %980
    %982 = vmax.xlane.f32.xlu0 %v913
    %v983 = vpop.xlane.xlu0 %982
    %984 = vmax.xlane.f32.xlu0 %v918
    %v985 = vpop.xlane.xlu0 %984
    %986 = vmax.xlane.f32.xlu0 %v923
    %v987 = vpop.xlane.xlu0 %986
    %988 = vmax.xlane.f32.xlu0 %v928
    %v989 = vpop.xlane.xlu0 %988
    %990 = vmax.xlane.f32.xlu0 %v933
    %v991 = vpop.xlane.xlu0 %990
    %992 = vmax.xlane.f32.xlu0 %v938
    %v993 = vpop.xlane.xlu0 %992
    %994 = vmax.xlane.f32.xlu0 %v943
    %v995 = vpop.xlane.xlu0 %994
    %996 = vmax.xlane.f32.xlu0 %v948
    %v997 = vpop.xlane.xlu0 %996
    %998 = vmax.xlane.f32.xlu0 %v953
    %v999 = vpop.xlane.xlu0 %998
    %1000 = vmax.xlane.f32.xlu0 %v958
    %v1001 = vpop.xlane.xlu0 %1000
    %1002 = vmax.xlane.f32.xlu0 %v963
    %v1003 = vpop.xlane.xlu0 %1002
    %1004 = vmax.xlane.f32.xlu0 %v968
    %v1005 = vpop.xlane.xlu0 %1004
    %1006 = vmax.xlane.f32.xlu0 %v973
    %v1007 = vpop.xlane.xlu0 %1006
    %v1008 = vsub.f32 %v898, %v977
    %v1009 = vsub.f32 %v903, %v979
    %v1010 = vsub.f32 %v908, %v981
    %v1011 = vsub.f32 %v913, %v983
    %v1012 = vsub.f32 %v918, %v985
    %v1013 = vsub.f32 %v923, %v987
    %v1014 = vsub.f32 %v928, %v989
    %v1015 = vsub.f32 %v933, %v991
    %v1016 = vsub.f32 %v938, %v993
    %v1017 = vsub.f32 %v943, %v995
    %v1018 = vsub.f32 %v948, %v997
    %v1019 = vsub.f32 %v953, %v999
    %v1020 = vsub.f32 %v958, %v1001
    %v1021 = vsub.f32 %v963, %v1003
    %v1022 = vsub.f32 %v968, %v1005
    %v1023 = vsub.f32 %v973, %v1007
    %v1024 = vmul.f32 %v1008, 1.442695
    %v1025 = vpow.pop %v1024
    %v1026 = vmul.f32 %v1009, 1.442695
    %v1027 = vpow.pop %v1026
    %v1028 = vmul.f32 %v1010, 1.442695
    %v1029 = vpow.pop %v1028
    %v1030 = vmul.f32 %v1011, 1.442695
    %v1031 = vpow.pop %v1030
    %v1032 = vmul.f32 %v1012, 1.442695
    %v1033 = vpow.pop %v1032
    %v1034 = vmul.f32 %v1013, 1.442695
    %v1035 = vpow.pop %v1034
    %v1036 = vmul.f32 %v1014, 1.442695
    %v1037 = vpow.pop %v1036
    %v1038 = vmul.f32 %v1015, 1.442695
    %v1039 = vpow.pop %v1038
    %v1040 = vmul.f32 %v1016, 1.442695
    %v1041 = vpow.pop %v1040
    %v1042 = vmul.f32 %v1017, 1.442695
    %v1043 = vpow.pop %v1042
    %v1044 = vmul.f32 %v1018, 1.442695
    %v1045 = vpow.pop %v1044
    %v1046 = vmul.f32 %v1019, 1.442695
    %v1047 = vpow.pop %v1046
    %v1048 = vmul.f32 %v1020, 1.442695
    %v1049 = vpow.pop %v1048
    %v1050 = vmul.f32 %v1021, 1.442695
    %v1051 = vpow.pop %v1050
    %v1052 = vmul.f32 %v1022, 1.442695
    %v1053 = vpow.pop %v1052
    %v1054 = vmul.f32 %v1023, 1.442695
    %v1055 = vpow.pop %v1054
    %1056 = vadd.xlane.f32.xlu0 %v1025
    %v1057 = vpop.xlane.xlu0 %1056
    %1058 = vadd.xlane.f32.xlu0 %v1027
    %v1059 = vpop.xlane.xlu0 %1058
    %1060 = vadd.xlane.f32.xlu0 %v1029
    %v1061 = vpop.xlane.xlu0 %1060
    %1062 = vadd.xlane.f32.xlu0 %v1031
    %v1063 = vpop.xlane.xlu0 %1062
    %1064 = vadd.xlane.f32.xlu0 %v1033
    %v1065 = vpop.xlane.xlu0 %1064
    %1066 = vadd.xlane.f32.xlu0 %v1035
    %v1067 = vpop.xlane.xlu0 %1066
    %1068 = vadd.xlane.f32.xlu0 %v1037
    %v1069 = vpop.xlane.xlu0 %1068
    %1070 = vadd.xlane.f32.xlu0 %v1039
    %v1071 = vpop.xlane.xlu0 %1070
    %1072 = vadd.xlane.f32.xlu0 %v1041
    %v1073 = vpop.xlane.xlu0 %1072
    %1074 = vadd.xlane.f32.xlu0 %v1043
    %v1075 = vpop.xlane.xlu0 %1074
    %1076 = vadd.xlane.f32.xlu0 %v1045
    %v1077 = vpop.xlane.xlu0 %1076
    %1078 = vadd.xlane.f32.xlu0 %v1047
    %v1079 = vpop.xlane.xlu0 %1078
    %1080 = vadd.xlane.f32.xlu0 %v1049
    %v1081 = vpop.xlane.xlu0 %1080
    %1082 = vadd.xlane.f32.xlu0 %v1051
    %v1083 = vpop.xlane.xlu0 %1082
    %1084 = vadd.xlane.f32.xlu0 %v1053
    %v1085 = vpop.xlane.xlu0 %1084
    %1086 = vadd.xlane.f32.xlu0 %v1055
    %v1087 = vpop.xlane.xlu0 %1086
    %v1088 = vrcp.pop %v1057
    %v1089 = vrcp.pop %v1059
    %v1090 = vrcp.pop %v1061
    %v1091 = vrcp.pop %v1063
    %v1092 = vrcp.pop %v1065
    %v1093 = vrcp.pop %v1067
    %v1094 = vrcp.pop %v1069
    %v1095 = vrcp.pop %v1071
    %v1096 = vrcp.pop %v1073
    %v1097 = vrcp.pop %v1075
    %v1098 = vrcp.pop %v1077
    %v1099 = vrcp.pop %v1079
    %v1100 = vrcp.pop %v1081
    %v1101 = vrcp.pop %v1083
    %v1102 = vrcp.pop %v1085
    %v1103 = vrcp.pop %v1087
    %v1104 = vmul.f32 %v1025, %v1088
    %v1105 = vmul.f32 %v1027, %v1089
    %v1106 = vmul.f32 %v1029, %v1090
    %v1107 = vmul.f32 %v1031, %v1091
    %v1108 = vmul.f32 %v1033, %v1092
    %v1109 = vmul.f32 %v1035, %v1093
    %v1110 = vmul.f32 %v1037, %v1094
    %v1111 = vmul.f32 %v1039, %v1095
    %v1112 = vmul.f32 %v1041, %v1096
    %v1113 = vmul.f32 %v1043, %v1097
    %v1114 = vmul.f32 %v1045, %v1098
    %v1115 = vmul.f32 %v1047, %v1099
    %v1116 = vmul.f32 %v1049, %v1100
    %v1117 = vmul.f32 %v1051, %v1101
    %v1118 = vmul.f32 %v1053, %v1102
    %v1119 = vmul.f32 %v1055, %v1103
    %1120 = vrot.lane.b32.xlu0 %v191, 32
    %v1121 = vpop.permute.xlu0 %1120
    %1122 = vrot.lane.b32.xlu0 %v197, 32
    %v1123 = vpop.permute.xlu0 %1122
    %1124 = vrot.lane.b32.xlu0 %v203, 32
    %v1125 = vpop.permute.xlu0 %1124
    %1126 = vrot.lane.b32.xlu0 %v209, 32
    %v1127 = vpop.permute.xlu0 %1126
    %1128 = vrot.lane.b32.xlu0 %v215, 32
    %v1129 = vpop.permute.xlu0 %1128
    %1130 = vrot.lane.b32.xlu0 %v221, 32
    %v1131 = vpop.permute.xlu0 %1130
    %1132 = vrot.lane.b32.xlu0 %v227, 32
    %v1133 = vpop.permute.xlu0 %1132
    %1134 = vrot.lane.b32.xlu0 %v233, 32
    %v1135 = vpop.permute.xlu0 %1134
    %1136 = vrot.lane.b32.xlu0 %v239, 32
    %v1137 = vpop.permute.xlu0 %1136
    %1138 = vrot.lane.b32.xlu0 %v245, 32
    %v1139 = vpop.permute.xlu0 %1138
    %1140 = vrot.lane.b32.xlu0 %v251, 32
    %v1141 = vpop.permute.xlu0 %1140
    %1142 = vrot.lane.b32.xlu0 %v257, 32
    %v1143 = vpop.permute.xlu0 %1142
    %1144 = vrot.lane.b32.xlu0 %v263, 32
    %v1145 = vpop.permute.xlu0 %1144
    %1146 = vrot.lane.b32.xlu0 %v269, 32
    %v1147 = vpop.permute.xlu0 %1146
    %1148 = vrot.lane.b32.xlu0 %v275, 32
    %v1149 = vpop.permute.xlu0 %1148
    %1150 = vrot.lane.b32.xlu0 %v281, 32
    %v1151 = vpop.permute.xlu0 %1150
    %1168 = vmatprep.subr.mxu0 0.0
    %1169 = vmatpush1.msra.mxu0 %v1121
    %1170 = vmatprep.subr.mxu0 0.0
    %1171 = vmatpush1.msra.mxu0 %v1123
    %1172 = vmatprep.subr.mxu0 0.0
    %1173 = vmatpush1.msra.mxu0 %v1125
    %1174 = vmatprep.subr.mxu0 0.0
    %1175 = vmatpush1.msra.mxu0 %v1127
    %1176 = vmatprep.subr.mxu0 0.0
    %1177 = vmatpush1.msra.mxu0 %v1129
    %1178 = vmatprep.subr.mxu0 0.0
    %1179 = vmatpush1.msra.mxu0 %v1131
    %1180 = vmatprep.subr.mxu0 0.0
    %1181 = vmatpush1.msra.mxu0 %v1133
    %1182 = vmatprep.subr.mxu0 0.0
    %1183 = vmatpush1.msra.mxu0 %v1135
    %1184 = vmatprep.subr.mxu0 0.0
    %1185 = vmatpush1.msra.mxu0 %v1137
    %1186 = vmatprep.subr.mxu0 0.0
    %1187 = vmatpush1.msra.mxu0 %v1139
    %1188 = vmatprep.subr.mxu0 0.0
    %1189 = vmatpush1.msra.mxu0 %v1141
    %1190 = vmatprep.subr.mxu0 0.0
    %1191 = vmatpush1.msra.mxu0 %v1143
    %1192 = vmatprep.subr.mxu0 0.0
    %1193 = vmatpush1.msra.mxu0 %v1145
    %1194 = vmatprep.subr.mxu0 0.0
    %1195 = vmatpush1.msra.mxu0 %v1147
    %1196 = vmatprep.subr.mxu0 0.0
    %1197 = vmatpush1.msra.mxu0 %v1149
    %1198 = vmatprep.subr.mxu0 0.0
    %1199 = vmatpush1.msra.mxu0 %v1151
    %1200 = vmatprep.subr.mxu0 0.0
    %1201 = vmatpush1.msra.mxu0 0.0
    %1202 = vmatprep.subr.mxu0 0.0
    %1203 = vmatpush1.msra.mxu0 0.0
    %1204 = vmatprep.subr.mxu0 0.0
    %1205 = vmatpush1.msra.mxu0 0.0
    %1206 = vmatprep.subr.mxu0 0.0
    %1207 = vmatpush1.msra.mxu0 0.0
    %1208 = vmatprep.subr.mxu0 0.0
    %1209 = vmatpush1.msra.mxu0 0.0
    %1210 = vmatprep.subr.mxu0 0.0
    %1211 = vmatpush1.msra.mxu0 0.0
    %1212 = vmatprep.subr.mxu0 0.0
    %1213 = vmatpush1.msra.mxu0 0.0
    %1214 = vmatprep.subr.mxu0 0.0
    %1215 = vmatpush1.msra.mxu0 0.0
    %1216 = vmatprep.subr.mxu0 0.0
    %1217 = vmatpush1.msra.mxu0 0.0
    %1218 = vmatprep.subr.mxu0 0.0
    %1219 = vmatpush1.msra.mxu0 0.0
    %1220 = vmatprep.subr.mxu0 0.0
    %1221 = vmatpush1.msra.mxu0 0.0
    %1222 = vmatprep.subr.mxu0 0.0
    %1223 = vmatpush1.msra.mxu0 0.0
    %1224 = vmatprep.subr.mxu0 0.0
    %1225 = vmatpush1.msra.mxu0 0.0
    %1226 = vmatprep.subr.mxu0 0.0
    %1227 = vmatpush1.msra.mxu0 0.0
    %1228 = vmatprep.subr.mxu0 0.0
    %1229 = vmatpush1.msra.mxu0 0.0
    %1230 = vmatprep.subr.mxu0 0.0
    %1231 = vmatpush1.msra.mxu0 0.0
    %1232 = vmatprep.mubr.f32.mxu0 0.0
    %1233 = vmatmul.mubr.f32.gmra.mrb[0].mxu0 %v1104
    %v1234 = vpop.f32.mrb[0].mxu0
    %v1235 = vadd.f32 0.0, %v1234
    %v1236 = vpop.f32.mrb[0].mxu0
    %1237 = vmatprep.mubr.f32.mxu0 0.0
    %1238 = vmatmul.mubr.f32.gmra.mrb[0].mxu0 %v1105
    %v1239 = vpop.f32.mrb[0].mxu0
    %v1240 = vadd.f32 0.0, %v1239
    %v1241 = vpop.f32.mrb[0].mxu0
    %1242 = vmatprep.mubr.f32.mxu0 0.0
    %1243 = vmatmul.mubr.f32.gmra.mrb[0].mxu0 %v1106
    %v1244 = vpop.f32.mrb[0].mxu0
    %v1245 = vadd.f32 0.0, %v1244
    %v1246 = vpop.f32.mrb[0].mxu0
    %1247 = vmatprep.mubr.f32.mxu0 0.0
    %1248 = vmatmul.mubr.f32.gmra.mrb[0].mxu0 %v1107
    %v1249 = vpop.f32.mrb[0].mxu0
    %v1250 = vadd.f32 0.0, %v1249
    %v1251 = vpop.f32.mrb[0].mxu0
    %1252 = vmatprep.mubr.f32.mxu0 0.0
    %1253 = vmatmul.mubr.f32.gmra.mrb[0].mxu0 %v1108
    %v1254 = vpop.f32.mrb[0].mxu0
    %v1255 = vadd.f32 0.0, %v1254
    %v1256 = vpop.f32.mrb[0].mxu0
    %1257 = vmatprep.mubr.f32.mxu0 0.0
    %1258 = vmatmul.mubr.f32.gmra.mrb[0].mxu0 %v1109
    %v1259 = vpop.f32.mrb[0].mxu0
    %v1260 = vadd.f32 0.0, %v1259
    %v1261 = vpop.f32.mrb[0].mxu0
    %1262 = vmatprep.mubr.f32.mxu0 0.0
    %1263 = vmatmul.mubr.f32.gmra.mrb[0].mxu0 %v1110
    %v1264 = vpop.f32.mrb[0].mxu0
    %v1265 = vadd.f32 0.0, %v1264
    %v1266 = vpop.f32.mrb[0].mxu0
    %1267 = vmatprep.mubr.f32.mxu0 0.0
    %1268 = vmatmul.mubr.f32.gmra.mrb[0].mxu0 %v1111
    %v1269 = vpop.f32.mrb[0].mxu0
    %v1270 = vadd.f32 0.0, %v1269
    %v1271 = vpop.f32.mrb[0].mxu0
    %1272 = vmatprep.mubr.f32.mxu0 0.0
    %1273 = vmatmul.mubr.f32.gmra.mrb[0].mxu0 %v1112
    %v1274 = vpop.f32.mrb[0].mxu0
    %v1275 = vadd.f32 0.0, %v1274
    %v1276 = vpop.f32.mrb[0].mxu0
    %1277 = vmatprep.mubr.f32.mxu0 0.0
    %1278 = vmatmul.mubr.f32.gmra.mrb[0].mxu0 %v1113
    %v1279 = vpop.f32.mrb[0].mxu0
    %v1280 = vadd.f32 0.0, %v1279
    %v1281 = vpop.f32.mrb[0].mxu0
    %1282 = vmatprep.mubr.f32.mxu0 0.0
    %1283 = vmatmul.mubr.f32.gmra.mrb[0].mxu0 %v1114
    %v1284 = vpop.f32.mrb[0].mxu0
    %v1285 = vadd.f32 0.0, %v1284
    %v1286 = vpop.f32.mrb[0].mxu0
    %1287 = vmatprep.mubr.f32.mxu0 0.0
    %1288 = vmatmul.mubr.f32.gmra.mrb[0].mxu0 %v1115
    %v1289 = vpop.f32.mrb[0].mxu0
    %v1290 = vadd.f32 0.0, %v1289
    %v1291 = vpop.f32.mrb[0].mxu0
    %1292 = vmatprep.mubr.f32.mxu0 0.0
    %1293 = vmatmul.mubr.f32.gmra.mrb[0].mxu0 %v1116
    %v1294 = vpop.f32.mrb[0].mxu0
    %v1295 = vadd.f32 0.0, %v1294
    %v1296 = vpop.f32.mrb[0].mxu0
    %1297 = vmatprep.mubr.f32.mxu0 0.0
    %1298 = vmatmul.mubr.f32.gmra.mrb[0].mxu0 %v1117
    %v1299 = vpop.f32.mrb[0].mxu0
    %v1300 = vadd.f32 0.0, %v1299
    %v1301 = vpop.f32.mrb[0].mxu0
    %1302 = vmatprep.mubr.f32.mxu0 0.0
    %1303 = vmatmul.mubr.f32.gmra.mrb[0].mxu0 %v1118
    %v1304 = vpop.f32.mrb[0].mxu0
    %v1305 = vadd.f32 0.0, %v1304
    %v1306 = vpop.f32.mrb[0].mxu0
    %1307 = vmatprep.mubr.f32.mxu0 0.0
    %1308 = vmatmul.mubr.f32.gmra.mrb[0].mxu0 %v1119
    %v1309 = vpop.f32.mrb[0].mxu0
    %v1310 = vadd.f32 0.0, %v1309
    %v1311 = vpop.f32.mrb[0].mxu0
    %1312 = vdwg.mxu0
    %1313 = vrot.lane.b32.xlu0 %v191, 64
    %v1314 = vpop.permute.xlu0 %1313
    %1315 = vrot.lane.b32.xlu0 %v197, 64
    %v1316 = vpop.permute.xlu0 %1315
    %1317 = vrot.lane.b32.xlu0 %v203, 64
    %v1318 = vpop.permute.xlu0 %1317
    %1319 = vrot.lane.b32.xlu0 %v209, 64
    %v1320 = vpop.permute.xlu0 %1319
    %1321 = vrot.lane.b32.xlu0 %v215, 64
    %v1322 = vpop.permute.xlu0 %1321
    %1323 = vrot.lane.b32.xlu0 %v221, 64
    %v1324 = vpop.permute.xlu0 %1323
    %1325 = vrot.lane.b32.xlu0 %v227, 64
    %v1326 = vpop.permute.xlu0 %1325
    %1327 = vrot.lane.b32.xlu0 %v233, 64
    %v1328 = vpop.permute.xlu0 %1327
    %1329 = vrot.lane.b32.xlu0 %v239, 64
    %v1330 = vpop.permute.xlu0 %1329
    %1331 = vrot.lane.b32.xlu0 %v245, 64
    %v1332 = vpop.permute.xlu0 %1331
    %1333 = vrot.lane.b32.xlu0 %v251, 64
    %v1334 = vpop.permute.xlu0 %1333
    %1335 = vrot.lane.b32.xlu0 %v257, 64
    %v1336 = vpop.permute.xlu0 %1335
    %1337 = vrot.lane.b32.xlu0 %v263, 64
    %v1338 = vpop.permute.xlu0 %1337
    %1339 = vrot.lane.b32.xlu0 %v269, 64
    %v1340 = vpop.permute.xlu0 %1339
    %1341 = vrot.lane.b32.xlu0 %v275, 64
    %v1342 = vpop.permute.xlu0 %1341
    %1343 = vrot.lane.b32.xlu0 %v281, 64
    %v1344 = vpop.permute.xlu0 %1343
    %1361 = vmatprep.subr.mxu0 0.0
    %1362 = vmatpush1.msra.mxu0 %v1314
    %1363 = vmatprep.subr.mxu0 0.0
    %1364 = vmatpush1.msra.mxu0 %v1316
    %1365 = vmatprep.subr.mxu0 0.0
    %1366 = vmatpush1.msra.mxu0 %v1318
    %1367 = vmatprep.subr.mxu0 0.0
    %1368 = vmatpush1.msra.mxu0 %v1320
    %1369 = vmatprep.subr.mxu0 0.0
    %1370 = vmatpush1.msra.mxu0 %v1322
    %1371 = vmatprep.subr.mxu0 0.0
    %1372 = vmatpush1.msra.mxu0 %v1324
    %1373 = vmatprep.subr.mxu0 0.0
    %1374 = vmatpush1.msra.mxu0 %v1326
    %1375 = vmatprep.subr.mxu0 0.0
    %1376 = vmatpush1.msra.mxu0 %v1328
    %1377 = vmatprep.subr.mxu0 0.0
    %1378 = vmatpush1.msra.mxu0 %v1330
    %1379 = vmatprep.subr.mxu0 0.0
    %1380 = vmatpush1.msra.mxu0 %v1332
    %1381 = vmatprep.subr.mxu0 0.0
    %1382 = vmatpush1.msra.mxu0 %v1334
    %1383 = vmatprep.subr.mxu0 0.0
    %1384 = vmatpush1.msra.mxu0 %v1336
    %1385 = vmatprep.subr.mxu0 0.0
    %1386 = vmatpush1.msra.mxu0 %v1338
    %1387 = vmatprep.subr.mxu0 0.0
    %1388 = vmatpush1.msra.mxu0 %v1340
    %1389 = vmatprep.subr.mxu0 0.0
    %1390 = vmatpush1.msra.mxu0 %v1342
    %1391 = vmatprep.subr.mxu0 0.0
    %1392 = vmatpush1.msra.mxu0 %v1344
    %1393 = vmatprep.subr.mxu0 0.0
    %1394 = vmatpush1.msra.mxu0 0.0
    %1395 = vmatprep.subr.mxu0 0.0
    %1396 = vmatpush1.msra.mxu0 0.0
    %1397 = vmatprep.subr.mxu0 0.0
    %1398 = vmatpush1.msra.mxu0 0.0
    %1399 = vmatprep.subr.mxu0 0.0
    %1400 = vmatpush1.msra.mxu0 0.0
    %1401 = vmatprep.subr.mxu0 0.0
    %1402 = vmatpush1.msra.mxu0 0.0
    %1403 = vmatprep.subr.mxu0 0.0
    %1404 = vmatpush1.msra.mxu0 0.0
    %1405 = vmatprep.subr.mxu0 0.0
    %1406 = vmatpush1.msra.mxu0 0.0
    %1407 = vmatprep.subr.mxu0 0.0
    %1408 = vmatpush1.msra.mxu0 0.0
    %1409 = vmatprep.subr.mxu0 0.0
    %1410 = vmatpush1.msra.mxu0 0.0
    %1411 = vmatprep.subr.mxu0 0.0
    %1412 = vmatpush1.msra.mxu0 0.0
    %1413 = vmatprep.subr.mxu0 0.0
    %1414 = vmatpush1.msra.mxu0 0.0
    %1415 = vmatprep.subr.mxu0 0.0
    %1416 = vmatpush1.msra.mxu0 0.0
    %1417 = vmatprep.subr.mxu0 0.0
    %1418 = vmatpush1.msra.mxu0 0.0
    %1419 = vmatprep.subr.mxu0 0.0
    %1420 = vmatpush1.msra.mxu0 0.0
    %1421 = vmatprep.subr.mxu0 0.0
    %1422 = vmatpush1.msra.mxu0 0.0
    %1423 = vmatprep.subr.mxu0 0.0
    %1424 = vmatpush1.msra.mxu0 0.0
    %1425 = vmatprep.mubr.f32.mxu0 0.0
    %1426 = vmatmul.mubr.f32.gmra.mrb[0].mxu0 %v687
    %v1427 = vpop.f32.mrb[0].mxu0
    %v1428 = vadd.f32 %v1235, %v1427
    %v1429 = vpop.f32.mrb[0].mxu0
    %1430 = vmatprep.mubr.f32.mxu0 0.0
    %1431 = vmatmul.mubr.f32.gmra.mrb[0].mxu0 %v688
    %v1432 = vpop.f32.mrb[0].mxu0
    %v1433 = vadd.f32 %v1240, %v1432
    %v1434 = vpop.f32.mrb[0].mxu0
    %1435 = vmatprep.mubr.f32.mxu0 0.0
    %1436 = vmatmul.mubr.f32.gmra.mrb[0].mxu0 %v689
    %v1437 = vpop.f32.mrb[0].mxu0
    %v1438 = vadd.f32 %v1245, %v1437
    %v1439 = vpop.f32.mrb[0].mxu0
    %1440 = vmatprep.mubr.f32.mxu0 0.0
    %1441 = vmatmul.mubr.f32.gmra.mrb[0].mxu0 %v690
    %v1442 = vpop.f32.mrb[0].mxu0
    %v1443 = vadd.f32 %v1250, %v1442
    %v1444 = vpop.f32.mrb[0].mxu0
    %1445 = vmatprep.mubr.f32.mxu0 0.0
    %1446 = vmatmul.mubr.f32.gmra.mrb[0].mxu0 %v691
    %v1447 = vpop.f32.mrb[0].mxu0
    %v1448 = vadd.f32 %v1255, %v1447
    %v1449 = vpop.f32.mrb[0].mxu0
    %1450 = vmatprep.mubr.f32.mxu0 0.0
    %1451 = vmatmul.mubr.f32.gmra.mrb[0].mxu0 %v692
    %v1452 = vpop.f32.mrb[0].mxu0
    %v1453 = vadd.f32 %v1260, %v1452
    %v1454 = vpop.f32.mrb[0].mxu0
    %1455 = vmatprep.mubr.f32.mxu0 0.0
    %1456 = vmatmul.mubr.f32.gmra.mrb[0].mxu0 %v693
    %v1457 = vpop.f32.mrb[0].mxu0
    %v1458 = vadd.f32 %v1265, %v1457
    %v1459 = vpop.f32.mrb[0].mxu0
    %1460 = vmatprep.mubr.f32.mxu0 0.0
    %1461 = vmatmul.mubr.f32.gmra.mrb[0].mxu0 %v694
    %v1462 = vpop.f32.mrb[0].mxu0
    %v1463 = vadd.f32 %v1270, %v1462
    %v1464 = vpop.f32.mrb[0].mxu0
    %1465 = vmatprep.mubr.f32.mxu0 0.0
    %1466 = vmatmul.mubr.f32.gmra.mrb[0].mxu0 %v695
    %v1467 = vpop.f32.mrb[0].mxu0
    %v1468 = vadd.f32 %v1275, %v1467
    %v1469 = vpop.f32.mrb[0].mxu0
    %1470 = vmatprep.mubr.f32.mxu0 0.0
    %1471 = vmatmul.mubr.f32.gmra.mrb[0].mxu0 %v696
    %v1472 = vpop.f32.mrb[0].mxu0
    %v1473 = vadd.f32 %v1280, %v1472
    %v1474 = vpop.f32.mrb[0].mxu0
    %1475 = vmatprep.mubr.f32.mxu0 0.0
    %1476 = vmatmul.mubr.f32.gmra.mrb[0].mxu0 %v697
    %v1477 = vpop.f32.mrb[0].mxu0
    %v1478 = vadd.f32 %v1285, %v1477
    %v1479 = vpop.f32.mrb[0].mxu0
    %1480 = vmatprep.mubr.f32.mxu0 0.0
    %1481 = vmatmul.mubr.f32.gmra.mrb[0].mxu0 %v698
    %v1482 = vpop.f32.mrb[0].mxu0
    %v1483 = vadd.f32 %v1290, %v1482
    %v1484 = vpop.f32.mrb[0].mxu0
    %1485 = vmatprep.mubr.f32.mxu0 0.0
    %1486 = vmatmul.mubr.f32.gmra.mrb[0].mxu0 %v699
    %v1487 = vpop.f32.mrb[0].mxu0
    %v1488 = vadd.f32 %v1295, %v1487
    %v1489 = vpop.f32.mrb[0].mxu0
    %1490 = vmatprep.mubr.f32.mxu0 0.0
    %1491 = vmatmul.mubr.f32.gmra.mrb[0].mxu0 %v700
    %v1492 = vpop.f32.mrb[0].mxu0
    %v1493 = vadd.f32 %v1300, %v1492
    %v1494 = vpop.f32.mrb[0].mxu0
    %1495 = vmatprep.mubr.f32.mxu0 0.0
    %1496 = vmatmul.mubr.f32.gmra.mrb[0].mxu0 %v701
    %v1497 = vpop.f32.mrb[0].mxu0
    %v1498 = vadd.f32 %v1305, %v1497
    %v1499 = vpop.f32.mrb[0].mxu0
    %1500 = vmatprep.mubr.f32.mxu0 0.0
    %1501 = vmatmul.mubr.f32.gmra.mrb[0].mxu0 %v702
    %v1502 = vpop.f32.mrb[0].mxu0
    %v1503 = vadd.f32 %v1310, %v1502
    %v1504 = vpop.f32.mrb[0].mxu0
    %1505 = vdwg.mxu0
    %1506 = vrot.lane.b32.xlu0 %v191, 112
    %v1507 = vpop.permute.xlu0 %1506
    %1508 = vrot.lane.b32.xlu0 %v197, 112
    %v1509 = vpop.permute.xlu0 %1508
    %1510 = vrot.lane.b32.xlu0 %v203, 112
    %v1511 = vpop.permute.xlu0 %1510
    %1512 = vrot.lane.b32.xlu0 %v209, 112
    %v1513 = vpop.permute.xlu0 %1512
    %1514 = vrot.lane.b32.xlu0 %v215, 112
    %v1515 = vpop.permute.xlu0 %1514
    %1516 = vrot.lane.b32.xlu0 %v221, 112
    %v1517 = vpop.permute.xlu0 %1516
    %1518 = vrot.lane.b32.xlu0 %v227, 112
    %v1519 = vpop.permute.xlu0 %1518
    %1520 = vrot.lane.b32.xlu0 %v233, 112
    %v1521 = vpop.permute.xlu0 %1520
    %1522 = vrot.lane.b32.xlu0 %v239, 112
    %v1523 = vpop.permute.xlu0 %1522
    %1524 = vrot.lane.b32.xlu0 %v245, 112
    %v1525 = vpop.permute.xlu0 %1524
    %1526 = vrot.lane.b32.xlu0 %v251, 112
    %v1527 = vpop.permute.xlu0 %1526
    %1528 = vrot.lane.b32.xlu0 %v257, 112
    %v1529 = vpop.permute.xlu0 %1528
    %1530 = vrot.lane.b32.xlu0 %v263, 112
    %v1531 = vpop.permute.xlu0 %1530
    %1532 = vrot.lane.b32.xlu0 %v269, 112
    %v1533 = vpop.permute.xlu0 %1532
    %1534 = vrot.lane.b32.xlu0 %v275, 112
    %v1535 = vpop.permute.xlu0 %1534
    %1536 = vrot.lane.b32.xlu0 %v281, 112
    %v1537 = vpop.permute.xlu0 %1536
    %1538 = vrot.lane.b32.xlu0 %v191, 80
    %v1539 = vpop.permute.xlu0 %1538
    %1540 = vrot.lane.b32.xlu0 %v197, 80
    %v1541 = vpop.permute.xlu0 %1540
    %1542 = vrot.lane.b32.xlu0 %v203, 80
    %v1543 = vpop.permute.xlu0 %1542
    %1544 = vrot.lane.b32.xlu0 %v209, 80
    %v1545 = vpop.permute.xlu0 %1544
    %1546 = vrot.lane.b32.xlu0 %v215, 80
    %v1547 = vpop.permute.xlu0 %1546
    %1548 = vrot.lane.b32.xlu0 %v221, 80
    %v1549 = vpop.permute.xlu0 %1548
    %1550 = vrot.lane.b32.xlu0 %v227, 80
    %v1551 = vpop.permute.xlu0 %1550
    %1552 = vrot.lane.b32.xlu0 %v233, 80
    %v1553 = vpop.permute.xlu0 %1552
    %1554 = vrot.lane.b32.xlu0 %v239, 80
    %v1555 = vpop.permute.xlu0 %1554
    %1556 = vrot.lane.b32.xlu0 %v245, 80
    %v1557 = vpop.permute.xlu0 %1556
    %1558 = vrot.lane.b32.xlu0 %v251, 80
    %v1559 = vpop.permute.xlu0 %1558
    %1560 = vrot.lane.b32.xlu0 %v257, 80
    %v1561 = vpop.permute.xlu0 %1560
    %1562 = vrot.lane.b32.xlu0 %v263, 80
    %v1563 = vpop.permute.xlu0 %1562
    %1564 = vrot.lane.b32.xlu0 %v269, 80
    %v1565 = vpop.permute.xlu0 %1564
    %1566 = vrot.lane.b32.xlu0 %v275, 80
    %v1567 = vpop.permute.xlu0 %1566
    %1568 = vrot.lane.b32.xlu0 %v281, 80
    %v1569 = vpop.permute.xlu0 %1568
    %v1570 = vsel %vm349, %v1507, 0
    %v1572 = vsel %vm349, %v1509, 0
    %v1574 = vsel %vm349, %v1511, 0
    %v1576 = vsel %vm349, %v1513, 0
    %v1578 = vsel %vm349, %v1515, 0
    %v1580 = vsel %vm349, %v1517, 0
    %v1582 = vsel %vm349, %v1519, 0
    %v1584 = vsel %vm349, %v1521, 0
    %v1586 = vsel %vm349, %v1523, 0
    %v1588 = vsel %vm349, %v1525, 0
    %v1590 = vsel %vm349, %v1527, 0
    %v1592 = vsel %vm349, %v1529, 0
    %v1594 = vsel %vm349, %v1531, 0
    %v1596 = vsel %vm349, %v1533, 0
    %v1598 = vsel %vm349, %v1535, 0
    %v1600 = vsel %vm349, %v1537, 0
    %v1602 = vsel %vm349, %v1539, 0
    %v1604 = vsel %vm349, %v1541, 0
    %v1606 = vsel %vm349, %v1543, 0
    %v1608 = vsel %vm349, %v1545, 0
    %v1610 = vsel %vm349, %v1547, 0
    %v1612 = vsel %vm349, %v1549, 0
    %v1614 = vsel %vm349, %v1551, 0
    %v1616 = vsel %vm349, %v1553, 0
    %v1618 = vsel %vm349, %v1555, 0
    %v1620 = vsel %vm349, %v1557, 0
    %v1622 = vsel %vm349, %v1559, 0
    %v1624 = vsel %vm349, %v1561, 0
    %v1626 = vsel %vm349, %v1563, 0
    %v1628 = vsel %vm349, %v1565, 0
    %v1630 = vsel %vm349, %v1567, 0
    %v1632 = vsel %vm349, %v1569, 0
    %1634 = vmatprep.subr.mxu0 0.0
    %1635 = vmatpush1.xpose.msra.mxu0 %v1602
    %1636 = vmatprep.subr.mxu0 0.0
    %1637 = vmatpush1.xpose.msra.mxu0 %v1604
    %1638 = vmatprep.subr.mxu0 0.0
    %1639 = vmatpush1.xpose.msra.mxu0 %v1606
    %1640 = vmatprep.subr.mxu0 0.0
    %1641 = vmatpush1.xpose.msra.mxu0 %v1608
    %1642 = vmatprep.subr.mxu0 0.0
    %1643 = vmatpush1.xpose.msra.mxu0 %v1610
    %1644 = vmatprep.subr.mxu0 0.0
    %1645 = vmatpush1.xpose.msra.mxu0 %v1612
    %1646 = vmatprep.subr.mxu0 0.0
    %1647 = vmatpush1.xpose.msra.mxu0 %v1614
    %1648 = vmatprep.subr.mxu0 0.0
    %1649 = vmatpush1.xpose.msra.mxu0 %v1616
    %1650 = vmatprep.subr.mxu0 0.0
    %1651 = vmatpush1.xpose.msra.mxu0 %v1618
    %1652 = vmatprep.subr.mxu0 0.0
    %1653 = vmatpush1.xpose.msra.mxu0 %v1620
    %1654 = vmatprep.subr.mxu0 0.0
    %1655 = vmatpush1.xpose.msra.mxu0 %v1622
    %1656 = vmatprep.subr.mxu0 0.0
    %1657 = vmatpush1.xpose.msra.mxu0 %v1624
    %1658 = vmatprep.subr.mxu0 0.0
    %1659 = vmatpush1.xpose.msra.mxu0 %v1626
    %1660 = vmatprep.subr.mxu0 0.0
    %1661 = vmatpush1.xpose.msra.mxu0 %v1628
    %1662 = vmatprep.subr.mxu0 0.0
    %1663 = vmatpush1.xpose.msra.mxu0 %v1630
    %1664 = vmatprep.subr.mxu0 0.0
    %1665 = vmatpush1.xpose.msra.mxu0 %v1632
    %1666 = vmatprep.subr.mxu0 0.0
    %1667 = vmatpush1.xpose.msra.mxu0 0.0
    %1668 = vmatprep.subr.mxu0 0.0
    %1669 = vmatpush1.xpose.msra.mxu0 0.0
    %1670 = vmatprep.subr.mxu0 0.0
    %1671 = vmatpush1.xpose.msra.mxu0 0.0
    %1672 = vmatprep.subr.mxu0 0.0
    %1673 = vmatpush1.xpose.msra.mxu0 0.0
    %1674 = vmatprep.subr.mxu0 0.0
    %1675 = vmatpush1.xpose.msra.mxu0 0.0
    %1676 = vmatprep.subr.mxu0 0.0
    %1677 = vmatpush1.xpose.msra.mxu0 0.0
    %1678 = vmatprep.subr.mxu0 0.0
    %1679 = vmatpush1.xpose.msra.mxu0 0.0
    %1680 = vmatprep.subr.mxu0 0.0
    %1681 = vmatpush1.xpose.msra.mxu0 0.0
    %1682 = vmatprep.subr.mxu0 0.0
    %1683 = vmatpush1.xpose.msra.mxu0 0.0
    %1684 = vmatprep.subr.mxu0 0.0
    %1685 = vmatpush1.xpose.msra.mxu0 0.0
    %1686 = vmatprep.subr.mxu0 0.0
    %1687 = vmatpush1.xpose.msra.mxu0 0.0
    %1688 = vmatprep.subr.mxu0 0.0
    %1689 = vmatpush1.xpose.msra.mxu0 0.0
    %1690 = vmatprep.subr.mxu0 0.0
    %1691 = vmatpush1.xpose.msra.mxu0 0.0
    %1692 = vmatprep.subr.mxu0 0.0
    %1693 = vmatpush1.xpose.msra.mxu0 0.0
    %1694 = vmatprep.subr.mxu0 0.0
    %1695 = vmatpush1.xpose.msra.mxu0 0.0
    %1696 = vmatprep.subr.mxu0 0.0
    %1697 = vmatpush1.xpose.msra.mxu0 0.0
    %1698 = vmatprep.mubr.f32.mxu0 0.0
    %1699 = vmatmul.mubr.f32.gmra.mrb[0].mxu0 %v1570
    %v1700 = vpop.f32.mrb[0].mxu0
    %v1701 = vadd.f32 %v285, %v1700
    %v1702 = vpop.f32.mrb[0].mxu0
    %1703 = vmatprep.mubr.f32.mxu0 0.0
    %1704 = vmatmul.mubr.f32.gmra.mrb[0].mxu0 %v1572
    %v1705 = vpop.f32.mrb[0].mxu0
    %v1706 = vadd.f32 %v286, %v1705
    %v1707 = vpop.f32.mrb[0].mxu0
    %1708 = vmatprep.mubr.f32.mxu0 0.0
    %1709 = vmatmul.mubr.f32.gmra.mrb[0].mxu0 %v1574
    %v1710 = vpop.f32.mrb[0].mxu0
    %v1711 = vadd.f32 %v287, %v1710
    %v1712 = vpop.f32.mrb[0].mxu0
    %1713 = vmatprep.mubr.f32.mxu0 0.0
    %1714 = vmatmul.mubr.f32.gmra.mrb[0].mxu0 %v1576
    %v1715 = vpop.f32.mrb[0].mxu0
    %v1716 = vadd.f32 %v288, %v1715
    %v1717 = vpop.f32.mrb[0].mxu0
    %1718 = vmatprep.mubr.f32.mxu0 0.0
    %1719 = vmatmul.mubr.f32.gmra.mrb[0].mxu0 %v1578
    %v1720 = vpop.f32.mrb[0].mxu0
    %v1721 = vadd.f32 %v289, %v1720
    %v1722 = vpop.f32.mrb[0].mxu0
    %1723 = vmatprep.mubr.f32.mxu0 0.0
    %1724 = vmatmul.mubr.f32.gmra.mrb[0].mxu0 %v1580
    %v1725 = vpop.f32.mrb[0].mxu0
    %v1726 = vadd.f32 %v290, %v1725
    %v1727 = vpop.f32.mrb[0].mxu0
    %1728 = vmatprep.mubr.f32.mxu0 0.0
    %1729 = vmatmul.mubr.f32.gmra.mrb[0].mxu0 %v1582
    %v1730 = vpop.f32.mrb[0].mxu0
    %v1731 = vadd.f32 %v291, %v1730
    %v1732 = vpop.f32.mrb[0].mxu0
    %1733 = vmatprep.mubr.f32.mxu0 0.0
    %1734 = vmatmul.mubr.f32.gmra.mrb[0].mxu0 %v1584
    %v1735 = vpop.f32.mrb[0].mxu0
    %v1736 = vadd.f32 %v292, %v1735
    %v1737 = vpop.f32.mrb[0].mxu0
    %1738 = vmatprep.mubr.f32.mxu0 0.0
    %1739 = vmatmul.mubr.f32.gmra.mrb[0].mxu0 %v1586
    %v1740 = vpop.f32.mrb[0].mxu0
    %v1741 = vadd.f32 %v293, %v1740
    %v1742 = vpop.f32.mrb[0].mxu0
    %1743 = vmatprep.mubr.f32.mxu0 0.0
    %1744 = vmatmul.mubr.f32.gmra.mrb[0].mxu0 %v1588
    %v1745 = vpop.f32.mrb[0].mxu0
    %v1746 = vadd.f32 %v294, %v1745
    %v1747 = vpop.f32.mrb[0].mxu0
    %1748 = vmatprep.mubr.f32.mxu0 0.0
    %1749 = vmatmul.mubr.f32.gmra.mrb[0].mxu0 %v1590
    %v1750 = vpop.f32.mrb[0].mxu0
    %v1751 = vadd.f32 %v295, %v1750
    %v1752 = vpop.f32.mrb[0].mxu0
    %1753 = vmatprep.mubr.f32.mxu0 0.0
    %1754 = vmatmul.mubr.f32.gmra.mrb[0].mxu0 %v1592
    %v1755 = vpop.f32.mrb[0].mxu0
    %v1756 = vadd.f32 %v296, %v1755
    %v1757 = vpop.f32.mrb[0].mxu0
    %1758 = vmatprep.mubr.f32.mxu0 0.0
    %1759 = vmatmul.mubr.f32.gmra.mrb[0].mxu0 %v1594
    %v1760 = vpop.f32.mrb[0].mxu0
    %v1761 = vadd.f32 %v297, %v1760
    %v1762 = vpop.f32.mrb[0].mxu0
    %1763 = vmatprep.mubr.f32.mxu0 0.0
    %1764 = vmatmul.mubr.f32.gmra.mrb[0].mxu0 %v1596
    %v1765 = vpop.f32.mrb[0].mxu0
    %v1766 = vadd.f32 %v298, %v1765
    %v1767 = vpop.f32.mrb[0].mxu0
    %1768 = vmatprep.mubr.f32.mxu0 0.0
    %1769 = vmatmul.mubr.f32.gmra.mrb[0].mxu0 %v1598
    %v1770 = vpop.f32.mrb[0].mxu0
    %v1771 = vadd.f32 %v299, %v1770
    %v1772 = vpop.f32.mrb[0].mxu0
    %1773 = vmatprep.mubr.f32.mxu0 0.0
    %1774 = vmatmul.mubr.f32.gmra.mrb[0].mxu0 %v1600
    %v1775 = vpop.f32.mrb[0].mxu0
    %v1776 = vadd.f32 %v300, %v1775
    %v1777 = vpop.f32.mrb[0].mxu0
    %1778 = vdwg.mxu0
    %1779 = vmax.xlane.f32.xlu0 %v1701
    %v1780 = vpop.xlane.xlu0 %1779
    %1781 = vmax.xlane.f32.xlu0 %v1706
    %v1782 = vpop.xlane.xlu0 %1781
    %1783 = vmax.xlane.f32.xlu0 %v1711
    %v1784 = vpop.xlane.xlu0 %1783
    %1785 = vmax.xlane.f32.xlu0 %v1716
    %v1786 = vpop.xlane.xlu0 %1785
    %1787 = vmax.xlane.f32.xlu0 %v1721
    %v1788 = vpop.xlane.xlu0 %1787
    %1789 = vmax.xlane.f32.xlu0 %v1726
    %v1790 = vpop.xlane.xlu0 %1789
    %1791 = vmax.xlane.f32.xlu0 %v1731
    %v1792 = vpop.xlane.xlu0 %1791
    %1793 = vmax.xlane.f32.xlu0 %v1736
    %v1794 = vpop.xlane.xlu0 %1793
    %1795 = vmax.xlane.f32.xlu0 %v1741
    %v1796 = vpop.xlane.xlu0 %1795
    %1797 = vmax.xlane.f32.xlu0 %v1746
    %v1798 = vpop.xlane.xlu0 %1797
    %1799 = vmax.xlane.f32.xlu0 %v1751
    %v1800 = vpop.xlane.xlu0 %1799
    %1801 = vmax.xlane.f32.xlu0 %v1756
    %v1802 = vpop.xlane.xlu0 %1801
    %1803 = vmax.xlane.f32.xlu0 %v1761
    %v1804 = vpop.xlane.xlu0 %1803
    %1805 = vmax.xlane.f32.xlu0 %v1766
    %v1806 = vpop.xlane.xlu0 %1805
    %1807 = vmax.xlane.f32.xlu0 %v1771
    %v1808 = vpop.xlane.xlu0 %1807
    %1809 = vmax.xlane.f32.xlu0 %v1776
    %v1810 = vpop.xlane.xlu0 %1809
    %v1811 = vsub.f32 %v1701, %v1780
    %v1812 = vsub.f32 %v1706, %v1782
    %v1813 = vsub.f32 %v1711, %v1784
    %v1814 = vsub.f32 %v1716, %v1786
    %v1815 = vsub.f32 %v1721, %v1788
    %v1816 = vsub.f32 %v1726, %v1790
    %v1817 = vsub.f32 %v1731, %v1792
    %v1818 = vsub.f32 %v1736, %v1794
    %v1819 = vsub.f32 %v1741, %v1796
    %v1820 = vsub.f32 %v1746, %v1798
    %v1821 = vsub.f32 %v1751, %v1800
    %v1822 = vsub.f32 %v1756, %v1802
    %v1823 = vsub.f32 %v1761, %v1804
    %v1824 = vsub.f32 %v1766, %v1806
    %v1825 = vsub.f32 %v1771, %v1808
    %v1826 = vsub.f32 %v1776, %v1810
    %v1827 = vmul.f32 %v1811, 1.442695
    %v1828 = vpow.pop %v1827
    %v1829 = vmul.f32 %v1812, 1.442695
    %v1830 = vpow.pop %v1829
    %v1831 = vmul.f32 %v1813, 1.442695
    %v1832 = vpow.pop %v1831
    %v1833 = vmul.f32 %v1814, 1.442695
    %v1834 = vpow.pop %v1833
    %v1835 = vmul.f32 %v1815, 1.442695
    %v1836 = vpow.pop %v1835
    %v1837 = vmul.f32 %v1816, 1.442695
    %v1838 = vpow.pop %v1837
    %v1839 = vmul.f32 %v1817, 1.442695
    %v1840 = vpow.pop %v1839
    %v1841 = vmul.f32 %v1818, 1.442695
    %v1842 = vpow.pop %v1841
    %v1843 = vmul.f32 %v1819, 1.442695
    %v1844 = vpow.pop %v1843
    %v1845 = vmul.f32 %v1820, 1.442695
    %v1846 = vpow.pop %v1845
    %v1847 = vmul.f32 %v1821, 1.442695
    %v1848 = vpow.pop %v1847
    %v1849 = vmul.f32 %v1822, 1.442695
    %v1850 = vpow.pop %v1849
    %v1851 = vmul.f32 %v1823, 1.442695
    %v1852 = vpow.pop %v1851
    %v1853 = vmul.f32 %v1824, 1.442695
    %v1854 = vpow.pop %v1853
    %v1855 = vmul.f32 %v1825, 1.442695
    %v1856 = vpow.pop %v1855
    %v1857 = vmul.f32 %v1826, 1.442695
    %v1858 = vpow.pop %v1857
    %1859 = vadd.xlane.f32.xlu0 %v1828
    %v1860 = vpop.xlane.xlu0 %1859
    %1861 = vadd.xlane.f32.xlu0 %v1830
    %v1862 = vpop.xlane.xlu0 %1861
    %1863 = vadd.xlane.f32.xlu0 %v1832
    %v1864 = vpop.xlane.xlu0 %1863
    %1865 = vadd.xlane.f32.xlu0 %v1834
    %v1866 = vpop.xlane.xlu0 %1865
    %1867 = vadd.xlane.f32.xlu0 %v1836
    %v1868 = vpop.xlane.xlu0 %1867
    %1869 = vadd.xlane.f32.xlu0 %v1838
    %v1870 = vpop.xlane.xlu0 %1869
    %1871 = vadd.xlane.f32.xlu0 %v1840
    %v1872 = vpop.xlane.xlu0 %1871
    %1873 = vadd.xlane.f32.xlu0 %v1842
    %v1874 = vpop.xlane.xlu0 %1873
    %1875 = vadd.xlane.f32.xlu0 %v1844
    %v1876 = vpop.xlane.xlu0 %1875
    %1877 = vadd.xlane.f32.xlu0 %v1846
    %v1878 = vpop.xlane.xlu0 %1877
    %1879 = vadd.xlane.f32.xlu0 %v1848
    %v1880 = vpop.xlane.xlu0 %1879
    %1881 = vadd.xlane.f32.xlu0 %v1850
    %v1882 = vpop.xlane.xlu0 %1881
    %1883 = vadd.xlane.f32.xlu0 %v1852
    %v1884 = vpop.xlane.xlu0 %1883
    %1885 = vadd.xlane.f32.xlu0 %v1854
    %v1886 = vpop.xlane.xlu0 %1885
    %1887 = vadd.xlane.f32.xlu0 %v1856
    %v1888 = vpop.xlane.xlu0 %1887
    %1889 = vadd.xlane.f32.xlu0 %v1858
    %v1890 = vpop.xlane.xlu0 %1889
    %v1891 = vrcp.pop %v1860
    %v1892 = vrcp.pop %v1862
    %v1893 = vrcp.pop %v1864
    %v1894 = vrcp.pop %v1866
    %v1895 = vrcp.pop %v1868
    %v1896 = vrcp.pop %v1870
    %v1897 = vrcp.pop %v1872
    %v1898 = vrcp.pop %v1874
    %v1899 = vrcp.pop %v1876
    %v1900 = vrcp.pop %v1878
    %v1901 = vrcp.pop %v1880
    %v1902 = vrcp.pop %v1882
    %v1903 = vrcp.pop %v1884
    %v1904 = vrcp.pop %v1886
    %v1905 = vrcp.pop %v1888
    %v1906 = vrcp.pop %v1890
    %v1907 = vmul.f32 %v1828, %v1891
    %v1908 = vmul.f32 %v1830, %v1892
    %v1909 = vmul.f32 %v1832, %v1893
    %v1910 = vmul.f32 %v1834, %v1894
    %v1911 = vmul.f32 %v1836, %v1895
    %v1912 = vmul.f32 %v1838, %v1896
    %v1913 = vmul.f32 %v1840, %v1897
    %v1914 = vmul.f32 %v1842, %v1898
    %v1915 = vmul.f32 %v1844, %v1899
    %v1916 = vmul.f32 %v1846, %v1900
    %v1917 = vmul.f32 %v1848, %v1901
    %v1918 = vmul.f32 %v1850, %v1902
    %v1919 = vmul.f32 %v1852, %v1903
    %v1920 = vmul.f32 %v1854, %v1904
    %v1921 = vmul.f32 %v1856, %v1905
    %v1922 = vmul.f32 %v1858, %v1906
    %1923 = vmatprep.subr.mxu0 0.0
    %1924 = vmatpush1.msra.mxu0 %v193
    %1925 = vmatprep.subr.mxu0 0.0
    %1926 = vmatpush1.msra.mxu0 %v199
    %1927 = vmatprep.subr.mxu0 0.0
    %1928 = vmatpush1.msra.mxu0 %v205
    %1929 = vmatprep.subr.mxu0 0.0
    %1930 = vmatpush1.msra.mxu0 %v211
    %1931 = vmatprep.subr.mxu0 0.0
    %1932 = vmatpush1.msra.mxu0 %v217
    %1933 = vmatprep.subr.mxu0 0.0
    %1934 = vmatpush1.msra.mxu0 %v223
    %1935 = vmatprep.subr.mxu0 0.0
    %1936 = vmatpush1.msra.mxu0 %v229
    %1937 = vmatprep.subr.mxu0 0.0
    %1938 = vmatpush1.msra.mxu0 %v235
    %1939 = vmatprep.subr.mxu0 0.0
    %1940 = vmatpush1.msra.mxu0 %v241
    %1941 = vmatprep.subr.mxu0 0.0
    %1942 = vmatpush1.msra.mxu0 %v247
    %1943 = vmatprep.subr.mxu0 0.0
    %1944 = vmatpush1.msra.mxu0 %v253
    %1945 = vmatprep.subr.mxu0 0.0
    %1946 = vmatpush1.msra.mxu0 %v259
    %1947 = vmatprep.subr.mxu0 0.0
    %1948 = vmatpush1.msra.mxu0 %v265
    %1949 = vmatprep.subr.mxu0 0.0
    %1950 = vmatpush1.msra.mxu0 %v271
    %1951 = vmatprep.subr.mxu0 0.0
    %1952 = vmatpush1.msra.mxu0 %v277
    %1953 = vmatprep.subr.mxu0 0.0
    %1954 = vmatpush1.msra.mxu0 %v283
    %1955 = vmatprep.subr.mxu0 0.0
    %1956 = vmatpush1.msra.mxu0 0.0
    %1957 = vmatprep.subr.mxu0 0.0
    %1958 = vmatpush1.msra.mxu0 0.0
    %1959 = vmatprep.subr.mxu0 0.0
    %1960 = vmatpush1.msra.mxu0 0.0
    %1961 = vmatprep.subr.mxu0 0.0
    %1962 = vmatpush1.msra.mxu0 0.0
    %1963 = vmatprep.subr.mxu0 0.0
    %1964 = vmatpush1.msra.mxu0 0.0
    %1965 = vmatprep.subr.mxu0 0.0
    %1966 = vmatpush1.msra.mxu0 0.0
    %1967 = vmatprep.subr.mxu0 0.0
    %1968 = vmatpush1.msra.mxu0 0.0
    %1969 = vmatprep.subr.mxu0 0.0
    %1970 = vmatpush1.msra.mxu0 0.0
    %1971 = vmatprep.subr.mxu0 0.0
    %1972 = vmatpush1.msra.mxu0 0.0
    %1973 = vmatprep.subr.mxu0 0.0
    %1974 = vmatpush1.msra.mxu0 0.0
    %1975 = vmatprep.subr.mxu0 0.0
    %1976 = vmatpush1.msra.mxu0 0.0
    %1977 = vmatprep.subr.mxu0 0.0
    %1978 = vmatpush1.msra.mxu0 0.0
    %1979 = vmatprep.subr.mxu0 0.0
    %1980 = vmatpush1.msra.mxu0 0.0
    %1981 = vmatprep.subr.mxu0 0.0
    %1982 = vmatpush1.msra.mxu0 0.0
    %1983 = vmatprep.subr.mxu0 0.0
    %1984 = vmatpush1.msra.mxu0 0.0
    %1985 = vmatprep.subr.mxu0 0.0
    %1986 = vmatpush1.msra.mxu0 0.0
    %1987 = vmatprep.mubr.f32.mxu0 0.0
    %1988 = vmatmul.mubr.f32.gmra.mrb[0].mxu0 %v1907
    %v1989 = vpop.f32.mrb[0].mxu0
    %v1990 = vadd.f32 0.0, %v1989
    %v1991 = vpop.f32.mrb[0].mxu0
    %1992 = vmatprep.mubr.f32.mxu0 0.0
    %1993 = vmatmul.mubr.f32.gmra.mrb[0].mxu0 %v1908
    %v1994 = vpop.f32.mrb[0].mxu0
    %v1995 = vadd.f32 0.0, %v1994
    %v1996 = vpop.f32.mrb[0].mxu0
    %1997 = vmatprep.mubr.f32.mxu0 0.0
    %1998 = vmatmul.mubr.f32.gmra.mrb[0].mxu0 %v1909
    %v1999 = vpop.f32.mrb[0].mxu0
    %v2000 = vadd.f32 0.0, %v1999
    %v2001 = vpop.f32.mrb[0].mxu0
    %2002 = vmatprep.mubr.f32.mxu0 0.0
    %2003 = vmatmul.mubr.f32.gmra.mrb[0].mxu0 %v1910
    %v2004 = vpop.f32.mrb[0].mxu0
    %v2005 = vadd.f32 0.0, %v2004
    %v2006 = vpop.f32.mrb[0].mxu0
    %2007 = vmatprep.mubr.f32.mxu0 0.0
    %2008 = vmatmul.mubr.f32.gmra.mrb[0].mxu0 %v1911
    %v2009 = vpop.f32.mrb[0].mxu0
    %v2010 = vadd.f32 0.0, %v2009
    %v2011 = vpop.f32.mrb[0].mxu0
    %2012 = vmatprep.mubr.f32.mxu0 0.0
    %2013 = vmatmul.mubr.f32.gmra.mrb[0].mxu0 %v1912
    %v2014 = vpop.f32.mrb[0].mxu0
    %v2015 = vadd.f32 0.0, %v2014
    %v2016 = vpop.f32.mrb[0].mxu0
    %2017 = vmatprep.mubr.f32.mxu0 0.0
    %2018 = vmatmul.mubr.f32.gmra.mrb[0].mxu0 %v1913
    %v2019 = vpop.f32.mrb[0].mxu0
    %v2020 = vadd.f32 0.0, %v2019
    %v2021 = vpop.f32.mrb[0].mxu0
    %2022 = vmatprep.mubr.f32.mxu0 0.0
    %2023 = vmatmul.mubr.f32.gmra.mrb[0].mxu0 %v1914
    %v2024 = vpop.f32.mrb[0].mxu0
    %v2025 = vadd.f32 0.0, %v2024
    %v2026 = vpop.f32.mrb[0].mxu0
    %2027 = vmatprep.mubr.f32.mxu0 0.0
    %2028 = vmatmul.mubr.f32.gmra.mrb[0].mxu0 %v1915
    %v2029 = vpop.f32.mrb[0].mxu0
    %v2030 = vadd.f32 0.0, %v2029
    %v2031 = vpop.f32.mrb[0].mxu0
    %2032 = vmatprep.mubr.f32.mxu0 0.0
    %2033 = vmatmul.mubr.f32.gmra.mrb[0].mxu0 %v1916
    %v2034 = vpop.f32.mrb[0].mxu0
    %v2035 = vadd.f32 0.0, %v2034
    %v2036 = vpop.f32.mrb[0].mxu0
    %2037 = vmatprep.mubr.f32.mxu0 0.0
    %2038 = vmatmul.mubr.f32.gmra.mrb[0].mxu0 %v1917
    %v2039 = vpop.f32.mrb[0].mxu0
    %v2040 = vadd.f32 0.0, %v2039
    %v2041 = vpop.f32.mrb[0].mxu0
    %2042 = vmatprep.mubr.f32.mxu0 0.0
    %2043 = vmatmul.mubr.f32.gmra.mrb[0].mxu0 %v1918
    %v2044 = vpop.f32.mrb[0].mxu0
    %v2045 = vadd.f32 0.0, %v2044
    %v2046 = vpop.f32.mrb[0].mxu0
    %2047 = vmatprep.mubr.f32.mxu0 0.0
    %2048 = vmatmul.mubr.f32.gmra.mrb[0].mxu0 %v1919
    %v2049 = vpop.f32.mrb[0].mxu0
    %v2050 = vadd.f32 0.0, %v2049
    %v2051 = vpop.f32.mrb[0].mxu0
    %2052 = vmatprep.mubr.f32.mxu0 0.0
    %2053 = vmatmul.mubr.f32.gmra.mrb[0].mxu0 %v1920
    %v2054 = vpop.f32.mrb[0].mxu0
    %v2055 = vadd.f32 0.0, %v2054
    %v2056 = vpop.f32.mrb[0].mxu0
    %2057 = vmatprep.mubr.f32.mxu0 0.0
    %2058 = vmatmul.mubr.f32.gmra.mrb[0].mxu0 %v1921
    %v2059 = vpop.f32.mrb[0].mxu0
    %v2060 = vadd.f32 0.0, %v2059
    %v2061 = vpop.f32.mrb[0].mxu0
    %2062 = vmatprep.mubr.f32.mxu0 0.0
    %2063 = vmatmul.mubr.f32.gmra.mrb[0].mxu0 %v1922
    %v2064 = vpop.f32.mrb[0].mxu0
    %v2065 = vadd.f32 0.0, %v2064
    %v2066 = vpop.f32.mrb[0].mxu0
    %2067 = vdwg.mxu0
    %v2068 = vadd.f32 %v1428, %v1990
    %v2069 = vadd.f32 %v1433, %v1995
    %v2070 = vadd.f32 %v1438, %v2000
    %v2071 = vadd.f32 %v1443, %v2005
    %v2072 = vadd.f32 %v1448, %v2010
    %v2073 = vadd.f32 %v1453, %v2015
    %v2074 = vadd.f32 %v1458, %v2020
    %v2075 = vadd.f32 %v1463, %v2025
    %v2076 = vadd.f32 %v1468, %v2030
    %v2077 = vadd.f32 %v1473, %v2035
    %v2078 = vadd.f32 %v1478, %v2040
    %v2079 = vadd.f32 %v1483, %v2045
    %v2080 = vadd.f32 %v1488, %v2050
    %v2081 = vadd.f32 %v1493, %v2055
    %v2082 = vadd.f32 %v1498, %v2060
    %v2083 = vadd.f32 %v1503, %v2065
    %2084 = vrot.lane.b32.xlu0 %v191, 104
    %v2085 = vpop.permute.xlu0 %2084
    %2086 = vrot.lane.b32.xlu0 %v197, 104
    %v2087 = vpop.permute.xlu0 %2086
    %2088 = vrot.lane.b32.xlu0 %v203, 104
    %v2089 = vpop.permute.xlu0 %2088
    %2090 = vrot.lane.b32.xlu0 %v209, 104
    %v2091 = vpop.permute.xlu0 %2090
    %2092 = vrot.lane.b32.xlu0 %v215, 104
    %v2093 = vpop.permute.xlu0 %2092
    %2094 = vrot.lane.b32.xlu0 %v221, 104
    %v2095 = vpop.permute.xlu0 %2094
    %2096 = vrot.lane.b32.xlu0 %v227, 104
    %v2097 = vpop.permute.xlu0 %2096
    %2098 = vrot.lane.b32.xlu0 %v233, 104
    %v2099 = vpop.permute.xlu0 %2098
    %2100 = vrot.lane.b32.xlu0 %v239, 104
    %v2101 = vpop.permute.xlu0 %2100
    %2102 = vrot.lane.b32.xlu0 %v245, 104
    %v2103 = vpop.permute.xlu0 %2102
    %2104 = vrot.lane.b32.xlu0 %v251, 104
    %v2105 = vpop.permute.xlu0 %2104
    %2106 = vrot.lane.b32.xlu0 %v257, 104
    %v2107 = vpop.permute.xlu0 %2106
    %2108 = vrot.lane.b32.xlu0 %v263, 104
    %v2109 = vpop.permute.xlu0 %2108
    %2110 = vrot.lane.b32.xlu0 %v269, 104
    %v2111 = vpop.permute.xlu0 %2110
    %2112 = vrot.lane.b32.xlu0 %v275, 104
    %v2113 = vpop.permute.xlu0 %2112
    %2114 = vrot.lane.b32.xlu0 %v281, 104
    %v2115 = vpop.permute.xlu0 %2114
    %2116 = vrot.lane.b32.xlu0 %v191, 72
    %v2117 = vpop.permute.xlu0 %2116
    %2118 = vrot.lane.b32.xlu0 %v197, 72
    %v2119 = vpop.permute.xlu0 %2118
    %2120 = vrot.lane.b32.xlu0 %v203, 72
    %v2121 = vpop.permute.xlu0 %2120
    %2122 = vrot.lane.b32.xlu0 %v209, 72
    %v2123 = vpop.permute.xlu0 %2122
    %2124 = vrot.lane.b32.xlu0 %v215, 72
    %v2125 = vpop.permute.xlu0 %2124
    %2126 = vrot.lane.b32.xlu0 %v221, 72
    %v2127 = vpop.permute.xlu0 %2126
    %2128 = vrot.lane.b32.xlu0 %v227, 72
    %v2129 = vpop.permute.xlu0 %2128
    %2130 = vrot.lane.b32.xlu0 %v233, 72
    %v2131 = vpop.permute.xlu0 %2130
    %2132 = vrot.lane.b32.xlu0 %v239, 72
    %v2133 = vpop.permute.xlu0 %2132
    %2134 = vrot.lane.b32.xlu0 %v245, 72
    %v2135 = vpop.permute.xlu0 %2134
    %2136 = vrot.lane.b32.xlu0 %v251, 72
    %v2137 = vpop.permute.xlu0 %2136
    %2138 = vrot.lane.b32.xlu0 %v257, 72
    %v2139 = vpop.permute.xlu0 %2138
    %2140 = vrot.lane.b32.xlu0 %v263, 72
    %v2141 = vpop.permute.xlu0 %2140
    %2142 = vrot.lane.b32.xlu0 %v269, 72
    %v2143 = vpop.permute.xlu0 %2142
    %2144 = vrot.lane.b32.xlu0 %v275, 72
    %v2145 = vpop.permute.xlu0 %2144
    %2146 = vrot.lane.b32.xlu0 %v281, 72
    %v2147 = vpop.permute.xlu0 %2146
    %v2148 = vsel %vm349, %v2085, 0
    %v2150 = vsel %vm349, %v2087, 0
    %v2152 = vsel %vm349, %v2089, 0
    %v2154 = vsel %vm349, %v2091, 0
    %v2156 = vsel %vm349, %v2093, 0
    %v2158 = vsel %vm349, %v2095, 0
    %v2160 = vsel %vm349, %v2097, 0
    %v2162 = vsel %vm349, %v2099, 0
    %v2164 = vsel %vm349, %v2101, 0
    %v2166 = vsel %vm349, %v2103, 0
    %v2168 = vsel %vm349, %v2105, 0
    %v2170 = vsel %vm349, %v2107, 0
    %v2172 = vsel %vm349, %v2109, 0
    %v2174 = vsel %vm349, %v2111, 0
    %v2176 = vsel %vm349, %v2113, 0
    %v2178 = vsel %vm349, %v2115, 0
    %v2180 = vsel %vm349, %v2117, 0
    %v2182 = vsel %vm349, %v2119, 0
    %v2184 = vsel %vm349, %v2121, 0
    %v2186 = vsel %vm349, %v2123, 0
    %v2188 = vsel %vm349, %v2125, 0
    %v2190 = vsel %vm349, %v2127, 0
    %v2192 = vsel %vm349, %v2129, 0
    %v2194 = vsel %vm349, %v2131, 0
    %v2196 = vsel %vm349, %v2133, 0
    %v2198 = vsel %vm349, %v2135, 0
    %v2200 = vsel %vm349, %v2137, 0
    %v2202 = vsel %vm349, %v2139, 0
    %v2204 = vsel %vm349, %v2141, 0
    %v2206 = vsel %vm349, %v2143, 0
    %v2208 = vsel %vm349, %v2145, 0
    %v2210 = vsel %vm349, %v2147, 0
    %2212 = vmatprep.subr.mxu0 0.0
    %2213 = vmatpush1.xpose.msra.mxu0 %v2180
    %2214 = vmatprep.subr.mxu0 0.0
    %2215 = vmatpush1.xpose.msra.mxu0 %v2182
    %2216 = vmatprep.subr.mxu0 0.0
    %2217 = vmatpush1.xpose.msra.mxu0 %v2184
    %2218 = vmatprep.subr.mxu0 0.0
    %2219 = vmatpush1.xpose.msra.mxu0 %v2186
    %2220 = vmatprep.subr.mxu0 0.0
    %2221 = vmatpush1.xpose.msra.mxu0 %v2188
    %2222 = vmatprep.subr.mxu0 0.0
    %2223 = vmatpush1.xpose.msra.mxu0 %v2190
    %2224 = vmatprep.subr.mxu0 0.0
    %2225 = vmatpush1.xpose.msra.mxu0 %v2192
    %2226 = vmatprep.subr.mxu0 0.0
    %2227 = vmatpush1.xpose.msra.mxu0 %v2194
    %2228 = vmatprep.subr.mxu0 0.0
    %2229 = vmatpush1.xpose.msra.mxu0 %v2196
    %2230 = vmatprep.subr.mxu0 0.0
    %2231 = vmatpush1.xpose.msra.mxu0 %v2198
    %2232 = vmatprep.subr.mxu0 0.0
    %2233 = vmatpush1.xpose.msra.mxu0 %v2200
    %2234 = vmatprep.subr.mxu0 0.0
    %2235 = vmatpush1.xpose.msra.mxu0 %v2202
    %2236 = vmatprep.subr.mxu0 0.0
    %2237 = vmatpush1.xpose.msra.mxu0 %v2204
    %2238 = vmatprep.subr.mxu0 0.0
    %2239 = vmatpush1.xpose.msra.mxu0 %v2206
    %2240 = vmatprep.subr.mxu0 0.0
    %2241 = vmatpush1.xpose.msra.mxu0 %v2208
    %2242 = vmatprep.subr.mxu0 0.0
    %2243 = vmatpush1.xpose.msra.mxu0 %v2210
    %2244 = vmatprep.subr.mxu0 0.0
    %2245 = vmatpush1.xpose.msra.mxu0 0.0
    %2246 = vmatprep.subr.mxu0 0.0
    %2247 = vmatpush1.xpose.msra.mxu0 0.0
    %2248 = vmatprep.subr.mxu0 0.0
    %2249 = vmatpush1.xpose.msra.mxu0 0.0
    %2250 = vmatprep.subr.mxu0 0.0
    %2251 = vmatpush1.xpose.msra.mxu0 0.0
    %2252 = vmatprep.subr.mxu0 0.0
    %2253 = vmatpush1.xpose.msra.mxu0 0.0
    %2254 = vmatprep.subr.mxu0 0.0
    %2255 = vmatpush1.xpose.msra.mxu0 0.0
    %2256 = vmatprep.subr.mxu0 0.0
    %2257 = vmatpush1.xpose.msra.mxu0 0.0
    %2258 = vmatprep.subr.mxu0 0.0
    %2259 = vmatpush1.xpose.msra.mxu0 0.0
    %2260 = vmatprep.subr.mxu0 0.0
    %2261 = vmatpush1.xpose.msra.mxu0 0.0
    %2262 = vmatprep.subr.mxu0 0.0
    %2263 = vmatpush1.xpose.msra.mxu0 0.0
    %2264 = vmatprep.subr.mxu0 0.0
    %2265 = vmatpush1.xpose.msra.mxu0 0.0
    %2266 = vmatprep.subr.mxu0 0.0
    %2267 = vmatpush1.xpose.msra.mxu0 0.0
    %2268 = vmatprep.subr.mxu0 0.0
    %2269 = vmatpush1.xpose.msra.mxu0 0.0
    %2270 = vmatprep.subr.mxu0 0.0
    %2271 = vmatpush1.xpose.msra.mxu0 0.0
    %2272 = vmatprep.subr.mxu0 0.0
    %2273 = vmatpush1.xpose.msra.mxu0 0.0
    %2274 = vmatprep.subr.mxu0 0.0
    %2275 = vmatpush1.xpose.msra.mxu0 0.0
    %2276 = vmatprep.mubr.f32.mxu0 0.0
    %2277 = vmatmul.mubr.f32.gmra.mrb[0].mxu0 %v2148
    %v2278 = vpop.f32.mrb[0].mxu0
    %v2279 = vadd.f32 %v285, %v2278
    %v2280 = vpop.f32.mrb[0].mxu0
    %2281 = vmatprep.mubr.f32.mxu0 0.0
    %2282 = vmatmul.mubr.f32.gmra.mrb[0].mxu0 %v2150
    %v2283 = vpop.f32.mrb[0].mxu0
    %v2284 = vadd.f32 %v286, %v2283
    %v2285 = vpop.f32.mrb[0].mxu0
    %2286 = vmatprep.mubr.f32.mxu0 0.0
    %2287 = vmatmul.mubr.f32.gmra.mrb[0].mxu0 %v2152
    %v2288 = vpop.f32.mrb[0].mxu0
    %v2289 = vadd.f32 %v287, %v2288
    %v2290 = vpop.f32.mrb[0].mxu0
    %2291 = vmatprep.mubr.f32.mxu0 0.0
    %2292 = vmatmul.mubr.f32.gmra.mrb[0].mxu0 %v2154
    %v2293 = vpop.f32.mrb[0].mxu0
    %v2294 = vadd.f32 %v288, %v2293
    %v2295 = vpop.f32.mrb[0].mxu0
    %2296 = vmatprep.mubr.f32.mxu0 0.0
    %2297 = vmatmul.mubr.f32.gmra.mrb[0].mxu0 %v2156
    %v2298 = vpop.f32.mrb[0].mxu0
    %v2299 = vadd.f32 %v289, %v2298
    %v2300 = vpop.f32.mrb[0].mxu0
    %2301 = vmatprep.mubr.f32.mxu0 0.0
    %2302 = vmatmul.mubr.f32.gmra.mrb[0].mxu0 %v2158
    %v2303 = vpop.f32.mrb[0].mxu0
    %v2304 = vadd.f32 %v290, %v2303
    %v2305 = vpop.f32.mrb[0].mxu0
    %2306 = vmatprep.mubr.f32.mxu0 0.0
    %2307 = vmatmul.mubr.f32.gmra.mrb[0].mxu0 %v2160
    %v2308 = vpop.f32.mrb[0].mxu0
    %v2309 = vadd.f32 %v291, %v2308
    %v2310 = vpop.f32.mrb[0].mxu0
    %2311 = vmatprep.mubr.f32.mxu0 0.0
    %2312 = vmatmul.mubr.f32.gmra.mrb[0].mxu0 %v2162
    %v2313 = vpop.f32.mrb[0].mxu0
    %v2314 = vadd.f32 %v292, %v2313
    %v2315 = vpop.f32.mrb[0].mxu0
    %2316 = vmatprep.mubr.f32.mxu0 0.0
    %2317 = vmatmul.mubr.f32.gmra.mrb[0].mxu0 %v2164
    %v2318 = vpop.f32.mrb[0].mxu0
    %v2319 = vadd.f32 %v293, %v2318
    %v2320 = vpop.f32.mrb[0].mxu0
    %2321 = vmatprep.mubr.f32.mxu0 0.0
    %2322 = vmatmul.mubr.f32.gmra.mrb[0].mxu0 %v2166
    %v2323 = vpop.f32.mrb[0].mxu0
    %v2324 = vadd.f32 %v294, %v2323
    %v2325 = vpop.f32.mrb[0].mxu0
    %2326 = vmatprep.mubr.f32.mxu0 0.0
    %2327 = vmatmul.mubr.f32.gmra.mrb[0].mxu0 %v2168
    %v2328 = vpop.f32.mrb[0].mxu0
    %v2329 = vadd.f32 %v295, %v2328
    %v2330 = vpop.f32.mrb[0].mxu0
    %2331 = vmatprep.mubr.f32.mxu0 0.0
    %2332 = vmatmul.mubr.f32.gmra.mrb[0].mxu0 %v2170
    %v2333 = vpop.f32.mrb[0].mxu0
    %v2334 = vadd.f32 %v296, %v2333
    %v2335 = vpop.f32.mrb[0].mxu0
    %2336 = vmatprep.mubr.f32.mxu0 0.0
    %2337 = vmatmul.mubr.f32.gmra.mrb[0].mxu0 %v2172
    %v2338 = vpop.f32.mrb[0].mxu0
    %v2339 = vadd.f32 %v297, %v2338
    %v2340 = vpop.f32.mrb[0].mxu0
    %2341 = vmatprep.mubr.f32.mxu0 0.0
    %2342 = vmatmul.mubr.f32.gmra.mrb[0].mxu0 %v2174
    %v2343 = vpop.f32.mrb[0].mxu0
    %v2344 = vadd.f32 %v298, %v2343
    %v2345 = vpop.f32.mrb[0].mxu0
    %2346 = vmatprep.mubr.f32.mxu0 0.0
    %2347 = vmatmul.mubr.f32.gmra.mrb[0].mxu0 %v2176
    %v2348 = vpop.f32.mrb[0].mxu0
    %v2349 = vadd.f32 %v299, %v2348
    %v2350 = vpop.f32.mrb[0].mxu0
    %2351 = vmatprep.mubr.f32.mxu0 0.0
    %2352 = vmatmul.mubr.f32.gmra.mrb[0].mxu0 %v2178
    %v2353 = vpop.f32.mrb[0].mxu0
    %v2354 = vadd.f32 %v300, %v2353
    %v2355 = vpop.f32.mrb[0].mxu0
    %2356 = vdwg.mxu0
    %2357 = vmax.xlane.f32.xlu0 %v2279
    %v2358 = vpop.xlane.xlu0 %2357
    %2359 = vmax.xlane.f32.xlu0 %v2284
    %v2360 = vpop.xlane.xlu0 %2359
    %2361 = vmax.xlane.f32.xlu0 %v2289
    %v2362 = vpop.xlane.xlu0 %2361
    %2363 = vmax.xlane.f32.xlu0 %v2294
    %v2364 = vpop.xlane.xlu0 %2363
    %2365 = vmax.xlane.f32.xlu0 %v2299
    %v2366 = vpop.xlane.xlu0 %2365
    %2367 = vmax.xlane.f32.xlu0 %v2304
    %v2368 = vpop.xlane.xlu0 %2367
    %2369 = vmax.xlane.f32.xlu0 %v2309
    %v2370 = vpop.xlane.xlu0 %2369
    %2371 = vmax.xlane.f32.xlu0 %v2314
    %v2372 = vpop.xlane.xlu0 %2371
    %2373 = vmax.xlane.f32.xlu0 %v2319
    %v2374 = vpop.xlane.xlu0 %2373
    %2375 = vmax.xlane.f32.xlu0 %v2324
    %v2376 = vpop.xlane.xlu0 %2375
    %2377 = vmax.xlane.f32.xlu0 %v2329
    %v2378 = vpop.xlane.xlu0 %2377
    %2379 = vmax.xlane.f32.xlu0 %v2334
    %v2380 = vpop.xlane.xlu0 %2379
    %2381 = vmax.xlane.f32.xlu0 %v2339
    %v2382 = vpop.xlane.xlu0 %2381
    %2383 = vmax.xlane.f32.xlu0 %v2344
    %v2384 = vpop.xlane.xlu0 %2383
    %2385 = vmax.xlane.f32.xlu0 %v2349
    %v2386 = vpop.xlane.xlu0 %2385
    %2387 = vmax.xlane.f32.xlu0 %v2354
    %v2388 = vpop.xlane.xlu0 %2387
    %v2389 = vsub.f32 %v2279, %v2358
    %v2390 = vsub.f32 %v2284, %v2360
    %v2391 = vsub.f32 %v2289, %v2362
    %v2392 = vsub.f32 %v2294, %v2364
    %v2393 = vsub.f32 %v2299, %v2366
    %v2394 = vsub.f32 %v2304, %v2368
    %v2395 = vsub.f32 %v2309, %v2370
    %v2396 = vsub.f32 %v2314, %v2372
    %v2397 = vsub.f32 %v2319, %v2374
    %v2398 = vsub.f32 %v2324, %v2376
    %v2399 = vsub.f32 %v2329, %v2378
    %v2400 = vsub.f32 %v2334, %v2380
    %v2401 = vsub.f32 %v2339, %v2382
    %v2402 = vsub.f32 %v2344, %v2384
    %v2403 = vsub.f32 %v2349, %v2386
    %v2404 = vsub.f32 %v2354, %v2388
    %v2405 = vmul.f32 %v2389, 1.442695
    %v2406 = vpow.pop %v2405
    %v2407 = vmul.f32 %v2390, 1.442695
    %v2408 = vpow.pop %v2407
    %v2409 = vmul.f32 %v2391, 1.442695
    %v2410 = vpow.pop %v2409
    %v2411 = vmul.f32 %v2392, 1.442695
    %v2412 = vpow.pop %v2411
    %v2413 = vmul.f32 %v2393, 1.442695
    %v2414 = vpow.pop %v2413
    %v2415 = vmul.f32 %v2394, 1.442695
    %v2416 = vpow.pop %v2415
    %v2417 = vmul.f32 %v2395, 1.442695
    %v2418 = vpow.pop %v2417
    %v2419 = vmul.f32 %v2396, 1.442695
    %v2420 = vpow.pop %v2419
    %v2421 = vmul.f32 %v2397, 1.442695
    %v2422 = vpow.pop %v2421
    %v2423 = vmul.f32 %v2398, 1.442695
    %v2424 = vpow.pop %v2423
    %v2425 = vmul.f32 %v2399, 1.442695
    %v2426 = vpow.pop %v2425
    %v2427 = vmul.f32 %v2400, 1.442695
    %v2428 = vpow.pop %v2427
    %v2429 = vmul.f32 %v2401, 1.442695
    %v2430 = vpow.pop %v2429
    %v2431 = vmul.f32 %v2402, 1.442695
    %v2432 = vpow.pop %v2431
    %v2433 = vmul.f32 %v2403, 1.442695
    %v2434 = vpow.pop %v2433
    %v2435 = vmul.f32 %v2404, 1.442695
    %v2436 = vpow.pop %v2435
    %2437 = vadd.xlane.f32.xlu0 %v2406
    %v2438 = vpop.xlane.xlu0 %2437
    %2439 = vadd.xlane.f32.xlu0 %v2408
    %v2440 = vpop.xlane.xlu0 %2439
    %2441 = vadd.xlane.f32.xlu0 %v2410
    %v2442 = vpop.xlane.xlu0 %2441
    %2443 = vadd.xlane.f32.xlu0 %v2412
    %v2444 = vpop.xlane.xlu0 %2443
    %2445 = vadd.xlane.f32.xlu0 %v2414
    %v2446 = vpop.xlane.xlu0 %2445
    %2447 = vadd.xlane.f32.xlu0 %v2416
    %v2448 = vpop.xlane.xlu0 %2447
    %2449 = vadd.xlane.f32.xlu0 %v2418
    %v2450 = vpop.xlane.xlu0 %2449
    %2451 = vadd.xlane.f32.xlu0 %v2420
    %v2452 = vpop.xlane.xlu0 %2451
    %2453 = vadd.xlane.f32.xlu0 %v2422
    %v2454 = vpop.xlane.xlu0 %2453
    %2455 = vadd.xlane.f32.xlu0 %v2424
    %v2456 = vpop.xlane.xlu0 %2455
    %2457 = vadd.xlane.f32.xlu0 %v2426
    %v2458 = vpop.xlane.xlu0 %2457
    %2459 = vadd.xlane.f32.xlu0 %v2428
    %v2460 = vpop.xlane.xlu0 %2459
    %2461 = vadd.xlane.f32.xlu0 %v2430
    %v2462 = vpop.xlane.xlu0 %2461
    %2463 = vadd.xlane.f32.xlu0 %v2432
    %v2464 = vpop.xlane.xlu0 %2463
    %2465 = vadd.xlane.f32.xlu0 %v2434
    %v2466 = vpop.xlane.xlu0 %2465
    %2467 = vadd.xlane.f32.xlu0 %v2436
    %v2468 = vpop.xlane.xlu0 %2467
    %v2469 = vrcp.pop %v2438
    %v2470 = vrcp.pop %v2440
    %v2471 = vrcp.pop %v2442
    %v2472 = vrcp.pop %v2444
    %v2473 = vrcp.pop %v2446
    %v2474 = vrcp.pop %v2448
    %v2475 = vrcp.pop %v2450
    %v2476 = vrcp.pop %v2452
    %v2477 = vrcp.pop %v2454
    %v2478 = vrcp.pop %v2456
    %v2479 = vrcp.pop %v2458
    %v2480 = vrcp.pop %v2460
    %v2481 = vrcp.pop %v2462
    %v2482 = vrcp.pop %v2464
    %v2483 = vrcp.pop %v2466
    %v2484 = vrcp.pop %v2468
    %v2485 = vmul.f32 %v2406, %v2469
    %v2486 = vmul.f32 %v2408, %v2470
    %v2487 = vmul.f32 %v2410, %v2471
    %v2488 = vmul.f32 %v2412, %v2472
    %v2489 = vmul.f32 %v2414, %v2473
    %v2490 = vmul.f32 %v2416, %v2474
    %v2491 = vmul.f32 %v2418, %v2475
    %v2492 = vmul.f32 %v2420, %v2476
    %v2493 = vmul.f32 %v2422, %v2477
    %v2494 = vmul.f32 %v2424, %v2478
    %v2495 = vmul.f32 %v2426, %v2479
    %v2496 = vmul.f32 %v2428, %v2480
    %v2497 = vmul.f32 %v2430, %v2481
    %v2498 = vmul.f32 %v2432, %v2482
    %v2499 = vmul.f32 %v2434, %v2483
    %v2500 = vmul.f32 %v2436, %v2484
    %2517 = vrot.lane.b32.xlu0 %v193, 96
    %v2518 = vpop.permute.xlu0 %2517
    %2519 = vrot.lane.b32.xlu0 %v199, 96
    %v2520 = vpop.permute.xlu0 %2519
    %2521 = vrot.lane.b32.xlu0 %v205, 96
    %v2522 = vpop.permute.xlu0 %2521
    %2523 = vrot.lane.b32.xlu0 %v211, 96
    %v2524 = vpop.permute.xlu0 %2523
    %2525 = vrot.lane.b32.xlu0 %v217, 96
    %v2526 = vpop.permute.xlu0 %2525
    %2527 = vrot.lane.b32.xlu0 %v223, 96
    %v2528 = vpop.permute.xlu0 %2527
    %2529 = vrot.lane.b32.xlu0 %v229, 96
    %v2530 = vpop.permute.xlu0 %2529
    %2531 = vrot.lane.b32.xlu0 %v235, 96
    %v2532 = vpop.permute.xlu0 %2531
    %2533 = vrot.lane.b32.xlu0 %v241, 96
    %v2534 = vpop.permute.xlu0 %2533
    %2535 = vrot.lane.b32.xlu0 %v247, 96
    %v2536 = vpop.permute.xlu0 %2535
    %2537 = vrot.lane.b32.xlu0 %v253, 96
    %v2538 = vpop.permute.xlu0 %2537
    %2539 = vrot.lane.b32.xlu0 %v259, 96
    %v2540 = vpop.permute.xlu0 %2539
    %2541 = vrot.lane.b32.xlu0 %v265, 96
    %v2542 = vpop.permute.xlu0 %2541
    %2543 = vrot.lane.b32.xlu0 %v271, 96
    %v2544 = vpop.permute.xlu0 %2543
    %2545 = vrot.lane.b32.xlu0 %v277, 96
    %v2546 = vpop.permute.xlu0 %2545
    %2547 = vrot.lane.b32.xlu0 %v283, 96
    %v2548 = vpop.permute.xlu0 %2547
    %2565 = vmatprep.subr.mxu0 0.0
    %2566 = vmatpush1.msra.mxu0 %v2518
    %2567 = vmatprep.subr.mxu0 0.0
    %2568 = vmatpush1.msra.mxu0 %v2520
    %2569 = vmatprep.subr.mxu0 0.0
    %2570 = vmatpush1.msra.mxu0 %v2522
    %2571 = vmatprep.subr.mxu0 0.0
    %2572 = vmatpush1.msra.mxu0 %v2524
    %2573 = vmatprep.subr.mxu0 0.0
    %2574 = vmatpush1.msra.mxu0 %v2526
    %2575 = vmatprep.subr.mxu0 0.0
    %2576 = vmatpush1.msra.mxu0 %v2528
    %2577 = vmatprep.subr.mxu0 0.0
    %2578 = vmatpush1.msra.mxu0 %v2530
    %2579 = vmatprep.subr.mxu0 0.0
    %2580 = vmatpush1.msra.mxu0 %v2532
    %2581 = vmatprep.subr.mxu0 0.0
    %2582 = vmatpush1.msra.mxu0 %v2534
    %2583 = vmatprep.subr.mxu0 0.0
    %2584 = vmatpush1.msra.mxu0 %v2536
    %2585 = vmatprep.subr.mxu0 0.0
    %2586 = vmatpush1.msra.mxu0 %v2538
    %2587 = vmatprep.subr.mxu0 0.0
    %2588 = vmatpush1.msra.mxu0 %v2540
    %2589 = vmatprep.subr.mxu0 0.0
    %2590 = vmatpush1.msra.mxu0 %v2542
    %2591 = vmatprep.subr.mxu0 0.0
    %2592 = vmatpush1.msra.mxu0 %v2544
    %2593 = vmatprep.subr.mxu0 0.0
    %2594 = vmatpush1.msra.mxu0 %v2546
    %2595 = vmatprep.subr.mxu0 0.0
    %2596 = vmatpush1.msra.mxu0 %v2548
    %2597 = vmatprep.subr.mxu0 0.0
    %2598 = vmatpush1.msra.mxu0 0.0
    %2599 = vmatprep.subr.mxu0 0.0
    %2600 = vmatpush1.msra.mxu0 0.0
    %2601 = vmatprep.subr.mxu0 0.0
    %2602 = vmatpush1.msra.mxu0 0.0
    %2603 = vmatprep.subr.mxu0 0.0
    %2604 = vmatpush1.msra.mxu0 0.0
    %2605 = vmatprep.subr.mxu0 0.0
    %2606 = vmatpush1.msra.mxu0 0.0
    %2607 = vmatprep.subr.mxu0 0.0
    %2608 = vmatpush1.msra.mxu0 0.0
    %2609 = vmatprep.subr.mxu0 0.0
    %2610 = vmatpush1.msra.mxu0 0.0
    %2611 = vmatprep.subr.mxu0 0.0
    %2612 = vmatpush1.msra.mxu0 0.0
    %2613 = vmatprep.subr.mxu0 0.0
    %2614 = vmatpush1.msra.mxu0 0.0
    %2615 = vmatprep.subr.mxu0 0.0
    %2616 = vmatpush1.msra.mxu0 0.0
    %2617 = vmatprep.subr.mxu0 0.0
    %2618 = vmatpush1.msra.mxu0 0.0
    %2619 = vmatprep.subr.mxu0 0.0
    %2620 = vmatpush1.msra.mxu0 0.0
    %2621 = vmatprep.subr.mxu0 0.0
    %2622 = vmatpush1.msra.mxu0 0.0
    %2623 = vmatprep.subr.mxu0 0.0
    %2624 = vmatpush1.msra.mxu0 0.0
    %2625 = vmatprep.subr.mxu0 0.0
    %2626 = vmatpush1.msra.mxu0 0.0
    %2627 = vmatprep.subr.mxu0 0.0
    %2628 = vmatpush1.msra.mxu0 0.0
    %2629 = vmatprep.mubr.f32.mxu0 0.0
    %2630 = vmatmul.mubr.f32.gmra.mrb[0].mxu0 %v2485
    %v2631 = vpop.f32.mrb[0].mxu0
    %v2632 = vadd.f32 0.0, %v2631
    %v2633 = vpop.f32.mrb[0].mxu0
    %2634 = vmatprep.mubr.f32.mxu0 0.0
    %2635 = vmatmul.mubr.f32.gmra.mrb[0].mxu0 %v2486
    %v2636 = vpop.f32.mrb[0].mxu0
    %v2637 = vadd.f32 0.0, %v2636
    %v2638 = vpop.f32.mrb[0].mxu0
    %2639 = vmatprep.mubr.f32.mxu0 0.0
    %2640 = vmatmul.mubr.f32.gmra.mrb[0].mxu0 %v2487
    %v2641 = vpop.f32.mrb[0].mxu0
    %v2642 = vadd.f32 0.0, %v2641
    %v2643 = vpop.f32.mrb[0].mxu0
    %2644 = vmatprep.mubr.f32.mxu0 0.0
    %2645 = vmatmul.mubr.f32.gmra.mrb[0].mxu0 %v2488
    %v2646 = vpop.f32.mrb[0].mxu0
    %v2647 = vadd.f32 0.0, %v2646
    %v2648 = vpop.f32.mrb[0].mxu0
    %2649 = vmatprep.mubr.f32.mxu0 0.0
    %2650 = vmatmul.mubr.f32.gmra.mrb[0].mxu0 %v2489
    %v2651 = vpop.f32.mrb[0].mxu0
    %v2652 = vadd.f32 0.0, %v2651
    %v2653 = vpop.f32.mrb[0].mxu0
    %2654 = vmatprep.mubr.f32.mxu0 0.0
    %2655 = vmatmul.mubr.f32.gmra.mrb[0].mxu0 %v2490
    %v2656 = vpop.f32.mrb[0].mxu0
    %v2657 = vadd.f32 0.0, %v2656
    %v2658 = vpop.f32.mrb[0].mxu0
    %2659 = vmatprep.mubr.f32.mxu0 0.0
    %2660 = vmatmul.mubr.f32.gmra.mrb[0].mxu0 %v2491
    %v2661 = vpop.f32.mrb[0].mxu0
    %v2662 = vadd.f32 0.0, %v2661
    %v2663 = vpop.f32.mrb[0].mxu0
    %2664 = vmatprep.mubr.f32.mxu0 0.0
    %2665 = vmatmul.mubr.f32.gmra.mrb[0].mxu0 %v2492
    %v2666 = vpop.f32.mrb[0].mxu0
    %v2667 = vadd.f32 0.0, %v2666
    %v2668 = vpop.f32.mrb[0].mxu0
    %2669 = vmatprep.mubr.f32.mxu0 0.0
    %2670 = vmatmul.mubr.f32.gmra.mrb[0].mxu0 %v2493
    %v2671 = vpop.f32.mrb[0].mxu0
    %v2672 = vadd.f32 0.0, %v2671
    %v2673 = vpop.f32.mrb[0].mxu0
    %2674 = vmatprep.mubr.f32.mxu0 0.0
    %2675 = vmatmul.mubr.f32.gmra.mrb[0].mxu0 %v2494
    %v2676 = vpop.f32.mrb[0].mxu0
    %v2677 = vadd.f32 0.0, %v2676
    %v2678 = vpop.f32.mrb[0].mxu0
    %2679 = vmatprep.mubr.f32.mxu0 0.0
    %2680 = vmatmul.mubr.f32.gmra.mrb[0].mxu0 %v2495
    %v2681 = vpop.f32.mrb[0].mxu0
    %v2682 = vadd.f32 0.0, %v2681
    %v2683 = vpop.f32.mrb[0].mxu0
    %2684 = vmatprep.mubr.f32.mxu0 0.0
    %2685 = vmatmul.mubr.f32.gmra.mrb[0].mxu0 %v2496
    %v2686 = vpop.f32.mrb[0].mxu0
    %v2687 = vadd.f32 0.0, %v2686
    %v2688 = vpop.f32.mrb[0].mxu0
    %2689 = vmatprep.mubr.f32.mxu0 0.0
    %2690 = vmatmul.mubr.f32.gmra.mrb[0].mxu0 %v2497
    %v2691 = vpop.f32.mrb[0].mxu0
    %v2692 = vadd.f32 0.0, %v2691
    %v2693 = vpop.f32.mrb[0].mxu0
    %2694 = vmatprep.mubr.f32.mxu0 0.0
    %2695 = vmatmul.mubr.f32.gmra.mrb[0].mxu0 %v2498
    %v2696 = vpop.f32.mrb[0].mxu0
    %v2697 = vadd.f32 0.0, %v2696
    %v2698 = vpop.f32.mrb[0].mxu0
    %2699 = vmatprep.mubr.f32.mxu0 0.0
    %2700 = vmatmul.mubr.f32.gmra.mrb[0].mxu0 %v2499
    %v2701 = vpop.f32.mrb[0].mxu0
    %v2702 = vadd.f32 0.0, %v2701
    %v2703 = vpop.f32.mrb[0].mxu0
    %2704 = vmatprep.mubr.f32.mxu0 0.0
    %2705 = vmatmul.mubr.f32.gmra.mrb[0].mxu0 %v2500
    %v2706 = vpop.f32.mrb[0].mxu0
    %v2707 = vadd.f32 0.0, %v2706
    %v2708 = vpop.f32.mrb[0].mxu0
    %2709 = vdwg.mxu0
    %v2710 = vadd.f32 %v2068, %v2632
    %v2711 = vadd.f32 %v2069, %v2637
    %v2712 = vadd.f32 %v2070, %v2642
    %v2713 = vadd.f32 %v2071, %v2647
    %v2714 = vadd.f32 %v2072, %v2652
    %v2715 = vadd.f32 %v2073, %v2657
    %v2716 = vadd.f32 %v2074, %v2662
    %v2717 = vadd.f32 %v2075, %v2667
    %v2718 = vadd.f32 %v2076, %v2672
    %v2719 = vadd.f32 %v2077, %v2677
    %v2720 = vadd.f32 %v2078, %v2682
    %v2721 = vadd.f32 %v2079, %v2687
    %v2722 = vadd.f32 %v2080, %v2692
    %v2723 = vadd.f32 %v2081, %v2697
    %v2724 = vadd.f32 %v2082, %v2702
    %v2725 = vadd.f32 %v2083, %v2707
    %v2726 = vld [vmem:[%s5] sm:$0x1]
    %v2728 = vlaneseq
    %v2729 = vshrl.u32 %v2728, 7
    %v2730 = vsub.s32 0, %v2729
    %v2731 = vrot.slane %v2726, %v2730
    %v2733 = vadd.f32 %v2710, %v2731
    %v2734 = vadd.f32 %v2711, %v2731
    %v2735 = vadd.f32 %v2712, %v2731
    %v2736 = vadd.f32 %v2713, %v2731
    %v2737 = vadd.f32 %v2714, %v2731
    %v2738 = vadd.f32 %v2715, %v2731
    %v2739 = vadd.f32 %v2716, %v2731
    %v2740 = vadd.f32 %v2717, %v2731
    %v2741 = vadd.f32 %v2718, %v2731
    %v2742 = vadd.f32 %v2719, %v2731
    %v2743 = vadd.f32 %v2720, %v2731
    %v2744 = vadd.f32 %v2721, %v2731
    %v2745 = vadd.f32 %v2722, %v2731
    %v2746 = vadd.f32 %v2723, %v2731
    %v2747 = vadd.f32 %v2724, %v2731
    %v2748 = vadd.f32 %v2725, %v2731
    %v2749 = vld [vmem:[%s6] sm:$0xff]
    %v2750 = vld [vmem:[%s6 + $0x8] sm:$0xff]
    %v2751 = vld [vmem:[%s6 + $0x10] sm:$0xff]
    %v2752 = vld [vmem:[%s6 + $0x18] sm:$0xff]
    %v2753 = vld [vmem:[%s7] sm:$0x1]
    %v2755 = vlaneseq
    %v2756 = vshrl.u32 %v2755, 7
    %v2757 = vsub.s32 0, %v2756
    %v2758 = vrot.slane %v2753, %v2757
    %v2761 = vsel %vm75, %v2733, 0
    %v2764 = vsel %vm75, %v2734, 0
    %v2767 = vsel %vm75, %v2735, 0
    %v2770 = vsel %vm75, %v2736, 0
    %v2773 = vsel %vm75, %v2737, 0
    %v2776 = vsel %vm75, %v2738, 0
    %v2779 = vsel %vm75, %v2739, 0
    %v2782 = vsel %vm75, %v2740, 0
    %v2785 = vsel %vm75, %v2741, 0
    %v2788 = vsel %vm75, %v2742, 0
    %v2791 = vsel %vm75, %v2743, 0
    %v2794 = vsel %vm75, %v2744, 0
    %v2797 = vsel %vm75, %v2745, 0
    %v2800 = vsel %vm75, %v2746, 0
    %v2803 = vsel %vm75, %v2747, 0
    %v2806 = vsel %vm75, %v2748, 0
    %2808 = vmatprep.subr.mxu0 0.0
    %2809 = vmatpush1.msra.mxu0 %v2749
    %2810 = vmatprep.subr.mxu0 0.0
    %2811 = vmatpush1.msra.mxu0 %v2750
    %2812 = vmatprep.subr.mxu0 0.0
    %2813 = vmatpush1.msra.mxu0 %v2751
    %2814 = vmatprep.subr.mxu0 0.0
    %2815 = vmatpush1.msra.mxu0 %v2752
    %2816 = vmatprep.subr.mxu0 0.0
    %2817 = vmatpush1.msra.mxu0 0.0
    %2818 = vmatprep.subr.mxu0 0.0
    %2819 = vmatpush1.msra.mxu0 0.0
    %2820 = vmatprep.subr.mxu0 0.0
    %2821 = vmatpush1.msra.mxu0 0.0
    %2822 = vmatprep.subr.mxu0 0.0
    %2823 = vmatpush1.msra.mxu0 0.0
    %2824 = vmatprep.subr.mxu0 0.0
    %2825 = vmatpush1.msra.mxu0 0.0
    %2826 = vmatprep.subr.mxu0 0.0
    %2827 = vmatpush1.msra.mxu0 0.0
    %2828 = vmatprep.subr.mxu0 0.0
    %2829 = vmatpush1.msra.mxu0 0.0
    %2830 = vmatprep.subr.mxu0 0.0
    %2831 = vmatpush1.msra.mxu0 0.0
    %2832 = vmatprep.subr.mxu0 0.0
    %2833 = vmatpush1.msra.mxu0 0.0
    %2834 = vmatprep.subr.mxu0 0.0
    %2835 = vmatpush1.msra.mxu0 0.0
    %2836 = vmatprep.subr.mxu0 0.0
    %2837 = vmatpush1.msra.mxu0 0.0
    %2838 = vmatprep.subr.mxu0 0.0
    %2839 = vmatpush1.msra.mxu0 0.0
    %2840 = vmatprep.subr.mxu0 0.0
    %2841 = vmatpush1.msra.mxu0 0.0
    %2842 = vmatprep.subr.mxu0 0.0
    %2843 = vmatpush1.msra.mxu0 0.0
    %2844 = vmatprep.subr.mxu0 0.0
    %2845 = vmatpush1.msra.mxu0 0.0
    %2846 = vmatprep.subr.mxu0 0.0
    %2847 = vmatpush1.msra.mxu0 0.0
    %2848 = vmatprep.subr.mxu0 0.0
    %2849 = vmatpush1.msra.mxu0 0.0
    %2850 = vmatprep.subr.mxu0 0.0
    %2851 = vmatpush1.msra.mxu0 0.0
    %2852 = vmatprep.subr.mxu0 0.0
    %2853 = vmatpush1.msra.mxu0 0.0
    %2854 = vmatprep.subr.mxu0 0.0
    %2855 = vmatpush1.msra.mxu0 0.0
    %2856 = vmatprep.subr.mxu0 0.0
    %2857 = vmatpush1.msra.mxu0 0.0
    %2858 = vmatprep.subr.mxu0 0.0
    %2859 = vmatpush1.msra.mxu0 0.0
    %2860 = vmatprep.subr.mxu0 0.0
    %2861 = vmatpush1.msra.mxu0 0.0
    %2862 = vmatprep.subr.mxu0 0.0
    %2863 = vmatpush1.msra.mxu0 0.0
    %2864 = vmatprep.subr.mxu0 0.0
    %2865 = vmatpush1.msra.mxu0 0.0
    %2866 = vmatprep.subr.mxu0 0.0
    %2867 = vmatpush1.msra.mxu0 0.0
    %2868 = vmatprep.subr.mxu0 0.0
    %2869 = vmatpush1.msra.mxu0 0.0
    %2870 = vmatprep.subr.mxu0 0.0
    %2871 = vmatpush1.msra.mxu0 0.0
    %2872 = vmatprep.mubr.f32.mxu0 0.0
    %2873 = vmatmul.mubr.f32.gmra.mrb[0].mxu0 %v2761
    %v2874 = vpop.f32.mrb[0].mxu0
    %v2875 = vadd.f32 %v2758, %v2874
    %v2876 = vpop.f32.mrb[0].mxu0
    %2877 = vmatprep.mubr.f32.mxu0 0.0
    %2878 = vmatmul.mubr.f32.gmra.mrb[0].mxu0 %v2764
    %v2879 = vpop.f32.mrb[0].mxu0
    %v2880 = vadd.f32 %v2758, %v2879
    %v2881 = vpop.f32.mrb[0].mxu0
    %2882 = vmatprep.mubr.f32.mxu0 0.0
    %2883 = vmatmul.mubr.f32.gmra.mrb[0].mxu0 %v2767
    %v2884 = vpop.f32.mrb[0].mxu0
    %v2885 = vadd.f32 %v2758, %v2884
    %v2886 = vpop.f32.mrb[0].mxu0
    %2887 = vmatprep.mubr.f32.mxu0 0.0
    %2888 = vmatmul.mubr.f32.gmra.mrb[0].mxu0 %v2770
    %v2889 = vpop.f32.mrb[0].mxu0
    %v2890 = vadd.f32 %v2758, %v2889
    %v2891 = vpop.f32.mrb[0].mxu0
    %2892 = vmatprep.mubr.f32.mxu0 0.0
    %2893 = vmatmul.mubr.f32.gmra.mrb[0].mxu0 %v2773
    %v2894 = vpop.f32.mrb[0].mxu0
    %v2895 = vadd.f32 %v2758, %v2894
    %v2896 = vpop.f32.mrb[0].mxu0
    %2897 = vmatprep.mubr.f32.mxu0 0.0
    %2898 = vmatmul.mubr.f32.gmra.mrb[0].mxu0 %v2776
    %v2899 = vpop.f32.mrb[0].mxu0
    %v2900 = vadd.f32 %v2758, %v2899
    %v2901 = vpop.f32.mrb[0].mxu0
    %2902 = vmatprep.mubr.f32.mxu0 0.0
    %2903 = vmatmul.mubr.f32.gmra.mrb[0].mxu0 %v2779
    %v2904 = vpop.f32.mrb[0].mxu0
    %v2905 = vadd.f32 %v2758, %v2904
    %v2906 = vpop.f32.mrb[0].mxu0
    %2907 = vmatprep.mubr.f32.mxu0 0.0
    %2908 = vmatmul.mubr.f32.gmra.mrb[0].mxu0 %v2782
    %v2909 = vpop.f32.mrb[0].mxu0
    %v2910 = vadd.f32 %v2758, %v2909
    %v2911 = vpop.f32.mrb[0].mxu0
    %2912 = vmatprep.mubr.f32.mxu0 0.0
    %2913 = vmatmul.mubr.f32.gmra.mrb[0].mxu0 %v2785
    %v2914 = vpop.f32.mrb[0].mxu0
    %v2915 = vadd.f32 %v2758, %v2914
    %v2916 = vpop.f32.mrb[0].mxu0
    %2917 = vmatprep.mubr.f32.mxu0 0.0
    %2918 = vmatmul.mubr.f32.gmra.mrb[0].mxu0 %v2788
    %v2919 = vpop.f32.mrb[0].mxu0
    %v2920 = vadd.f32 %v2758, %v2919
    %v2921 = vpop.f32.mrb[0].mxu0
    %2922 = vmatprep.mubr.f32.mxu0 0.0
    %2923 = vmatmul.mubr.f32.gmra.mrb[0].mxu0 %v2791
    %v2924 = vpop.f32.mrb[0].mxu0
    %v2925 = vadd.f32 %v2758, %v2924
    %v2926 = vpop.f32.mrb[0].mxu0
    %2927 = vmatprep.mubr.f32.mxu0 0.0
    %2928 = vmatmul.mubr.f32.gmra.mrb[0].mxu0 %v2794
    %v2929 = vpop.f32.mrb[0].mxu0
    %v2930 = vadd.f32 %v2758, %v2929
    %v2931 = vpop.f32.mrb[0].mxu0
    %2932 = vmatprep.mubr.f32.mxu0 0.0
    %2933 = vmatmul.mubr.f32.gmra.mrb[0].mxu0 %v2797
    %v2934 = vpop.f32.mrb[0].mxu0
    %v2935 = vadd.f32 %v2758, %v2934
    %v2936 = vpop.f32.mrb[0].mxu0
    %2937 = vmatprep.mubr.f32.mxu0 0.0
    %2938 = vmatmul.mubr.f32.gmra.mrb[0].mxu0 %v2800
    %v2939 = vpop.f32.mrb[0].mxu0
    %v2940 = vadd.f32 %v2758, %v2939
    %v2941 = vpop.f32.mrb[0].mxu0
    %2942 = vmatprep.mubr.f32.mxu0 0.0
    %2943 = vmatmul.mubr.f32.gmra.mrb[0].mxu0 %v2803
    %v2944 = vpop.f32.mrb[0].mxu0
    %v2945 = vadd.f32 %v2758, %v2944
    %v2946 = vpop.f32.mrb[0].mxu0
    %2947 = vmatprep.mubr.f32.mxu0 0.0
    %2948 = vmatmul.mubr.f32.gmra.mrb[0].mxu0 %v2806
    %v2949 = vpop.f32.mrb[0].mxu0
    %v2950 = vadd.f32 %v2758, %v2949
    %v2951 = vpop.f32.mrb[0].mxu0
    %2952 = vdwg.mxu0
    %v2953 = vld [vmem:[%s8] sm:$0xff]
    %v2954 = vld [vmem:[%s8 + $0x8] sm:$0xff]
    %v2955 = vld [vmem:[%s8 + $0x10] sm:$0xff]
    %v2956 = vld [vmem:[%s8 + $0x18] sm:$0xff]
    %v2957 = vld [vmem:[%s9] sm:$0x1]
    %v2959 = vlaneseq
    %v2960 = vshrl.u32 %v2959, 7
    %v2961 = vsub.s32 0, %v2960
    %v2962 = vrot.slane %v2957, %v2961
    %v2965 = vsel %vm75, %v2875, 0
    %v2968 = vsel %vm75, %v2880, 0
    %v2971 = vsel %vm75, %v2885, 0
    %v2974 = vsel %vm75, %v2890, 0
    %v2977 = vsel %vm75, %v2895, 0
    %v2980 = vsel %vm75, %v2900, 0
    %v2983 = vsel %vm75, %v2905, 0
    %v2986 = vsel %vm75, %v2910, 0
    %v2989 = vsel %vm75, %v2915, 0
    %v2992 = vsel %vm75, %v2920, 0
    %v2995 = vsel %vm75, %v2925, 0
    %v2998 = vsel %vm75, %v2930, 0
    %v3001 = vsel %vm75, %v2935, 0
    %v3004 = vsel %vm75, %v2940, 0
    %v3007 = vsel %vm75, %v2945, 0
    %v3010 = vsel %vm75, %v2950, 0
    %3012 = vmatprep.subr.mxu0 0.0
    %3013 = vmatpush1.msra.mxu0 %v2953
    %3014 = vmatprep.subr.mxu0 0.0
    %3015 = vmatpush1.msra.mxu0 %v2954
    %3016 = vmatprep.subr.mxu0 0.0
    %3017 = vmatpush1.msra.mxu0 %v2955
    %3018 = vmatprep.subr.mxu0 0.0
    %3019 = vmatpush1.msra.mxu0 %v2956
    %3020 = vmatprep.subr.mxu0 0.0
    %3021 = vmatpush1.msra.mxu0 0.0
    %3022 = vmatprep.subr.mxu0 0.0
    %3023 = vmatpush1.msra.mxu0 0.0
    %3024 = vmatprep.subr.mxu0 0.0
    %3025 = vmatpush1.msra.mxu0 0.0
    %3026 = vmatprep.subr.mxu0 0.0
    %3027 = vmatpush1.msra.mxu0 0.0
    %3028 = vmatprep.subr.mxu0 0.0
    %3029 = vmatpush1.msra.mxu0 0.0
    %3030 = vmatprep.subr.mxu0 0.0
    %3031 = vmatpush1.msra.mxu0 0.0
    %3032 = vmatprep.subr.mxu0 0.0
    %3033 = vmatpush1.msra.mxu0 0.0
    %3034 = vmatprep.subr.mxu0 0.0
    %3035 = vmatpush1.msra.mxu0 0.0
    %3036 = vmatprep.subr.mxu0 0.0
    %3037 = vmatpush1.msra.mxu0 0.0
    %3038 = vmatprep.subr.mxu0 0.0
    %3039 = vmatpush1.msra.mxu0 0.0
    %3040 = vmatprep.subr.mxu0 0.0
    %3041 = vmatpush1.msra.mxu0 0.0
    %3042 = vmatprep.subr.mxu0 0.0
    %3043 = vmatpush1.msra.mxu0 0.0
    %3044 = vmatprep.subr.mxu0 0.0
    %3045 = vmatpush1.msra.mxu0 0.0
    %3046 = vmatprep.subr.mxu0 0.0
    %3047 = vmatpush1.msra.mxu0 0.0
    %3048 = vmatprep.subr.mxu0 0.0
    %3049 = vmatpush1.msra.mxu0 0.0
    %3050 = vmatprep.subr.mxu0 0.0
    %3051 = vmatpush1.msra.mxu0 0.0
    %3052 = vmatprep.subr.mxu0 0.0
    %3053 = vmatpush1.msra.mxu0 0.0
    %3054 = vmatprep.subr.mxu0 0.0
    %3055 = vmatpush1.msra.mxu0 0.0
    %3056 = vmatprep.subr.mxu0 0.0
    %3057 = vmatpush1.msra.mxu0 0.0
    %3058 = vmatprep.subr.mxu0 0.0
    %3059 = vmatpush1.msra.mxu0 0.0
    %3060 = vmatprep.subr.mxu0 0.0
    %3061 = vmatpush1.msra.mxu0 0.0
    %3062 = vmatprep.subr.mxu0 0.0
    %3063 = vmatpush1.msra.mxu0 0.0
    %3064 = vmatprep.subr.mxu0 0.0
    %3065 = vmatpush1.msra.mxu0 0.0
    %3066 = vmatprep.subr.mxu0 0.0
    %3067 = vmatpush1.msra.mxu0 0.0
    %3068 = vmatprep.subr.mxu0 0.0
    %3069 = vmatpush1.msra.mxu0 0.0
    %3070 = vmatprep.subr.mxu0 0.0
    %3071 = vmatpush1.msra.mxu0 0.0
    %3072 = vmatprep.subr.mxu0 0.0
    %3073 = vmatpush1.msra.mxu0 0.0
    %3074 = vmatprep.subr.mxu0 0.0
    %3075 = vmatpush1.msra.mxu0 0.0
    %3076 = vmatprep.mubr.f32.mxu0 0.0
    %3077 = vmatmul.mubr.f32.gmra.mrb[0].mxu0 %v2965
    %v3078 = vpop.f32.mrb[0].mxu0
    %v3079 = vadd.f32 %v2962, %v3078
    %v3080 = vpop.f32.mrb[0].mxu0
    %3081 = vmatprep.mubr.f32.mxu0 0.0
    %3082 = vmatmul.mubr.f32.gmra.mrb[0].mxu0 %v2968
    %v3083 = vpop.f32.mrb[0].mxu0
    %v3084 = vadd.f32 %v2962, %v3083
    %v3085 = vpop.f32.mrb[0].mxu0
    %3086 = vmatprep.mubr.f32.mxu0 0.0
    %3087 = vmatmul.mubr.f32.gmra.mrb[0].mxu0 %v2971
    %v3088 = vpop.f32.mrb[0].mxu0
    %v3089 = vadd.f32 %v2962, %v3088
    %v3090 = vpop.f32.mrb[0].mxu0
    %3091 = vmatprep.mubr.f32.mxu0 0.0
    %3092 = vmatmul.mubr.f32.gmra.mrb[0].mxu0 %v2974
    %v3093 = vpop.f32.mrb[0].mxu0
    %v3094 = vadd.f32 %v2962, %v3093
    %v3095 = vpop.f32.mrb[0].mxu0
    %3096 = vmatprep.mubr.f32.mxu0 0.0
    %3097 = vmatmul.mubr.f32.gmra.mrb[0].mxu0 %v2977
    %v3098 = vpop.f32.mrb[0].mxu0
    %v3099 = vadd.f32 %v2962, %v3098
    %v3100 = vpop.f32.mrb[0].mxu0
    %3101 = vmatprep.mubr.f32.mxu0 0.0
    %3102 = vmatmul.mubr.f32.gmra.mrb[0].mxu0 %v2980
    %v3103 = vpop.f32.mrb[0].mxu0
    %v3104 = vadd.f32 %v2962, %v3103
    %v3105 = vpop.f32.mrb[0].mxu0
    %3106 = vmatprep.mubr.f32.mxu0 0.0
    %3107 = vmatmul.mubr.f32.gmra.mrb[0].mxu0 %v2983
    %v3108 = vpop.f32.mrb[0].mxu0
    %v3109 = vadd.f32 %v2962, %v3108
    %v3110 = vpop.f32.mrb[0].mxu0
    %3111 = vmatprep.mubr.f32.mxu0 0.0
    %3112 = vmatmul.mubr.f32.gmra.mrb[0].mxu0 %v2986
    %v3113 = vpop.f32.mrb[0].mxu0
    %v3114 = vadd.f32 %v2962, %v3113
    %v3115 = vpop.f32.mrb[0].mxu0
    %3116 = vmatprep.mubr.f32.mxu0 0.0
    %3117 = vmatmul.mubr.f32.gmra.mrb[0].mxu0 %v2989
    %v3118 = vpop.f32.mrb[0].mxu0
    %v3119 = vadd.f32 %v2962, %v3118
    %v3120 = vpop.f32.mrb[0].mxu0
    %3121 = vmatprep.mubr.f32.mxu0 0.0
    %3122 = vmatmul.mubr.f32.gmra.mrb[0].mxu0 %v2992
    %v3123 = vpop.f32.mrb[0].mxu0
    %v3124 = vadd.f32 %v2962, %v3123
    %v3125 = vpop.f32.mrb[0].mxu0
    %3126 = vmatprep.mubr.f32.mxu0 0.0
    %3127 = vmatmul.mubr.f32.gmra.mrb[0].mxu0 %v2995
    %v3128 = vpop.f32.mrb[0].mxu0
    %v3129 = vadd.f32 %v2962, %v3128
    %v3130 = vpop.f32.mrb[0].mxu0
    %3131 = vmatprep.mubr.f32.mxu0 0.0
    %3132 = vmatmul.mubr.f32.gmra.mrb[0].mxu0 %v2998
    %v3133 = vpop.f32.mrb[0].mxu0
    %v3134 = vadd.f32 %v2962, %v3133
    %v3135 = vpop.f32.mrb[0].mxu0
    %3136 = vmatprep.mubr.f32.mxu0 0.0
    %3137 = vmatmul.mubr.f32.gmra.mrb[0].mxu0 %v3001
    %v3138 = vpop.f32.mrb[0].mxu0
    %v3139 = vadd.f32 %v2962, %v3138
    %v3140 = vpop.f32.mrb[0].mxu0
    %3141 = vmatprep.mubr.f32.mxu0 0.0
    %3142 = vmatmul.mubr.f32.gmra.mrb[0].mxu0 %v3004
    %v3143 = vpop.f32.mrb[0].mxu0
    %v3144 = vadd.f32 %v2962, %v3143
    %v3145 = vpop.f32.mrb[0].mxu0
    %3146 = vmatprep.mubr.f32.mxu0 0.0
    %3147 = vmatmul.mubr.f32.gmra.mrb[0].mxu0 %v3007
    %v3148 = vpop.f32.mrb[0].mxu0
    %v3149 = vadd.f32 %v2962, %v3148
    %v3150 = vpop.f32.mrb[0].mxu0
    %3151 = vmatprep.mubr.f32.mxu0 0.0
    %3152 = vmatmul.mubr.f32.gmra.mrb[0].mxu0 %v3010
    %v3153 = vpop.f32.mrb[0].mxu0
    %v3154 = vadd.f32 %v2962, %v3153
    %v3155 = vpop.f32.mrb[0].mxu0
    %3156 = vdwg.mxu0
    %v3157 = vtanh.pop %v3079
    %v3158 = vtanh.pop %v3084
    %v3159 = vtanh.pop %v3089
    %v3160 = vtanh.pop %v3094
    %v3161 = vtanh.pop %v3099
    %v3162 = vtanh.pop %v3104
    %v3163 = vtanh.pop %v3109
    %v3164 = vtanh.pop %v3114
    %v3165 = vtanh.pop %v3119
    %v3166 = vtanh.pop %v3124
    %v3167 = vtanh.pop %v3129
    %v3168 = vtanh.pop %v3134
    %v3169 = vtanh.pop %v3139
    %v3170 = vtanh.pop %v3144
    %v3171 = vtanh.pop %v3149
    %v3172 = vtanh.pop %v3154
    %v3173 = vld [vmem:[%s10] sm:$0x1]
    %v3175 = vlaneseq
    %v3176 = vshrl.u32 %v3175, 7
    %v3177 = vsub.s32 0, %v3176
    %v3178 = vrot.slane %v3173, %v3177
    %v3180 = vmul.f32 %v3157, %v3178
    %v3181 = vmul.f32 %v3158, %v3178
    %v3182 = vmul.f32 %v3159, %v3178
    %v3183 = vmul.f32 %v3160, %v3178
    %v3184 = vmul.f32 %v3161, %v3178
    %v3185 = vmul.f32 %v3162, %v3178
    %v3186 = vmul.f32 %v3163, %v3178
    %v3187 = vmul.f32 %v3164, %v3178
    %v3188 = vmul.f32 %v3165, %v3178
    %v3189 = vmul.f32 %v3166, %v3178
    %v3190 = vmul.f32 %v3167, %v3178
    %v3191 = vmul.f32 %v3168, %v3178
    %v3192 = vmul.f32 %v3169, %v3178
    %v3193 = vmul.f32 %v3170, %v3178
    %v3194 = vmul.f32 %v3171, %v3178
    %v3195 = vmul.f32 %v3172, %v3178
    %vm3196 = vcmask 130048
    %v3197 = vsel %vm3196, %v3180, 0.0
    %3198 = vadd.xlane.f32.xlu0 %v3197
    %v3199 = vpop.xlane.xlu0 %3198
    %v3200 = vsel %vm3196, %v3181, 0.0
    %3201 = vadd.xlane.f32.xlu0 %v3200
    %v3202 = vpop.xlane.xlu0 %3201
    %v3203 = vsel %vm3196, %v3182, 0.0
    %3204 = vadd.xlane.f32.xlu0 %v3203
    %v3205 = vpop.xlane.xlu0 %3204
    %v3206 = vsel %vm3196, %v3183, 0.0
    %3207 = vadd.xlane.f32.xlu0 %v3206
    %v3208 = vpop.xlane.xlu0 %3207
    %v3209 = vsel %vm3196, %v3184, 0.0
    %3210 = vadd.xlane.f32.xlu0 %v3209
    %v3211 = vpop.xlane.xlu0 %3210
    %v3212 = vsel %vm3196, %v3185, 0.0
    %3213 = vadd.xlane.f32.xlu0 %v3212
    %v3214 = vpop.xlane.xlu0 %3213
    %v3215 = vsel %vm3196, %v3186, 0.0
    %3216 = vadd.xlane.f32.xlu0 %v3215
    %v3217 = vpop.xlane.xlu0 %3216
    %v3218 = vsel %vm3196, %v3187, 0.0
    %3219 = vadd.xlane.f32.xlu0 %v3218
    %v3220 = vpop.xlane.xlu0 %3219
    %v3221 = vsel %vm3196, %v3188, 0.0
    %3222 = vadd.xlane.f32.xlu0 %v3221
    %v3223 = vpop.xlane.xlu0 %3222
    %v3224 = vsel %vm3196, %v3189, 0.0
    %3225 = vadd.xlane.f32.xlu0 %v3224
    %v3226 = vpop.xlane.xlu0 %3225
    %v3227 = vsel %vm3196, %v3190, 0.0
    %3228 = vadd.xlane.f32.xlu0 %v3227
    %v3229 = vpop.xlane.xlu0 %3228
    %v3230 = vsel %vm3196, %v3191, 0.0
    %3231 = vadd.xlane.f32.xlu0 %v3230
    %v3232 = vpop.xlane.xlu0 %3231
    %v3233 = vsel %vm3196, %v3192, 0.0
    %3234 = vadd.xlane.f32.xlu0 %v3233
    %v3235 = vpop.xlane.xlu0 %3234
    %v3236 = vsel %vm3196, %v3193, 0.0
    %3237 = vadd.xlane.f32.xlu0 %v3236
    %v3238 = vpop.xlane.xlu0 %3237
    %v3239 = vsel %vm3196, %v3194, 0.0
    %3240 = vadd.xlane.f32.xlu0 %v3239
    %v3241 = vpop.xlane.xlu0 %3240
    %v3242 = vsel %vm3196, %v3195, 0.0
    %3243 = vadd.xlane.f32.xlu0 %v3242
    %v3244 = vpop.xlane.xlu0 %3243
    %v3245 = vld [vmem:[%s4] sm:$0xff]
    %v3246 = vld [vmem:[%s4 + $0x8] sm:$0xff]
    %v3247 = vld [vmem:[%s4 + $0x10] sm:$0xff]
    %v3248 = vld [vmem:[%s4 + $0x18] sm:$0xff]
    %v3249 = vld [vmem:[%s4 + $0x20] sm:$0xff]
    %v3250 = vld [vmem:[%s4 + $0x28] sm:$0xff]
    %v3251 = vld [vmem:[%s4 + $0x30] sm:$0xff]
    %v3252 = vld [vmem:[%s4 + $0x38] sm:$0xff]
    %v3253 = vld [vmem:[%s4 + $0x40] sm:$0xff]
    %v3254 = vld [vmem:[%s4 + $0x48] sm:$0xff]
    %v3255 = vld [vmem:[%s4 + $0x50] sm:$0xff]
    %v3256 = vld [vmem:[%s4 + $0x58] sm:$0xff]
    %v3257 = vld [vmem:[%s4 + $0x60] sm:$0xff]
    %v3258 = vld [vmem:[%s4 + $0x68] sm:$0xff]
    %v3259 = vld [vmem:[%s4 + $0x70] sm:$0xff]
    %v3260 = vld [vmem:[%s4 + $0x78] sm:$0xff]
    %v3261 = vadd.f32 %v3199, %v3245
    %v3262 = vadd.f32 %v3202, %v3246
    %v3263 = vadd.f32 %v3205, %v3247
    %v3264 = vadd.f32 %v3208, %v3248
    %v3265 = vadd.f32 %v3211, %v3249
    %v3266 = vadd.f32 %v3214, %v3250
    %v3267 = vadd.f32 %v3217, %v3251
    %v3268 = vadd.f32 %v3220, %v3252
    %v3269 = vadd.f32 %v3223, %v3253
    %v3270 = vadd.f32 %v3226, %v3254
    %v3271 = vadd.f32 %v3229, %v3255
    %v3272 = vadd.f32 %v3232, %v3256
    %v3273 = vadd.f32 %v3235, %v3257
    %v3274 = vadd.f32 %v3238, %v3258
    %v3275 = vadd.f32 %v3241, %v3259
    %v3276 = vadd.f32 %v3244, %v3260
    %v3277 = vsel %vm3196, %v3261, -inf
    %v3278 = vsel %vm3196, %v3262, -inf
    %v3279 = vsel %vm3196, %v3263, -inf
    %v3280 = vsel %vm3196, %v3264, -inf
    %v3281 = vsel %vm3196, %v3265, -inf
    %v3282 = vmax.f32 %v3277, %v3281
    %v3283 = vsel %vm3196, %v3266, -inf
    %v3284 = vmax.f32 %v3278, %v3283
    %v3285 = vsel %vm3196, %v3267, -inf
    %v3286 = vmax.f32 %v3279, %v3285
    %v3287 = vsel %vm3196, %v3268, -inf
    %v3288 = vmax.f32 %v3280, %v3287
    %v3289 = vsel %vm3196, %v3269, -inf
    %v3290 = vmax.f32 %v3282, %v3289
    %v3291 = vsel %vm3196, %v3270, -inf
    %v3292 = vmax.f32 %v3284, %v3291
    %v3293 = vsel %vm3196, %v3271, -inf
    %v3294 = vmax.f32 %v3286, %v3293
    %v3295 = vsel %vm3196, %v3272, -inf
    %v3296 = vmax.f32 %v3288, %v3295
    %v3297 = vsel %vm3196, %v3273, -inf
    %v3298 = vmax.f32 %v3290, %v3297
    %v3299 = vsel %vm3196, %v3274, -inf
    %v3300 = vmax.f32 %v3292, %v3299
    %v3301 = vsel %vm3196, %v3275, -inf
    %v3302 = vmax.f32 %v3294, %v3301
    %v3303 = vsel %vm3196, %v3276, -inf
    %v3304 = vmax.f32 %v3296, %v3303
    %v3305 = vmax.f32 %v3298, %v3300
    %v3306 = vmax.f32 %v3302, %v3304
    %v3307 = vmax.f32 %v3305, %v3306
    %v3308 = vrot.slane %v3307, 4
    %v3309 = vmax.f32 %v3307, %v3308
    %v3310 = vrot.slane %v3309, 2
    %v3311 = vmax.f32 %v3309, %v3310
    %v3312 = vrot.slane %v3311, 1
    %v3313 = vmax.f32 %v3311, %v3312
    %v3314 = vsub.f32 %v3261, %v3313
    %v3315 = vsub.f32 %v3262, %v3313
    %v3316 = vsub.f32 %v3263, %v3313
    %v3317 = vsub.f32 %v3264, %v3313
    %v3318 = vsub.f32 %v3265, %v3313
    %v3319 = vsub.f32 %v3266, %v3313
    %v3320 = vsub.f32 %v3267, %v3313
    %v3321 = vsub.f32 %v3268, %v3313
    %v3322 = vsub.f32 %v3269, %v3313
    %v3323 = vsub.f32 %v3270, %v3313
    %v3324 = vsub.f32 %v3271, %v3313
    %v3325 = vsub.f32 %v3272, %v3313
    %v3326 = vsub.f32 %v3273, %v3313
    %v3327 = vsub.f32 %v3274, %v3313
    %v3328 = vsub.f32 %v3275, %v3313
    %v3329 = vsub.f32 %v3276, %v3313
    %v3330 = vmul.f32 %v3314, 1.442695
    %v3331 = vpow.pop %v3330
    %v3332 = vmul.f32 %v3315, 1.442695
    %v3333 = vpow.pop %v3332
    %v3334 = vmul.f32 %v3316, 1.442695
    %v3335 = vpow.pop %v3334
    %v3336 = vmul.f32 %v3317, 1.442695
    %v3337 = vpow.pop %v3336
    %v3338 = vmul.f32 %v3318, 1.442695
    %v3339 = vpow.pop %v3338
    %v3340 = vmul.f32 %v3319, 1.442695
    %v3341 = vpow.pop %v3340
    %v3342 = vmul.f32 %v3320, 1.442695
    %v3343 = vpow.pop %v3342
    %v3344 = vmul.f32 %v3321, 1.442695
    %v3345 = vpow.pop %v3344
    %v3346 = vmul.f32 %v3322, 1.442695
    %v3347 = vpow.pop %v3346
    %v3348 = vmul.f32 %v3323, 1.442695
    %v3349 = vpow.pop %v3348
    %v3350 = vmul.f32 %v3324, 1.442695
    %v3351 = vpow.pop %v3350
    %v3352 = vmul.f32 %v3325, 1.442695
    %v3353 = vpow.pop %v3352
    %v3354 = vmul.f32 %v3326, 1.442695
    %v3355 = vpow.pop %v3354
    %v3356 = vmul.f32 %v3327, 1.442695
    %v3357 = vpow.pop %v3356
    %v3358 = vmul.f32 %v3328, 1.442695
    %v3359 = vpow.pop %v3358
    %v3360 = vmul.f32 %v3329, 1.442695
    %v3361 = vpow.pop %v3360
    %v3362 = vsel %vm3196, %v3331, 0.0
    %v3363 = vsel %vm3196, %v3333, 0.0
    %v3364 = vadd.f32 %v3362, %v3363
    %v3365 = vsel %vm3196, %v3335, 0.0
    %v3366 = vadd.f32 %v3364, %v3365
    %v3367 = vsel %vm3196, %v3337, 0.0
    %v3368 = vadd.f32 %v3366, %v3367
    %v3369 = vsel %vm3196, %v3339, 0.0
    %v3370 = vadd.f32 %v3368, %v3369
    %v3371 = vsel %vm3196, %v3341, 0.0
    %v3372 = vadd.f32 %v3370, %v3371
    %v3373 = vsel %vm3196, %v3343, 0.0
    %v3374 = vadd.f32 %v3372, %v3373
    %v3375 = vsel %vm3196, %v3345, 0.0
    %v3376 = vadd.f32 %v3374, %v3375
    %v3377 = vsel %vm3196, %v3347, 0.0
    %v3378 = vadd.f32 %v3376, %v3377
    %v3379 = vsel %vm3196, %v3349, 0.0
    %v3380 = vadd.f32 %v3378, %v3379
    %v3381 = vsel %vm3196, %v3351, 0.0
    %v3382 = vadd.f32 %v3380, %v3381
    %v3383 = vsel %vm3196, %v3353, 0.0
    %v3384 = vadd.f32 %v3382, %v3383
    %v3385 = vsel %vm3196, %v3355, 0.0
    %v3386 = vadd.f32 %v3384, %v3385
    %v3387 = vsel %vm3196, %v3357, 0.0
    %v3388 = vadd.f32 %v3386, %v3387
    %v3389 = vsel %vm3196, %v3359, 0.0
    %v3390 = vadd.f32 %v3388, %v3389
    %v3391 = vsel %vm3196, %v3361, 0.0
    %v3392 = vadd.f32 %v3390, %v3391
    %v3393 = vrot.slane %v3392, 4
    %v3394 = vadd.f32 %v3392, %v3393
    %v3395 = vrot.slane %v3394, 2
    %v3396 = vadd.f32 %v3394, %v3395
    %v3397 = vrot.slane %v3396, 1
    %v3398 = vadd.f32 %v3396, %v3397
    %v3399 = vrcp.pop %v3398
    %v3400 = vmul.f32 %v3331, %v3399
    %v3401 = vmul.f32 %v3333, %v3399
    %v3402 = vmul.f32 %v3335, %v3399
    %v3403 = vmul.f32 %v3337, %v3399
    %v3404 = vmul.f32 %v3339, %v3399
    %v3405 = vmul.f32 %v3341, %v3399
    %v3406 = vmul.f32 %v3343, %v3399
    %v3407 = vmul.f32 %v3345, %v3399
    %v3408 = vmul.f32 %v3347, %v3399
    %v3409 = vmul.f32 %v3349, %v3399
    %v3410 = vmul.f32 %v3351, %v3399
    %v3411 = vmul.f32 %v3353, %v3399
    %v3412 = vmul.f32 %v3355, %v3399
    %v3413 = vmul.f32 %v3357, %v3399
    %v3414 = vmul.f32 %v3359, %v3399
    %v3415 = vmul.f32 %v3361, %v3399
    %3416 = vxpose.xlu0.b32.start [1/16] %v3400, 128
    %3417 = vxpose.xlu0.b32.cont [2/16] %v3401, 128
    %3418 = vxpose.xlu0.b32.cont [3/16] %v3402, 128
    %3419 = vxpose.xlu0.b32.cont [4/16] %v3403, 128
    %3420 = vxpose.xlu0.b32.cont [5/16] %v3404, 128
    %3421 = vxpose.xlu0.b32.cont [6/16] %v3405, 128
    %3422 = vxpose.xlu0.b32.cont [7/16] %v3406, 128
    %3423 = vxpose.xlu0.b32.cont [8/16] %v3407, 128
    %3424 = vxpose.xlu0.b32.cont [9/16] %v3408, 128
    %3425 = vxpose.xlu0.b32.cont [10/16] %v3409, 128
    %3426 = vxpose.xlu0.b32.cont [11/16] %v3410, 128
    %3427 = vxpose.xlu0.b32.cont [12/16] %v3411, 128
    %3428 = vxpose.xlu0.b32.cont [13/16] %v3412, 128
    %3429 = vxpose.xlu0.b32.cont [14/16] %v3413, 128
    %3430 = vxpose.xlu0.b32.cont [15/16] %v3414, 128
    %3431 = vxpose.xlu0.b32.end [16/16] %v3415, 128
    %v3432 = vpop.trf.xlu0
    %v3433 = vpop.trf.xlu0
    %v3434 = vpop.trf.xlu0
    %v3435 = vpop.trf.xlu0
    %v3436 = vpop.trf.xlu0
    %v3437 = vpop.trf.xlu0
    %v3438 = vpop.trf.xlu0
    %v3439 = vpop.trf.xlu0
    %v3440 = vpop.trf.xlu0
    %v3441 = vpop.trf.xlu0
    %v3442 = vpop.trf.xlu0
    %v3443 = vpop.trf.xlu0
    %v3444 = vpop.trf.xlu0
    %v3445 = vpop.trf.xlu0
    %v3446 = vpop.trf.xlu0
    %v3447 = vpop.trf.xlu0
    %3448 = vmatprep.subr.mxu0 0.0
    %3449 = vmatpush1.msra.mxu0 %v2875
    %3450 = vmatprep.subr.mxu0 0.0
    %3451 = vmatpush1.msra.mxu0 %v2880
    %3452 = vmatprep.subr.mxu0 0.0
    %3453 = vmatpush1.msra.mxu0 %v2885
    %3454 = vmatprep.subr.mxu0 0.0
    %3455 = vmatpush1.msra.mxu0 %v2890
    %3456 = vmatprep.subr.mxu0 0.0
    %3457 = vmatpush1.msra.mxu0 %v2895
    %3458 = vmatprep.subr.mxu0 0.0
    %3459 = vmatpush1.msra.mxu0 %v2900
    %3460 = vmatprep.subr.mxu0 0.0
    %3461 = vmatpush1.msra.mxu0 %v2905
    %3462 = vmatprep.subr.mxu0 0.0
    %3463 = vmatpush1.msra.mxu0 %v2910
    %3464 = vmatprep.subr.mxu0 0.0
    %3465 = vmatpush1.msra.mxu0 %v2915
    %3466 = vmatprep.subr.mxu0 0.0
    %3467 = vmatpush1.msra.mxu0 %v2920
    %3468 = vmatprep.subr.mxu0 0.0
    %3469 = vmatpush1.msra.mxu0 %v2925
    %3470 = vmatprep.subr.mxu0 0.0
    %3471 = vmatpush1.msra.mxu0 %v2930
    %3472 = vmatprep.subr.mxu0 0.0
    %3473 = vmatpush1.msra.mxu0 %v2935
    %3474 = vmatprep.subr.mxu0 0.0
    %3475 = vmatpush1.msra.mxu0 %v2940
    %3476 = vmatprep.subr.mxu0 0.0
    %3477 = vmatpush1.msra.mxu0 %v2945
    %3478 = vmatprep.subr.mxu0 0.0
    %3479 = vmatpush1.msra.mxu0 %v2950
    %3480 = vmatprep.subr.mxu0 0.0
    %3481 = vmatpush1.msra.mxu0 0.0
    %3482 = vmatprep.subr.mxu0 0.0
    %3483 = vmatpush1.msra.mxu0 0.0
    %3484 = vmatprep.subr.mxu0 0.0
    %3485 = vmatpush1.msra.mxu0 0.0
    %3486 = vmatprep.subr.mxu0 0.0
    %3487 = vmatpush1.msra.mxu0 0.0
    %3488 = vmatprep.subr.mxu0 0.0
    %3489 = vmatpush1.msra.mxu0 0.0
    %3490 = vmatprep.subr.mxu0 0.0
    %3491 = vmatpush1.msra.mxu0 0.0
    %3492 = vmatprep.subr.mxu0 0.0
    %3493 = vmatpush1.msra.mxu0 0.0
    %3494 = vmatprep.subr.mxu0 0.0
    %3495 = vmatpush1.msra.mxu0 0.0
    %3496 = vmatprep.subr.mxu0 0.0
    %3497 = vmatpush1.msra.mxu0 0.0
    %3498 = vmatprep.subr.mxu0 0.0
    %3499 = vmatpush1.msra.mxu0 0.0
    %3500 = vmatprep.subr.mxu0 0.0
    %3501 = vmatpush1.msra.mxu0 0.0
    %3502 = vmatprep.subr.mxu0 0.0
    %3503 = vmatpush1.msra.mxu0 0.0
    %3504 = vmatprep.subr.mxu0 0.0
    %3505 = vmatpush1.msra.mxu0 0.0
    %3506 = vmatprep.subr.mxu0 0.0
    %3507 = vmatpush1.msra.mxu0 0.0
    %3508 = vmatprep.subr.mxu0 0.0
    %3509 = vmatpush1.msra.mxu0 0.0
    %3510 = vmatprep.subr.mxu0 0.0
    %3511 = vmatpush1.msra.mxu0 0.0
    %3512 = vmatprep.mubr.f32.mxu0 0.0
    %3513 = vmatmul.mubr.f32.gmra.mrb[0].mxu0 %v3432
    %v3514 = vpop.f32.mrb[0].mxu0
    %v3515 = vadd.f32 0.0, %v3514
    %v3516 = vpop.f32.mrb[0].mxu0
    %3517 = vmatprep.mubr.f32.mxu0 0.0
    %3518 = vmatmul.mubr.f32.gmra.mrb[0].mxu0 %v3433
    %v3519 = vpop.f32.mrb[0].mxu0
    %v3520 = vadd.f32 0.0, %v3519
    %v3521 = vpop.f32.mrb[0].mxu0
    %3522 = vdwg.mxu0
    %3523 = vst.msk [vmem:[#allocation2] sm:$0xff] %vm75, %v3515
    %3524 = vst.msk [vmem:[#allocation2 + $0x8] sm:$0xff] %vm75, %v3520
    // Predicated region
    $region46: #{tpu_custom_call.1} parent=1 // pred_check
      _
    $region47: #{tpu_custom_call.1} parent=1 // pred_check_branch
      %3526 = sbr.rel (0) target = $region49
    $region48: #{tpu_custom_call.1} parent=1 // pred_region
      %s3528 = ssub.s32 256, 256
      %3529 = vsyncadd [#allocation3], %s3528
      %s3530 = sshll.u32 [#allocation2], 4
      %s3531 = int_to_ptr.vmem [resolvable:$true] %s3530
      %3536 = dma.vmem_to_hbm [thread:$0]  %s3531, 256, %s11, [#allocation3], 128, 128, 8
    $region49: #{tpu_custom_call.1} parent=1 // pred_fallthru
      _
    // Predicated region
    $region50: #{tpu_custom_call.1} parent=1 // pred_check
      _
    $region51: #{tpu_custom_call.1} parent=1 // pred_check_branch
      %3538 = sbr.rel (0) target = $region53
    $region52: #{tpu_custom_call.1} parent=1 // pred_region
      %3539 = dma.done [#allocation3], 256
    $region53: #{tpu_custom_call.1} parent=1 // pred_fallthru
      _
    %3540 = vsyncpa [#allocation3], 1

</llo_original>
